<compile_context>
chip_gen: v7x
topology: tpu7x:2x2x1
jax: 0.10.0
libtpu: 0.0.40
codegen_flags: <defaults>
</compile_context>

<pallas_src>
import functools

import jax
import jax.numpy as jnp
from jax.experimental import pallas as pl
from jax.experimental.pallas import tpu as pltpu


# --------------------------------------------------------------------------- #
# Trace-time copy-plan construction (mirrors the torch view/transpose chain).  #
# --------------------------------------------------------------------------- #
def _reshuffle_perm(img_size=8, patch=2, stride=2):
    loop = img_size // patch // stride
    perm = []
    for i in range(stride):
        for j in range(loop):
            perm += list(range(i * patch + j * patch * stride,
                               i * patch + patch + j * patch * stride))
    return perm  # length img_size


def _build_plan(s, cout):
    """Per output channel super-group j: coalesced flat copy runs for channel c==0.

    Each run is (src_off, dst_off, length):
      out_flat[b, j*cout*Hr*Wr + c*Hr*Wr + dst_off : ... + length]
        = x_flat[b, src_off + c*H*W : ... + length]
    for every fine channel c (the permutation preserves c, so the coarse plan repeats
    with fixed per-channel strides H*W / Hr*Wr).
    """
    H = W = 8 // s
    r = s // 2
    Hr = Wr = 8 // r
    perm = _reshuffle_perm()
    plan = []
    for branch in range(2):            # branch 0: reorg(z); branch 1: reorg(reshuffle(z))
        for r1 in range(r):
            for r2 in range(r):
                runs, cur = [], None
                for a in range(Hr):
                    for v in range(Wr):
                        u, vv = r1 * Hr + a, r2 * Wr + v
                        if branch == 1:
                            u, vv = perm[u], perm[vv]
                        q = (u // H) * s + (vv // W)          # coarse input channel group
                        src = q * cout * H * W + (u % H) * W + (vv % W)
                        dst = a * Wr + v
                        if (cur is not None and src == cur[0] + cur[2]
                                and dst == cur[1] + cur[2]):
                            cur = (cur[0], cur[1], cur[2] + 1)   # extend run
                        else:
                            if cur is not None:
                                runs.append(cur)
                            cur = (src, dst, 1)
                runs.append(cur)
                plan.append(tuple(runs))
    return tuple(plan)


# --------------------------------------------------------------------------- #
# Pallas kernel: fused InvertedReorg + Reshuffle + ReorgSw(x2) + concat.       #
# --------------------------------------------------------------------------- #
def _fuse_kernel(x_ref, o_ref, *, plan, cout, hw, hrwr):
    # x_ref: (bt, C*H*W)              flat input batch tile  (dense DMA)
    # o_ref: (bt, 2*r*r*cout*Hr*Wr)   flat output batch tile (lane width = 128*cout)
    # Pure static permutation: statically unrolled lane-window copies, emitted in
    # strictly increasing output order so stores stream sequentially through the tile.
    for j, runs in enumerate(plan):
        gbase = j * cout * hrwr
        for c in range(cout):
            so = c * hw
            do = gbase + c * hrwr
            for (src, dst, ln) in runs:
                o_ref[:, do + dst:do + dst + ln] = x_ref[:, so + src:so + src + ln]


def _round_up(x, m):
    return (x + m - 1) // m * m


def _pick_batch_tile(B, block_bytes_fn, budget):
    """Largest divisor of B whose double-buffered blocks fit `budget` bytes."""
    divisors = [d for d in range(1, B + 1) if B % d == 0]

    def fits(d):
        return 2 * block_bytes_fn(d) <= budget

    # Prefer hardware-friendly tiles: sublane-aligned (multiple of 8) or the full batch.
    aligned = [d for d in divisors if fits(d) and (d % 8 == 0 or d == B)]
    pool = aligned if aligned else [d for d in divisors if fits(d)]
    if not pool:
        return 1
    best = max(pool)
    # Prefer an even number of grid steps (megacore balance on v7x + DMA/compute
    # overlap) when it does not shrink the tile by more than 2x; otherwise take the
    # biggest tile, possibly a single step (best on single-TC v5e/v6e).
    even = [d for d in pool if (B // d) % 2 == 0]
    if even and max(even) * 2 >= best:
        return max(even)
    return best


def fuse(x, slice_):
    """Pallas implementation of Fuse(slice=slice_).forward(x) for NCHW x."""
    assert x.ndim == 4
    B, C, H, W = x.shape
    s = int(slice_)
    assert s >= 2 and s % 2 == 0, "Fuse needs an even slice (Reorg(slice//2))"
    assert C % (s * s) == 0, "channels must be divisible by slice**2"
    # Reshuffle() is hard-coded to img_size=8, so the InvertedReorg output plane must
    # be exactly 8x8 for the forward pass (and the final concat) to be valid.
    assert H * s == 8 and W * s == 8, "Fuse requires spatial * slice == 8"
    r = s // 2
    assert 8 % r == 0

    cout = C // (s * s)
    Hr = Wr = 8 // r
    c_out = 2 * r * r * cout
    in_flat = C * H * W                 # == 64 * cout
    out_flat = c_out * Hr * Wr          # == 128 * cout  (exact multiple of 128 lanes)
    itemsize = jnp.dtype(x.dtype).itemsize

    # -- VMEM-budgeted batch tile ------------------------------------------------- #
    def padded_block_bytes(bt):
        rows = _round_up(bt, 8)
        return rows * (_round_up(in_flat, 128) + _round_up(out_flat, 128)) * itemsize

    try:
        info = pltpu.get_tpu_info()
        vmem_cap = int(getattr(info, "vmem_capacity_bytes", 64 * 1024 * 1024))
    except Exception:                   # pragma: no cover - conservative fallback
        vmem_cap = 64 * 1024 * 1024
    if vmem_cap <= 0:
        vmem_cap = 64 * 1024 * 1024

    budget = min(vmem_cap // 2, 96 * 1024 * 1024)      # for both double-buffered blocks
    bt = _pick_batch_tile(B, padded_block_bytes, budget)
    vmem_limit = int(min(vmem_cap * 0.9,
                         max(32 * 1024 * 1024,
                             2 * padded_block_bytes(bt) + 8 * 1024 * 1024)))

    plan = _build_plan(s, cout)
    kernel = functools.partial(_fuse_kernel, plan=plan, cout=cout,
                               hw=H * W, hrwr=Hr * Wr)

    out_2d = pl.pallas_call(
        kernel,
        out_shape=jax.ShapeDtypeStruct((B, out_flat), x.dtype),
        grid=(B // bt,),
        in_specs=[pl.BlockSpec((bt, in_flat), lambda b: (b, 0))],
        out_specs=pl.BlockSpec((bt, out_flat), lambda b: (b, 0)),
        compiler_params=pltpu.CompilerParams(
            dimension_semantics=("parallel",),
            vmem_limit_bytes=vmem_limit,
        ),
        cost_estimate=pl.CostEstimate(
            flops=0,
            transcendentals=0,
            bytes_accessed=B * (in_flat + out_flat) * itemsize,
        ),
    )(x.reshape(B, in_flat))            # free reshape (contiguous trailing merge)

    return out_2d.reshape(B, c_out, Hr, Wr)   # free reshape back to NCHW


# --------------------------------------------------------------------------- #
# Pure-JAX reference (mirrors the torch modules) for correctness checking.     #
# --------------------------------------------------------------------------- #
def _inverted_reorg_ref(x, s):
    B, C, H, W = x.shape
    c = C // (s * s)
    x = x.reshape(B, s * s, c, H, W).transpose(0, 2, 1, 3, 4)
    x = x.reshape(B, c, s, s, H, W).transpose(0, 1, 2, 4, 3, 5)
    return x.reshape(B, c, H * s, W * s)


def _reorg_sw_ref(x, s):
    B, C, H, W = x.shape
    h, w = H // s, W // s
    x = x.reshape(B, C, s, h, s, w).transpose(0, 1, 2, 4, 3, 5)
    x = x.reshape(B, C, s * s, h, w).transpose(0, 2, 1, 3, 4)
    return x.reshape(B, C * s * s, h, w)


def _reshuffle_ref(x):
    perm = jnp.array(_reshuffle_perm(), dtype=jnp.int32)
    y = x[:, :, perm, :]
    return y[:, :, :, perm]


def _fuse_ref(x, s):
    z = _inverted_reorg_ref(x, s)
    y = _reshuffle_ref(z)
    zx = _reorg_sw_ref(z, s // 2)
    zy = _reorg_sw_ref(y, s // 2)
    return jnp.concatenate((zx, zy), axis=1)


if __name__ == "__main__":
    key = jax.random.PRNGKey(0)

    # (slice, B, C): spatial is forced to 8 // slice by the hard-coded 8x8 Reshuffle.
    configs = [
        (4, 16, 64),   # slice=4: 2x2 spatial, cout=4; bt=8 -> 2 even grid steps
        (2, 3, 16),    # slice=2: 4x4 spatial, prime batch -> single-step grid
    ]

    for s, B, C in configs:
        H = W = 8 // s
        key, sub = jax.random.split(key)
        x = jax.random.normal(sub, (B, C, H, W), dtype=jnp.float32)

        out = jax.block_until_ready(fuse(x, s))
        ref = jax.block_until_ready(_fuse_ref(x, s))

        assert out.shape == ref.shape, (out.shape, ref.shape)
        assert jnp.array_equal(out, ref), f"Pallas Fuse mismatch for slice={s}"

    print("KERNEL_OK")
</pallas_src>

<mosaic_0001>
module attributes {stable_mosaic.version = 11 : i64} {
  func.func @_fuse_kernel(%arg0: i32, %arg1: memref<8x256xf32, #tpu.memory_space<vmem>>, %arg2: memref<8x512xf32, #tpu.memory_space<vmem>>) attributes {dimension_semantics = [#tpu.dimension_semantics<parallel>], iteration_bounds = array<i64: 2>, scalar_prefetch = 0 : i64, scratch_operands = 0 : i64, tpu.core_type = #tpu.core_type<tc>, window_params = [{transform_indices = @transform_0, window_bounds = array<i64: 8, 256>}, {transform_indices = @transform_1, window_bounds = array<i64: 8, 512>}]} {
    %c0 = arith.constant 0 : index
    %c0_0 = arith.constant 0 : index
    %0 = vector.load %arg1[%c0, %c0_0] : memref<8x256xf32, #tpu.memory_space<vmem>>, vector<8x2xf32>
    %c0_1 = arith.constant 0 : index
    %c0_2 = arith.constant 0 : index
    %1 = vector.load %arg2[%c0_1, %c0_2] : memref<8x512xf32, #tpu.memory_space<vmem>>, vector<8x2xf32>
    tpu.vector_store %arg2[%c0_1, %c0_2], %0 {strides = array<i32>} : memref<8x512xf32, #tpu.memory_space<vmem>>, vector<8x2xf32>,
    %c0_3 = arith.constant 0 : index
    %c16 = arith.constant 16 : index
    %2 = vector.load %arg1[%c0_3, %c16] : memref<8x256xf32, #tpu.memory_space<vmem>>, vector<8x2xf32>
    %c0_4 = arith.constant 0 : index
    %c2 = arith.constant 2 : index
    %3 = vector.load %arg2[%c0_4, %c2] : memref<8x512xf32, #tpu.memory_space<vmem>>, vector<8x2xf32>
    tpu.vector_store %arg2[%c0_4, %c2], %2 {strides = array<i32>} : memref<8x512xf32, #tpu.memory_space<vmem>>, vector<8x2xf32>,
    %c0_5 = arith.constant 0 : index
    %c2_6 = arith.constant 2 : index
    %4 = vector.load %arg1[%c0_5, %c2_6] : memref<8x256xf32, #tpu.memory_space<vmem>>, vector<8x2xf32>
    %c0_7 = arith.constant 0 : index
    %c4 = arith.constant 4 : index
    %5 = vector.load %arg2[%c0_7, %c4] : memref<8x512xf32, #tpu.memory_space<vmem>>, vector<8x2xf32>
    tpu.vector_store %arg2[%c0_7, %c4], %4 {strides = array<i32>} : memref<8x512xf32, #tpu.memory_space<vmem>>, vector<8x2xf32>,
    %c0_8 = arith.constant 0 : index
    %c18 = arith.constant 18 : index
    %6 = vector.load %arg1[%c0_8, %c18] : memref<8x256xf32, #tpu.memory_space<vmem>>, vector<8x2xf32>
    %c0_9 = arith.constant 0 : index
    %c6 = arith.constant 6 : index
    %7 = vector.load %arg2[%c0_9, %c6] : memref<8x512xf32, #tpu.memory_space<vmem>>, vector<8x2xf32>
    tpu.vector_store %arg2[%c0_9, %c6], %6 {strides = array<i32>} : memref<8x512xf32, #tpu.memory_space<vmem>>, vector<8x2xf32>,
    %c0_10 = arith.constant 0 : index
    %c64 = arith.constant 64 : index
    %8 = vector.load %arg1[%c0_10, %c64] : memref<8x256xf32, #tpu.memory_space<vmem>>, vector<8x2xf32>
    %c0_11 = arith.constant 0 : index
    %c8 = arith.constant 8 : index
    %9 = vector.load %arg2[%c0_11, %c8] : memref<8x512xf32, #tpu.memory_space<vmem>>, vector<8x2xf32>
    tpu.vector_store %arg2[%c0_11, %c8], %8 {strides = array<i32>} : memref<8x512xf32, #tpu.memory_space<vmem>>, vector<8x2xf32>,
    %c0_12 = arith.constant 0 : index
    %c80 = arith.constant 80 : index
    %10 = vector.load %arg1[%c0_12, %c80] : memref<8x256xf32, #tpu.memory_space<vmem>>, vector<8x2xf32>
    %c0_13 = arith.constant 0 : index
    %c10 = arith.constant 10 : index
    %11 = vector.load %arg2[%c0_13, %c10] : memref<8x512xf32, #tpu.memory_space<vmem>>, vector<8x2xf32>
    tpu.vector_store %arg2[%c0_13, %c10], %10 {strides = array<i32>} : memref<8x512xf32, #tpu.memory_space<vmem>>, vector<8x2xf32>,
    %c0_14 = arith.constant 0 : index
    %c66 = arith.constant 66 : index
    %12 = vector.load %arg1[%c0_14, %c66] : memref<8x256xf32, #tpu.memory_space<vmem>>, vector<8x2xf32>
    %c0_15 = arith.constant 0 : index
    %c12 = arith.constant 12 : index
    %13 = vector.load %arg2[%c0_15, %c12] : memref<8x512xf32, #tpu.memory_space<vmem>>, vector<8x2xf32>
    tpu.vector_store %arg2[%c0_15, %c12], %12 {strides = array<i32>} : memref<8x512xf32, #tpu.memory_space<vmem>>, vector<8x2xf32>,
    %c0_16 = arith.constant 0 : index
    %c82 = arith.constant 82 : index
    %14 = vector.load %arg1[%c0_16, %c82] : memref<8x256xf32, #tpu.memory_space<vmem>>, vector<8x2xf32>
    %c0_17 = arith.constant 0 : index
    %c14 = arith.constant 14 : index
    %15 = vector.load %arg2[%c0_17, %c14] : memref<8x512xf32, #tpu.memory_space<vmem>>, vector<8x2xf32>
    tpu.vector_store %arg2[%c0_17, %c14], %14 {strides = array<i32>} : memref<8x512xf32, #tpu.memory_space<vmem>>, vector<8x2xf32>,
    %c0_18 = arith.constant 0 : index
    %c4_19 = arith.constant 4 : index
    %16 = vector.load %arg1[%c0_18, %c4_19] : memref<8x256xf32, #tpu.memory_space<vmem>>, vector<8x2xf32>
    %c0_20 = arith.constant 0 : index
    %c16_21 = arith.constant 16 : index
    %17 = vector.load %arg2[%c0_20, %c16_21] : memref<8x512xf32, #tpu.memory_space<vmem>>, vector<8x2xf32>
    tpu.vector_store %arg2[%c0_20, %c16_21], %16 {strides = array<i32>} : memref<8x512xf32, #tpu.memory_space<vmem>>, vector<8x2xf32>,
    %c0_22 = arith.constant 0 : index
    %c20 = arith.constant 20 : index
    %18 = vector.load %arg1[%c0_22, %c20] : memref<8x256xf32, #tpu.memory_space<vmem>>, vector<8x2xf32>
    %c0_23 = arith.constant 0 : index
    %c18_24 = arith.constant 18 : index
    %19 = vector.load %arg2[%c0_23, %c18_24] : memref<8x512xf32, #tpu.memory_space<vmem>>, vector<8x2xf32>
    tpu.vector_store %arg2[%c0_23, %c18_24], %18 {strides = array<i32>} : memref<8x512xf32, #tpu.memory_space<vmem>>, vector<8x2xf32>,
    %c0_25 = arith.constant 0 : index
    %c6_26 = arith.constant 6 : index
    %20 = vector.load %arg1[%c0_25, %c6_26] : memref<8x256xf32, #tpu.memory_space<vmem>>, vector<8x2xf32>
    %c0_27 = arith.constant 0 : index
    %c20_28 = arith.constant 20 : index
    %21 = vector.load %arg2[%c0_27, %c20_28] : memref<8x512xf32, #tpu.memory_space<vmem>>, vector<8x2xf32>
    tpu.vector_store %arg2[%c0_27, %c20_28], %20 {strides = array<i32>} : memref<8x512xf32, #tpu.memory_space<vmem>>, vector<8x2xf32>,
    %c0_29 = arith.constant 0 : index
    %c22 = arith.constant 22 : index
    %22 = vector.load %arg1[%c0_29, %c22] : memref<8x256xf32, #tpu.memory_space<vmem>>, vector<8x2xf32>
    %c0_30 = arith.constant 0 : index
    %c22_31 = arith.constant 22 : index
    %23 = vector.load %arg2[%c0_30, %c22_31] : memref<8x512xf32, #tpu.memory_space<vmem>>, vector<8x2xf32>
    tpu.vector_store %arg2[%c0_30, %c22_31], %22 {strides = array<i32>} : memref<8x512xf32, #tpu.memory_space<vmem>>, vector<8x2xf32>,
    %c0_32 = arith.constant 0 : index
    %c68 = arith.constant 68 : index
    %24 = vector.load %arg1[%c0_32, %c68] : memref<8x256xf32, #tpu.memory_space<vmem>>, vector<8x2xf32>
    %c0_33 = arith.constant 0 : index
    %c24 = arith.constant 24 : index
    %25 = vector.load %arg2[%c0_33, %c24] : memref<8x512xf32, #tpu.memory_space<vmem>>, vector<8x2xf32>
    tpu.vector_store %arg2[%c0_33, %c24], %24 {strides = array<i32>} : memref<8x512xf32, #tpu.memory_space<vmem>>, vector<8x2xf32>,
    %c0_34 = arith.constant 0 : index
    %c84 = arith.constant 84 : index
    %26 = vector.load %arg1[%c0_34, %c84] : memref<8x256xf32, #tpu.memory_space<vmem>>, vector<8x2xf32>
    %c0_35 = arith.constant 0 : index
    %c26 = arith.constant 26 : index
    %27 = vector.load %arg2[%c0_35, %c26] : memref<8x512xf32, #tpu.memory_space<vmem>>, vector<8x2xf32>
    tpu.vector_store %arg2[%c0_35, %c26], %26 {strides = array<i32>} : memref<8x512xf32, #tpu.memory_space<vmem>>, vector<8x2xf32>,
    %c0_36 = arith.constant 0 : index
    %c70 = arith.constant 70 : index
    %28 = vector.load %arg1[%c0_36, %c70] : memref<8x256xf32, #tpu.memory_space<vmem>>, vector<8x2xf32>
    %c0_37 = arith.constant 0 : index
    %c28 = arith.constant 28 : index
    %29 = vector.load %arg2[%c0_37, %c28] : memref<8x512xf32, #tpu.memory_space<vmem>>, vector<8x2xf32>
    tpu.vector_store %arg2[%c0_37, %c28], %28 {strides = array<i32>} : memref<8x512xf32, #tpu.memory_space<vmem>>, vector<8x2xf32>,
    %c0_38 = arith.constant 0 : index
    %c86 = arith.constant 86 : index
    %30 = vector.load %arg1[%c0_38, %c86] : memref<8x256xf32, #tpu.memory_space<vmem>>, vector<8x2xf32>
    %c0_39 = arith.constant 0 : index
    %c30 = arith.constant 30 : index
    %31 = vector.load %arg2[%c0_39, %c30] : memref<8x512xf32, #tpu.memory_space<vmem>>, vector<8x2xf32>
    tpu.vector_store %arg2[%c0_39, %c30], %30 {strides = array<i32>} : memref<8x512xf32, #tpu.memory_space<vmem>>, vector<8x2xf32>,
    %c0_40 = arith.constant 0 : index
    %c8_41 = arith.constant 8 : index
    %32 = vector.load %arg1[%c0_40, %c8_41] : memref<8x256xf32, #tpu.memory_space<vmem>>, vector<8x2xf32>
    %c0_42 = arith.constant 0 : index
    %c32 = arith.constant 32 : index
    %33 = vector.load %arg2[%c0_42, %c32] : memref<8x512xf32, #tpu.memory_space<vmem>>, vector<8x2xf32>
    tpu.vector_store %arg2[%c0_42, %c32], %32 {strides = array<i32>} : memref<8x512xf32, #tpu.memory_space<vmem>>, vector<8x2xf32>,
    %c0_43 = arith.constant 0 : index
    %c24_44 = arith.constant 24 : index
    %34 = vector.load %arg1[%c0_43, %c24_44] : memref<8x256xf32, #tpu.memory_space<vmem>>, vector<8x2xf32>
    %c0_45 = arith.constant 0 : index
    %c34 = arith.constant 34 : index
    %35 = vector.load %arg2[%c0_45, %c34] : memref<8x512xf32, #tpu.memory_space<vmem>>, vector<8x2xf32>
    tpu.vector_store %arg2[%c0_45, %c34], %34 {strides = array<i32>} : memref<8x512xf32, #tpu.memory_space<vmem>>, vector<8x2xf32>,
    %c0_46 = arith.constant 0 : index
    %c10_47 = arith.constant 10 : index
    %36 = vector.load %arg1[%c0_46, %c10_47] : memref<8x256xf32, #tpu.memory_space<vmem>>, vector<8x2xf32>
    %c0_48 = arith.constant 0 : index
    %c36 = arith.constant 36 : index
    %37 = vector.load %arg2[%c0_48, %c36] : memref<8x512xf32, #tpu.memory_space<vmem>>, vector<8x2xf32>
    tpu.vector_store %arg2[%c0_48, %c36], %36 {strides = array<i32>} : memref<8x512xf32, #tpu.memory_space<vmem>>, vector<8x2xf32>,
    %c0_49 = arith.constant 0 : index
    %c26_50 = arith.constant 26 : index
    %38 = vector.load %arg1[%c0_49, %c26_50] : memref<8x256xf32, #tpu.memory_space<vmem>>, vector<8x2xf32>
    %c0_51 = arith.constant 0 : index
    %c38 = arith.constant 38 : index
    %39 = vector.load %arg2[%c0_51, %c38] : memref<8x512xf32, #tpu.memory_space<vmem>>, vector<8x2xf32>
    tpu.vector_store %arg2[%c0_51, %c38], %38 {strides = array<i32>} : memref<8x512xf32, #tpu.memory_space<vmem>>, vector<8x2xf32>,
    %c0_52 = arith.constant 0 : index
    %c72 = arith.constant 72 : index
    %40 = vector.load %arg1[%c0_52, %c72] : memref<8x256xf32, #tpu.memory_space<vmem>>, vector<8x2xf32>
    %c0_53 = arith.constant 0 : index
    %c40 = arith.constant 40 : index
    %41 = vector.load %arg2[%c0_53, %c40] : memref<8x512xf32, #tpu.memory_space<vmem>>, vector<8x2xf32>
    tpu.vector_store %arg2[%c0_53, %c40], %40 {strides = array<i32>} : memref<8x512xf32, #tpu.memory_space<vmem>>, vector<8x2xf32>,
    %c0_54 = arith.constant 0 : index
    %c88 = arith.constant 88 : index
    %42 = vector.load %arg1[%c0_54, %c88] : memref<8x256xf32, #tpu.memory_space<vmem>>, vector<8x2xf32>
    %c0_55 = arith.constant 0 : index
    %c42 = arith.constant 42 : index
    %43 = vector.load %arg2[%c0_55, %c42] : memref<8x512xf32, #tpu.memory_space<vmem>>, vector<8x2xf32>
    tpu.vector_store %arg2[%c0_55, %c42], %42 {strides = array<i32>} : memref<8x512xf32, #tpu.memory_space<vmem>>, vector<8x2xf32>,
    %c0_56 = arith.constant 0 : index
    %c74 = arith.constant 74 : index
    %44 = vector.load %arg1[%c0_56, %c74] : memref<8x256xf32, #tpu.memory_space<vmem>>, vector<8x2xf32>
    %c0_57 = arith.constant 0 : index
    %c44 = arith.constant 44 : index
    %45 = vector.load %arg2[%c0_57, %c44] : memref<8x512xf32, #tpu.memory_space<vmem>>, vector<8x2xf32>
    tpu.vector_store %arg2[%c0_57, %c44], %44 {strides = array<i32>} : memref<8x512xf32, #tpu.memory_space<vmem>>, vector<8x2xf32>,
    %c0_58 = arith.constant 0 : index
    %c90 = arith.constant 90 : index
    %46 = vector.load %arg1[%c0_58, %c90] : memref<8x256xf32, #tpu.memory_space<vmem>>, vector<8x2xf32>
    %c0_59 = arith.constant 0 : index
    %c46 = arith.constant 46 : index
    %47 = vector.load %arg2[%c0_59, %c46] : memref<8x512xf32, #tpu.memory_space<vmem>>, vector<8x2xf32>
    tpu.vector_store %arg2[%c0_59, %c46], %46 {strides = array<i32>} : memref<8x512xf32, #tpu.memory_space<vmem>>, vector<8x2xf32>,
    %c0_60 = arith.constant 0 : index
    %c12_61 = arith.constant 12 : index
    %48 = vector.load %arg1[%c0_60, %c12_61] : memref<8x256xf32, #tpu.memory_space<vmem>>, vector<8x2xf32>
    %c0_62 = arith.constant 0 : index
    %c48 = arith.constant 48 : index
    %49 = vector.load %arg2[%c0_62, %c48] : memref<8x512xf32, #tpu.memory_space<vmem>>, vector<8x2xf32>
    tpu.vector_store %arg2[%c0_62, %c48], %48 {strides = array<i32>} : memref<8x512xf32, #tpu.memory_space<vmem>>, vector<8x2xf32>,
    %c0_63 = arith.constant 0 : index
    %c28_64 = arith.constant 28 : index
    %50 = vector.load %arg1[%c0_63, %c28_64] : memref<8x256xf32, #tpu.memory_space<vmem>>, vector<8x2xf32>
    %c0_65 = arith.constant 0 : index
    %c50 = arith.constant 50 : index
    %51 = vector.load %arg2[%c0_65, %c50] : memref<8x512xf32, #tpu.memory_space<vmem>>, vector<8x2xf32>
    tpu.vector_store %arg2[%c0_65, %c50], %50 {strides = array<i32>} : memref<8x512xf32, #tpu.memory_space<vmem>>, vector<8x2xf32>,
    %c0_66 = arith.constant 0 : index
    %c14_67 = arith.constant 14 : index
    %52 = vector.load %arg1[%c0_66, %c14_67] : memref<8x256xf32, #tpu.memory_space<vmem>>, vector<8x2xf32>
    %c0_68 = arith.constant 0 : index
    %c52 = arith.constant 52 : index
    %53 = vector.load %arg2[%c0_68, %c52] : memref<8x512xf32, #tpu.memory_space<vmem>>, vector<8x2xf32>
    tpu.vector_store %arg2[%c0_68, %c52], %52 {strides = array<i32>} : memref<8x512xf32, #tpu.memory_space<vmem>>, vector<8x2xf32>,
    %c0_69 = arith.constant 0 : index
    %c30_70 = arith.constant 30 : index
    %54 = vector.load %arg1[%c0_69, %c30_70] : memref<8x256xf32, #tpu.memory_space<vmem>>, vector<8x2xf32>
    %c0_71 = arith.constant 0 : index
    %c54 = arith.constant 54 : index
    %55 = vector.load %arg2[%c0_71, %c54] : memref<8x512xf32, #tpu.memory_space<vmem>>, vector<8x2xf32>
    tpu.vector_store %arg2[%c0_71, %c54], %54 {strides = array<i32>} : memref<8x512xf32, #tpu.memory_space<vmem>>, vector<8x2xf32>,
    %c0_72 = arith.constant 0 : index
    %c76 = arith.constant 76 : index
    %56 = vector.load %arg1[%c0_72, %c76] : memref<8x256xf32, #tpu.memory_space<vmem>>, vector<8x2xf32>
    %c0_73 = arith.constant 0 : index
    %c56 = arith.constant 56 : index
    %57 = vector.load %arg2[%c0_73, %c56] : memref<8x512xf32, #tpu.memory_space<vmem>>, vector<8x2xf32>
    tpu.vector_store %arg2[%c0_73, %c56], %56 {strides = array<i32>} : memref<8x512xf32, #tpu.memory_space<vmem>>, vector<8x2xf32>,
    %c0_74 = arith.constant 0 : index
    %c92 = arith.constant 92 : index
    %58 = vector.load %arg1[%c0_74, %c92] : memref<8x256xf32, #tpu.memory_space<vmem>>, vector<8x2xf32>
    %c0_75 = arith.constant 0 : index
    %c58 = arith.constant 58 : index
    %59 = vector.load %arg2[%c0_75, %c58] : memref<8x512xf32, #tpu.memory_space<vmem>>, vector<8x2xf32>
    tpu.vector_store %arg2[%c0_75, %c58], %58 {strides = array<i32>} : memref<8x512xf32, #tpu.memory_space<vmem>>, vector<8x2xf32>,
    %c0_76 = arith.constant 0 : index
    %c78 = arith.constant 78 : index
    %60 = vector.load %arg1[%c0_76, %c78] : memref<8x256xf32, #tpu.memory_space<vmem>>, vector<8x2xf32>
    %c0_77 = arith.constant 0 : index
    %c60 = arith.constant 60 : index
    %61 = vector.load %arg2[%c0_77, %c60] : memref<8x512xf32, #tpu.memory_space<vmem>>, vector<8x2xf32>
    tpu.vector_store %arg2[%c0_77, %c60], %60 {strides = array<i32>} : memref<8x512xf32, #tpu.memory_space<vmem>>, vector<8x2xf32>,
    %c0_78 = arith.constant 0 : index
    %c94 = arith.constant 94 : index
    %62 = vector.load %arg1[%c0_78, %c94] : memref<8x256xf32, #tpu.memory_space<vmem>>, vector<8x2xf32>
    %c0_79 = arith.constant 0 : index
    %c62 = arith.constant 62 : index
    %63 = vector.load %arg2[%c0_79, %c62] : memref<8x512xf32, #tpu.memory_space<vmem>>, vector<8x2xf32>
    tpu.vector_store %arg2[%c0_79, %c62], %62 {strides = array<i32>} : memref<8x512xf32, #tpu.memory_space<vmem>>, vector<8x2xf32>,
    %c0_80 = arith.constant 0 : index
    %c32_81 = arith.constant 32 : index
    %64 = vector.load %arg1[%c0_80, %c32_81] : memref<8x256xf32, #tpu.memory_space<vmem>>, vector<8x2xf32>
    %c0_82 = arith.constant 0 : index
    %c64_83 = arith.constant 64 : index
    %65 = vector.load %arg2[%c0_82, %c64_83] : memref<8x512xf32, #tpu.memory_space<vmem>>, vector<8x2xf32>
    tpu.vector_store %arg2[%c0_82, %c64_83], %64 {strides = array<i32>} : memref<8x512xf32, #tpu.memory_space<vmem>>, vector<8x2xf32>,
    %c0_84 = arith.constant 0 : index
    %c48_85 = arith.constant 48 : index
    %66 = vector.load %arg1[%c0_84, %c48_85] : memref<8x256xf32, #tpu.memory_space<vmem>>, vector<8x2xf32>
    %c0_86 = arith.constant 0 : index
    %c66_87 = arith.constant 66 : index
    %67 = vector.load %arg2[%c0_86, %c66_87] : memref<8x512xf32, #tpu.memory_space<vmem>>, vector<8x2xf32>
    tpu.vector_store %arg2[%c0_86, %c66_87], %66 {strides = array<i32>} : memref<8x512xf32, #tpu.memory_space<vmem>>, vector<8x2xf32>,
    %c0_88 = arith.constant 0 : index
    %c34_89 = arith.constant 34 : index
    %68 = vector.load %arg1[%c0_88, %c34_89] : memref<8x256xf32, #tpu.memory_space<vmem>>, vector<8x2xf32>
    %c0_90 = arith.constant 0 : index
    %c68_91 = arith.constant 68 : index
    %69 = vector.load %arg2[%c0_90, %c68_91] : memref<8x512xf32, #tpu.memory_space<vmem>>, vector<8x2xf32>
    tpu.vector_store %arg2[%c0_90, %c68_91], %68 {strides = array<i32>} : memref<8x512xf32, #tpu.memory_space<vmem>>, vector<8x2xf32>,
    %c0_92 = arith.constant 0 : index
    %c50_93 = arith.constant 50 : index
    %70 = vector.load %arg1[%c0_92, %c50_93] : memref<8x256xf32, #tpu.memory_space<vmem>>, vector<8x2xf32>
    %c0_94 = arith.constant 0 : index
    %c70_95 = arith.constant 70 : index
    %71 = vector.load %arg2[%c0_94, %c70_95] : memref<8x512xf32, #tpu.memory_space<vmem>>, vector<8x2xf32>
    tpu.vector_store %arg2[%c0_94, %c70_95], %70 {strides = array<i32>} : memref<8x512xf32, #tpu.memory_space<vmem>>, vector<8x2xf32>,
    %c0_96 = arith.constant 0 : index
    %c96 = arith.constant 96 : index
    %72 = vector.load %arg1[%c0_96, %c96] : memref<8x256xf32, #tpu.memory_space<vmem>>, vector<8x2xf32>
    %c0_97 = arith.constant 0 : index
    %c72_98 = arith.constant 72 : index
    %73 = vector.load %arg2[%c0_97, %c72_98] : memref<8x512xf32, #tpu.memory_space<vmem>>, vector<8x2xf32>
    tpu.vector_store %arg2[%c0_97, %c72_98], %72 {strides = array<i32>} : memref<8x512xf32, #tpu.memory_space<vmem>>, vector<8x2xf32>,
    %c0_99 = arith.constant 0 : index
    %c112 = arith.constant 112 : index
    %74 = vector.load %arg1[%c0_99, %c112] : memref<8x256xf32, #tpu.memory_space<vmem>>, vector<8x2xf32>
    %c0_100 = arith.constant 0 : index
    %c74_101 = arith.constant 74 : index
    %75 = vector.load %arg2[%c0_100, %c74_101] : memref<8x512xf32, #tpu.memory_space<vmem>>, vector<8x2xf32>
    tpu.vector_store %arg2[%c0_100, %c74_101], %74 {strides = array<i32>} : memref<8x512xf32, #tpu.memory_space<vmem>>, vector<8x2xf32>,
    %c0_102 = arith.constant 0 : index
    %c98 = arith.constant 98 : index
    %76 = vector.load %arg1[%c0_102, %c98] : memref<8x256xf32, #tpu.memory_space<vmem>>, vector<8x2xf32>
    %c0_103 = arith.constant 0 : index
    %c76_104 = arith.constant 76 : index
    %77 = vector.load %arg2[%c0_103, %c76_104] : memref<8x512xf32, #tpu.memory_space<vmem>>, vector<8x2xf32>
    tpu.vector_store %arg2[%c0_103, %c76_104], %76 {strides = array<i32>} : memref<8x512xf32, #tpu.memory_space<vmem>>, vector<8x2xf32>,
    %c0_105 = arith.constant 0 : index
    %c114 = arith.constant 114 : index
    %78 = vector.load %arg1[%c0_105, %c114] : memref<8x256xf32, #tpu.memory_space<vmem>>, vector<8x2xf32>
    %c0_106 = arith.constant 0 : index
    %c78_107 = arith.constant 78 : index
    %79 = vector.load %arg2[%c0_106, %c78_107] : memref<8x512xf32, #tpu.memory_space<vmem>>, vector<8x2xf32>
    tpu.vector_store %arg2[%c0_106, %c78_107], %78 {strides = array<i32>} : memref<8x512xf32, #tpu.memory_space<vmem>>, vector<8x2xf32>,
    %c0_108 = arith.constant 0 : index
    %c36_109 = arith.constant 36 : index
    %80 = vector.load %arg1[%c0_108, %c36_109] : memref<8x256xf32, #tpu.memory_space<vmem>>, vector<8x2xf32>
    %c0_110 = arith.constant 0 : index
    %c80_111 = arith.constant 80 : index
    %81 = vector.load %arg2[%c0_110, %c80_111] : memref<8x512xf32, #tpu.memory_space<vmem>>, vector<8x2xf32>
    tpu.vector_store %arg2[%c0_110, %c80_111], %80 {strides = array<i32>} : memref<8x512xf32, #tpu.memory_space<vmem>>, vector<8x2xf32>,
    %c0_112 = arith.constant 0 : index
    %c52_113 = arith.constant 52 : index
    %82 = vector.load %arg1[%c0_112, %c52_113] : memref<8x256xf32, #tpu.memory_space<vmem>>, vector<8x2xf32>
    %c0_114 = arith.constant 0 : index
    %c82_115 = arith.constant 82 : index
    %83 = vector.load %arg2[%c0_114, %c82_115] : memref<8x512xf32, #tpu.memory_space<vmem>>, vector<8x2xf32>
    tpu.vector_store %arg2[%c0_114, %c82_115], %82 {strides = array<i32>} : memref<8x512xf32, #tpu.memory_space<vmem>>, vector<8x2xf32>,
    %c0_116 = arith.constant 0 : index
    %c38_117 = arith.constant 38 : index
    %84 = vector.load %arg1[%c0_116, %c38_117] : memref<8x256xf32, #tpu.memory_space<vmem>>, vector<8x2xf32>
    %c0_118 = arith.constant 0 : index
    %c84_119 = arith.constant 84 : index
    %85 = vector.load %arg2[%c0_118, %c84_119] : memref<8x512xf32, #tpu.memory_space<vmem>>, vector<8x2xf32>
    tpu.vector_store %arg2[%c0_118, %c84_119], %84 {strides = array<i32>} : memref<8x512xf32, #tpu.memory_space<vmem>>, vector<8x2xf32>,
    %c0_120 = arith.constant 0 : index
    %c54_121 = arith.constant 54 : index
    %86 = vector.load %arg1[%c0_120, %c54_121] : memref<8x256xf32, #tpu.memory_space<vmem>>, vector<8x2xf32>
    %c0_122 = arith.constant 0 : index
    %c86_123 = arith.constant 86 : index
    %87 = vector.load %arg2[%c0_122, %c86_123] : memref<8x512xf32, #tpu.memory_space<vmem>>, vector<8x2xf32>
    tpu.vector_store %arg2[%c0_122, %c86_123], %86 {strides = array<i32>} : memref<8x512xf32, #tpu.memory_space<vmem>>, vector<8x2xf32>,
    %c0_124 = arith.constant 0 : index
    %c100 = arith.constant 100 : index
    %88 = vector.load %arg1[%c0_124, %c100] : memref<8x256xf32, #tpu.memory_space<vmem>>, vector<8x2xf32>
    %c0_125 = arith.constant 0 : index
    %c88_126 = arith.constant 88 : index
    %89 = vector.load %arg2[%c0_125, %c88_126] : memref<8x512xf32, #tpu.memory_space<vmem>>, vector<8x2xf32>
    tpu.vector_store %arg2[%c0_125, %c88_126], %88 {strides = array<i32>} : memref<8x512xf32, #tpu.memory_space<vmem>>, vector<8x2xf32>,
    %c0_127 = arith.constant 0 : index
    %c116 = arith.constant 116 : index
    %90 = vector.load %arg1[%c0_127, %c116] : memref<8x256xf32, #tpu.memory_space<vmem>>, vector<8x2xf32>
    %c0_128 = arith.constant 0 : index
    %c90_129 = arith.constant 90 : index
    %91 = vector.load %arg2[%c0_128, %c90_129] : memref<8x512xf32, #tpu.memory_space<vmem>>, vector<8x2xf32>
    tpu.vector_store %arg2[%c0_128, %c90_129], %90 {strides = array<i32>} : memref<8x512xf32, #tpu.memory_space<vmem>>, vector<8x2xf32>,
    %c0_130 = arith.constant 0 : index
    %c102 = arith.constant 102 : index
    %92 = vector.load %arg1[%c0_130, %c102] : memref<8x256xf32, #tpu.memory_space<vmem>>, vector<8x2xf32>
    %c0_131 = arith.constant 0 : index
    %c92_132 = arith.constant 92 : index
    %93 = vector.load %arg2[%c0_131, %c92_132] : memref<8x512xf32, #tpu.memory_space<vmem>>, vector<8x2xf32>
    tpu.vector_store %arg2[%c0_131, %c92_132], %92 {strides = array<i32>} : memref<8x512xf32, #tpu.memory_space<vmem>>, vector<8x2xf32>,
    %c0_133 = arith.constant 0 : index
    %c118 = arith.constant 118 : index
    %94 = vector.load %arg1[%c0_133, %c118] : memref<8x256xf32, #tpu.memory_space<vmem>>, vector<8x2xf32>
    %c0_134 = arith.constant 0 : index
    %c94_135 = arith.constant 94 : index
    %95 = vector.load %arg2[%c0_134, %c94_135] : memref<8x512xf32, #tpu.memory_space<vmem>>, vector<8x2xf32>
    tpu.vector_store %arg2[%c0_134, %c94_135], %94 {strides = array<i32>} : memref<8x512xf32, #tpu.memory_space<vmem>>, vector<8x2xf32>,
    %c0_136 = arith.constant 0 : index
    %c40_137 = arith.constant 40 : index
    %96 = vector.load %arg1[%c0_136, %c40_137] : memref<8x256xf32, #tpu.memory_space<vmem>>, vector<8x2xf32>
    %c0_138 = arith.constant 0 : index
    %c96_139 = arith.constant 96 : index
    %97 = vector.load %arg2[%c0_138, %c96_139] : memref<8x512xf32, #tpu.memory_space<vmem>>, vector<8x2xf32>
    tpu.vector_store %arg2[%c0_138, %c96_139], %96 {strides = array<i32>} : memref<8x512xf32, #tpu.memory_space<vmem>>, vector<8x2xf32>,
    %c0_140 = arith.constant 0 : index
    %c56_141 = arith.constant 56 : index
    %98 = vector.load %arg1[%c0_140, %c56_141] : memref<8x256xf32, #tpu.memory_space<vmem>>, vector<8x2xf32>
    %c0_142 = arith.constant 0 : index
    %c98_143 = arith.constant 98 : index
    %99 = vector.load %arg2[%c0_142, %c98_143] : memref<8x512xf32, #tpu.memory_space<vmem>>, vector<8x2xf32>
    tpu.vector_store %arg2[%c0_142, %c98_143], %98 {strides = array<i32>} : memref<8x512xf32, #tpu.memory_space<vmem>>, vector<8x2xf32>,
    %c0_144 = arith.constant 0 : index
    %c42_145 = arith.constant 42 : index
    %100 = vector.load %arg1[%c0_144, %c42_145] : memref<8x256xf32, #tpu.memory_space<vmem>>, vector<8x2xf32>
    %c0_146 = arith.constant 0 : index
    %c100_147 = arith.constant 100 : index
    %101 = vector.load %arg2[%c0_146, %c100_147] : memref<8x512xf32, #tpu.memory_space<vmem>>, vector<8x2xf32>
    tpu.vector_store %arg2[%c0_146, %c100_147], %100 {strides = array<i32>} : memref<8x512xf32, #tpu.memory_space<vmem>>, vector<8x2xf32>,
    %c0_148 = arith.constant 0 : index
    %c58_149 = arith.constant 58 : index
    %102 = vector.load %arg1[%c0_148, %c58_149] : memref<8x256xf32, #tpu.memory_space<vmem>>, vector<8x2xf32>
    %c0_150 = arith.constant 0 : index
    %c102_151 = arith.constant 102 : index
    %103 = vector.load %arg2[%c0_150, %c102_151] : memref<8x512xf32, #tpu.memory_space<vmem>>, vector<8x2xf32>
    tpu.vector_store %arg2[%c0_150, %c102_151], %102 {strides = array<i32>} : memref<8x512xf32, #tpu.memory_space<vmem>>, vector<8x2xf32>,
    %c0_152 = arith.constant 0 : index
    %c104 = arith.constant 104 : index
    %104 = vector.load %arg1[%c0_152, %c104] : memref<8x256xf32, #tpu.memory_space<vmem>>, vector<8x2xf32>
    %c0_153 = arith.constant 0 : index
    %c104_154 = arith.constant 104 : index
    %105 = vector.load %arg2[%c0_153, %c104_154] : memref<8x512xf32, #tpu.memory_space<vmem>>, vector<8x2xf32>
    tpu.vector_store %arg2[%c0_153, %c104_154], %104 {strides = array<i32>} : memref<8x512xf32, #tpu.memory_space<vmem>>, vector<8x2xf32>,
    %c0_155 = arith.constant 0 : index
    %c120 = arith.constant 120 : index
    %106 = vector.load %arg1[%c0_155, %c120] : memref<8x256xf32, #tpu.memory_space<vmem>>, vector<8x2xf32>
    %c0_156 = arith.constant 0 : index
    %c106 = arith.constant 106 : index
    %107 = vector.load %arg2[%c0_156, %c106] : memref<8x512xf32, #tpu.memory_space<vmem>>, vector<8x2xf32>
    tpu.vector_store %arg2[%c0_156, %c106], %106 {strides = array<i32>} : memref<8x512xf32, #tpu.memory_space<vmem>>, vector<8x2xf32>,
    %c0_157 = arith.constant 0 : index
    %c106_158 = arith.constant 106 : index
    %108 = vector.load %arg1[%c0_157, %c106_158] : memref<8x256xf32, #tpu.memory_space<vmem>>, vector<8x2xf32>
    %c0_159 = arith.constant 0 : index
    %c108 = arith.constant 108 : index
    %109 = vector.load %arg2[%c0_159, %c108] : memref<8x512xf32, #tpu.memory_space<vmem>>, vector<8x2xf32>
    tpu.vector_store %arg2[%c0_159, %c108], %108 {strides = array<i32>} : memref<8x512xf32, #tpu.memory_space<vmem>>, vector<8x2xf32>,
    %c0_160 = arith.constant 0 : index
    %c122 = arith.constant 122 : index
    %110 = vector.load %arg1[%c0_160, %c122] : memref<8x256xf32, #tpu.memory_space<vmem>>, vector<8x2xf32>
    %c0_161 = arith.constant 0 : index
    %c110 = arith.constant 110 : index
    %111 = vector.load %arg2[%c0_161, %c110] : memref<8x512xf32, #tpu.memory_space<vmem>>, vector<8x2xf32>
    tpu.vector_store %arg2[%c0_161, %c110], %110 {strides = array<i32>} : memref<8x512xf32, #tpu.memory_space<vmem>>, vector<8x2xf32>,
    %c0_162 = arith.constant 0 : index
    %c44_163 = arith.constant 44 : index
    %112 = vector.load %arg1[%c0_162, %c44_163] : memref<8x256xf32, #tpu.memory_space<vmem>>, vector<8x2xf32>
    %c0_164 = arith.constant 0 : index
    %c112_165 = arith.constant 112 : index
    %113 = vector.load %arg2[%c0_164, %c112_165] : memref<8x512xf32, #tpu.memory_space<vmem>>, vector<8x2xf32>
    tpu.vector_store %arg2[%c0_164, %c112_165], %112 {strides = array<i32>} : memref<8x512xf32, #tpu.memory_space<vmem>>, vector<8x2xf32>,
    %c0_166 = arith.constant 0 : index
    %c60_167 = arith.constant 60 : index
    %114 = vector.load %arg1[%c0_166, %c60_167] : memref<8x256xf32, #tpu.memory_space<vmem>>, vector<8x2xf32>
    %c0_168 = arith.constant 0 : index
    %c114_169 = arith.constant 114 : index
    %115 = vector.load %arg2[%c0_168, %c114_169] : memref<8x512xf32, #tpu.memory_space<vmem>>, vector<8x2xf32>
    tpu.vector_store %arg2[%c0_168, %c114_169], %114 {strides = array<i32>} : memref<8x512xf32, #tpu.memory_space<vmem>>, vector<8x2xf32>,
    %c0_170 = arith.constant 0 : index
    %c46_171 = arith.constant 46 : index
    %116 = vector.load %arg1[%c0_170, %c46_171] : memref<8x256xf32, #tpu.memory_space<vmem>>, vector<8x2xf32>
    %c0_172 = arith.constant 0 : index
    %c116_173 = arith.constant 116 : index
    %117 = vector.load %arg2[%c0_172, %c116_173] : memref<8x512xf32, #tpu.memory_space<vmem>>, vector<8x2xf32>
    tpu.vector_store %arg2[%c0_172, %c116_173], %116 {strides = array<i32>} : memref<8x512xf32, #tpu.memory_space<vmem>>, vector<8x2xf32>,
    %c0_174 = arith.constant 0 : index
    %c62_175 = arith.constant 62 : index
    %118 = vector.load %arg1[%c0_174, %c62_175] : memref<8x256xf32, #tpu.memory_space<vmem>>, vector<8x2xf32>
    %c0_176 = arith.constant 0 : index
    %c118_177 = arith.constant 118 : index
    %119 = vector.load %arg2[%c0_176, %c118_177] : memref<8x512xf32, #tpu.memory_space<vmem>>, vector<8x2xf32>
    tpu.vector_store %arg2[%c0_176, %c118_177], %118 {strides = array<i32>} : memref<8x512xf32, #tpu.memory_space<vmem>>, vector<8x2xf32>,
    %c0_178 = arith.constant 0 : index
    %c108_179 = arith.constant 108 : index
    %120 = vector.load %arg1[%c0_178, %c108_179] : memref<8x256xf32, #tpu.memory_space<vmem>>, vector<8x2xf32>
    %c0_180 = arith.constant 0 : index
    %c120_181 = arith.constant 120 : index
    %121 = vector.load %arg2[%c0_180, %c120_181] : memref<8x512xf32, #tpu.memory_space<vmem>>, vector<8x2xf32>
    tpu.vector_store %arg2[%c0_180, %c120_181], %120 {strides = array<i32>} : memref<8x512xf32, #tpu.memory_space<vmem>>, vector<8x2xf32>,
    %c0_182 = arith.constant 0 : index
    %c124 = arith.constant 124 : index
    %122 = vector.load %arg1[%c0_182, %c124] : memref<8x256xf32, #tpu.memory_space<vmem>>, vector<8x2xf32>
    %c0_183 = arith.constant 0 : index
    %c122_184 = arith.constant 122 : index
    %123 = vector.load %arg2[%c0_183, %c122_184] : memref<8x512xf32, #tpu.memory_space<vmem>>, vector<8x2xf32>
    tpu.vector_store %arg2[%c0_183, %c122_184], %122 {strides = array<i32>} : memref<8x512xf32, #tpu.memory_space<vmem>>, vector<8x2xf32>,
    %c0_185 = arith.constant 0 : index
    %c110_186 = arith.constant 110 : index
    %124 = vector.load %arg1[%c0_185, %c110_186] : memref<8x256xf32, #tpu.memory_space<vmem>>, vector<8x2xf32>
    %c0_187 = arith.constant 0 : index
    %c124_188 = arith.constant 124 : index
    %125 = vector.load %arg2[%c0_187, %c124_188] : memref<8x512xf32, #tpu.memory_space<vmem>>, vector<8x2xf32>
    tpu.vector_store %arg2[%c0_187, %c124_188], %124 {strides = array<i32>} : memref<8x512xf32, #tpu.memory_space<vmem>>, vector<8x2xf32>,
    %c0_189 = arith.constant 0 : index
    %c126 = arith.constant 126 : index
    %126 = vector.load %arg1[%c0_189, %c126] : memref<8x256xf32, #tpu.memory_space<vmem>>, vector<8x2xf32>
    %c0_190 = arith.constant 0 : index
    %c126_191 = arith.constant 126 : index
    %127 = vector.load %arg2[%c0_190, %c126_191] : memref<8x512xf32, #tpu.memory_space<vmem>>, vector<8x2xf32>
    tpu.vector_store %arg2[%c0_190, %c126_191], %126 {strides = array<i32>} : memref<8x512xf32, #tpu.memory_space<vmem>>, vector<8x2xf32>,
    %c0_192 = arith.constant 0 : index
    %c128 = arith.constant 128 : index
    %128 = vector.load %arg1[%c0_192, %c128] : memref<8x256xf32, #tpu.memory_space<vmem>>, vector<8x2xf32>
    %c0_193 = arith.constant 0 : index
    %c128_194 = arith.constant 128 : index
    %129 = vector.load %arg2[%c0_193, %c128_194] : memref<8x512xf32, #tpu.memory_space<vmem>>, vector<8x2xf32>
    tpu.vector_store %arg2[%c0_193, %c128_194], %128 {strides = array<i32>} : memref<8x512xf32, #tpu.memory_space<vmem>>, vector<8x2xf32>,
    %c0_195 = arith.constant 0 : index
    %c144 = arith.constant 144 : index
    %130 = vector.load %arg1[%c0_195, %c144] : memref<8x256xf32, #tpu.memory_space<vmem>>, vector<8x2xf32>
    %c0_196 = arith.constant 0 : index
    %c130 = arith.constant 130 : index
    %131 = vector.load %arg2[%c0_196, %c130] : memref<8x512xf32, #tpu.memory_space<vmem>>, vector<8x2xf32>
    tpu.vector_store %arg2[%c0_196, %c130], %130 {strides = array<i32>} : memref<8x512xf32, #tpu.memory_space<vmem>>, vector<8x2xf32>,
    %c0_197 = arith.constant 0 : index
    %c130_198 = arith.constant 130 : index
    %132 = vector.load %arg1[%c0_197, %c130_198] : memref<8x256xf32, #tpu.memory_space<vmem>>, vector<8x2xf32>
    %c0_199 = arith.constant 0 : index
    %c132 = arith.constant 132 : index
    %133 = vector.load %arg2[%c0_199, %c132] : memref<8x512xf32, #tpu.memory_space<vmem>>, vector<8x2xf32>
    tpu.vector_store %arg2[%c0_199, %c132], %132 {strides = array<i32>} : memref<8x512xf32, #tpu.memory_space<vmem>>, vector<8x2xf32>,
    %c0_200 = arith.constant 0 : index
    %c146 = arith.constant 146 : index
    %134 = vector.load %arg1[%c0_200, %c146] : memref<8x256xf32, #tpu.memory_space<vmem>>, vector<8x2xf32>
    %c0_201 = arith.constant 0 : index
    %c134 = arith.constant 134 : index
    %135 = vector.load %arg2[%c0_201, %c134] : memref<8x512xf32, #tpu.memory_space<vmem>>, vector<8x2xf32>
    tpu.vector_store %arg2[%c0_201, %c134], %134 {strides = array<i32>} : memref<8x512xf32, #tpu.memory_space<vmem>>, vector<8x2xf32>,
    %c0_202 = arith.constant 0 : index
    %c192 = arith.constant 192 : index
    %136 = vector.load %arg1[%c0_202, %c192] : memref<8x256xf32, #tpu.memory_space<vmem>>, vector<8x2xf32>
    %c0_203 = arith.constant 0 : index
    %c136 = arith.constant 136 : index
    %137 = vector.load %arg2[%c0_203, %c136] : memref<8x512xf32, #tpu.memory_space<vmem>>, vector<8x2xf32>
    tpu.vector_store %arg2[%c0_203, %c136], %136 {strides = array<i32>} : memref<8x512xf32, #tpu.memory_space<vmem>>, vector<8x2xf32>,
    %c0_204 = arith.constant 0 : index
    %c208 = arith.constant 208 : index
    %138 = vector.load %arg1[%c0_204, %c208] : memref<8x256xf32, #tpu.memory_space<vmem>>, vector<8x2xf32>
    %c0_205 = arith.constant 0 : index
    %c138 = arith.constant 138 : index
    %139 = vector.load %arg2[%c0_205, %c138] : memref<8x512xf32, #tpu.memory_space<vmem>>, vector<8x2xf32>
    tpu.vector_store %arg2[%c0_205, %c138], %138 {strides = array<i32>} : memref<8x512xf32, #tpu.memory_space<vmem>>, vector<8x2xf32>,
    %c0_206 = arith.constant 0 : index
    %c194 = arith.constant 194 : index
    %140 = vector.load %arg1[%c0_206, %c194] : memref<8x256xf32, #tpu.memory_space<vmem>>, vector<8x2xf32>
    %c0_207 = arith.constant 0 : index
    %c140 = arith.constant 140 : index
    %141 = vector.load %arg2[%c0_207, %c140] : memref<8x512xf32, #tpu.memory_space<vmem>>, vector<8x2xf32>
    tpu.vector_store %arg2[%c0_207, %c140], %140 {strides = array<i32>} : memref<8x512xf32, #tpu.memory_space<vmem>>, vector<8x2xf32>,
    %c0_208 = arith.constant 0 : index
    %c210 = arith.constant 210 : index
    %142 = vector.load %arg1[%c0_208, %c210] : memref<8x256xf32, #tpu.memory_space<vmem>>, vector<8x2xf32>
    %c0_209 = arith.constant 0 : index
    %c142 = arith.constant 142 : index
    %143 = vector.load %arg2[%c0_209, %c142] : memref<8x512xf32, #tpu.memory_space<vmem>>, vector<8x2xf32>
    tpu.vector_store %arg2[%c0_209, %c142], %142 {strides = array<i32>} : memref<8x512xf32, #tpu.memory_space<vmem>>, vector<8x2xf32>,
    %c0_210 = arith.constant 0 : index
    %c132_211 = arith.constant 132 : index
    %144 = vector.load %arg1[%c0_210, %c132_211] : memref<8x256xf32, #tpu.memory_space<vmem>>, vector<8x2xf32>
    %c0_212 = arith.constant 0 : index
    %c144_213 = arith.constant 144 : index
    %145 = vector.load %arg2[%c0_212, %c144_213] : memref<8x512xf32, #tpu.memory_space<vmem>>, vector<8x2xf32>
    tpu.vector_store %arg2[%c0_212, %c144_213], %144 {strides = array<i32>} : memref<8x512xf32, #tpu.memory_space<vmem>>, vector<8x2xf32>,
    %c0_214 = arith.constant 0 : index
    %c148 = arith.constant 148 : index
    %146 = vector.load %arg1[%c0_214, %c148] : memref<8x256xf32, #tpu.memory_space<vmem>>, vector<8x2xf32>
    %c0_215 = arith.constant 0 : index
    %c146_216 = arith.constant 146 : index
    %147 = vector.load %arg2[%c0_215, %c146_216] : memref<8x512xf32, #tpu.memory_space<vmem>>, vector<8x2xf32>
    tpu.vector_store %arg2[%c0_215, %c146_216], %146 {strides = array<i32>} : memref<8x512xf32, #tpu.memory_space<vmem>>, vector<8x2xf32>,
    %c0_217 = arith.constant 0 : index
    %c134_218 = arith.constant 134 : index
    %148 = vector.load %arg1[%c0_217, %c134_218] : memref<8x256xf32, #tpu.memory_space<vmem>>, vector<8x2xf32>
    %c0_219 = arith.constant 0 : index
    %c148_220 = arith.constant 148 : index
    %149 = vector.load %arg2[%c0_219, %c148_220] : memref<8x512xf32, #tpu.memory_space<vmem>>, vector<8x2xf32>
    tpu.vector_store %arg2[%c0_219, %c148_220], %148 {strides = array<i32>} : memref<8x512xf32, #tpu.memory_space<vmem>>, vector<8x2xf32>,
    %c0_221 = arith.constant 0 : index
    %c150 = arith.constant 150 : index
    %150 = vector.load %arg1[%c0_221, %c150] : memref<8x256xf32, #tpu.memory_space<vmem>>, vector<8x2xf32>
    %c0_222 = arith.constant 0 : index
    %c150_223 = arith.constant 150 : index
    %151 = vector.load %arg2[%c0_222, %c150_223] : memref<8x512xf32, #tpu.memory_space<vmem>>, vector<8x2xf32>
    tpu.vector_store %arg2[%c0_222, %c150_223], %150 {strides = array<i32>} : memref<8x512xf32, #tpu.memory_space<vmem>>, vector<8x2xf32>,
    %c0_224 = arith.constant 0 : index
    %c196 = arith.constant 196 : index
    %152 = vector.load %arg1[%c0_224, %c196] : memref<8x256xf32, #tpu.memory_space<vmem>>, vector<8x2xf32>
    %c0_225 = arith.constant 0 : index
    %c152 = arith.constant 152 : index
    %153 = vector.load %arg2[%c0_225, %c152] : memref<8x512xf32, #tpu.memory_space<vmem>>, vector<8x2xf32>
    tpu.vector_store %arg2[%c0_225, %c152], %152 {strides = array<i32>} : memref<8x512xf32, #tpu.memory_space<vmem>>, vector<8x2xf32>,
    %c0_226 = arith.constant 0 : index
    %c212 = arith.constant 212 : index
    %154 = vector.load %arg1[%c0_226, %c212] : memref<8x256xf32, #tpu.memory_space<vmem>>, vector<8x2xf32>
    %c0_227 = arith.constant 0 : index
    %c154 = arith.constant 154 : index
    %155 = vector.load %arg2[%c0_227, %c154] : memref<8x512xf32, #tpu.memory_space<vmem>>, vector<8x2xf32>
    tpu.vector_store %arg2[%c0_227, %c154], %154 {strides = array<i32>} : memref<8x512xf32, #tpu.memory_space<vmem>>, vector<8x2xf32>,
    %c0_228 = arith.constant 0 : index
    %c198 = arith.constant 198 : index
    %156 = vector.load %arg1[%c0_228, %c198] : memref<8x256xf32, #tpu.memory_space<vmem>>, vector<8x2xf32>
    %c0_229 = arith.constant 0 : index
    %c156 = arith.constant 156 : index
    %157 = vector.load %arg2[%c0_229, %c156] : memref<8x512xf32, #tpu.memory_space<vmem>>, vector<8x2xf32>
    tpu.vector_store %arg2[%c0_229, %c156], %156 {strides = array<i32>} : memref<8x512xf32, #tpu.memory_space<vmem>>, vector<8x2xf32>,
    %c0_230 = arith.constant 0 : index
    %c214 = arith.constant 214 : index
    %158 = vector.load %arg1[%c0_230, %c214] : memref<8x256xf32, #tpu.memory_space<vmem>>, vector<8x2xf32>
    %c0_231 = arith.constant 0 : index
    %c158 = arith.constant 158 : index
    %159 = vector.load %arg2[%c0_231, %c158] : memref<8x512xf32, #tpu.memory_space<vmem>>, vector<8x2xf32>
    tpu.vector_store %arg2[%c0_231, %c158], %158 {strides = array<i32>} : memref<8x512xf32, #tpu.memory_space<vmem>>, vector<8x2xf32>,
    %c0_232 = arith.constant 0 : index
    %c136_233 = arith.constant 136 : index
    %160 = vector.load %arg1[%c0_232, %c136_233] : memref<8x256xf32, #tpu.memory_space<vmem>>, vector<8x2xf32>
    %c0_234 = arith.constant 0 : index
    %c160 = arith.constant 160 : index
    %161 = vector.load %arg2[%c0_234, %c160] : memref<8x512xf32, #tpu.memory_space<vmem>>, vector<8x2xf32>
    tpu.vector_store %arg2[%c0_234, %c160], %160 {strides = array<i32>} : memref<8x512xf32, #tpu.memory_space<vmem>>, vector<8x2xf32>,
    %c0_235 = arith.constant 0 : index
    %c152_236 = arith.constant 152 : index
    %162 = vector.load %arg1[%c0_235, %c152_236] : memref<8x256xf32, #tpu.memory_space<vmem>>, vector<8x2xf32>
    %c0_237 = arith.constant 0 : index
    %c162 = arith.constant 162 : index
    %163 = vector.load %arg2[%c0_237, %c162] : memref<8x512xf32, #tpu.memory_space<vmem>>, vector<8x2xf32>
    tpu.vector_store %arg2[%c0_237, %c162], %162 {strides = array<i32>} : memref<8x512xf32, #tpu.memory_space<vmem>>, vector<8x2xf32>,
    %c0_238 = arith.constant 0 : index
    %c138_239 = arith.constant 138 : index
    %164 = vector.load %arg1[%c0_238, %c138_239] : memref<8x256xf32, #tpu.memory_space<vmem>>, vector<8x2xf32>
    %c0_240 = arith.constant 0 : index
    %c164 = arith.constant 164 : index
    %165 = vector.load %arg2[%c0_240, %c164] : memref<8x512xf32, #tpu.memory_space<vmem>>, vector<8x2xf32>
    tpu.vector_store %arg2[%c0_240, %c164], %164 {strides = array<i32>} : memref<8x512xf32, #tpu.memory_space<vmem>>, vector<8x2xf32>,
    %c0_241 = arith.constant 0 : index
    %c154_242 = arith.constant 154 : index
    %166 = vector.load %arg1[%c0_241, %c154_242] : memref<8x256xf32, #tpu.memory_space<vmem>>, vector<8x2xf32>
    %c0_243 = arith.constant 0 : index
    %c166 = arith.constant 166 : index
    %167 = vector.load %arg2[%c0_243, %c166] : memref<8x512xf32, #tpu.memory_space<vmem>>, vector<8x2xf32>
    tpu.vector_store %arg2[%c0_243, %c166], %166 {strides = array<i32>} : memref<8x512xf32, #tpu.memory_space<vmem>>, vector<8x2xf32>,
    %c0_244 = arith.constant 0 : index
    %c200 = arith.constant 200 : index
    %168 = vector.load %arg1[%c0_244, %c200] : memref<8x256xf32, #tpu.memory_space<vmem>>, vector<8x2xf32>
    %c0_245 = arith.constant 0 : index
    %c168 = arith.constant 168 : index
    %169 = vector.load %arg2[%c0_245, %c168] : memref<8x512xf32, #tpu.memory_space<vmem>>, vector<8x2xf32>
    tpu.vector_store %arg2[%c0_245, %c168], %168 {strides = array<i32>} : memref<8x512xf32, #tpu.memory_space<vmem>>, vector<8x2xf32>,
    %c0_246 = arith.constant 0 : index
    %c216 = arith.constant 216 : index
    %170 = vector.load %arg1[%c0_246, %c216] : memref<8x256xf32, #tpu.memory_space<vmem>>, vector<8x2xf32>
    %c0_247 = arith.constant 0 : index
    %c170 = arith.constant 170 : index
    %171 = vector.load %arg2[%c0_247, %c170] : memref<8x512xf32, #tpu.memory_space<vmem>>, vector<8x2xf32>
    tpu.vector_store %arg2[%c0_247, %c170], %170 {strides = array<i32>} : memref<8x512xf32, #tpu.memory_space<vmem>>, vector<8x2xf32>,
    %c0_248 = arith.constant 0 : index
    %c202 = arith.constant 202 : index
    %172 = vector.load %arg1[%c0_248, %c202] : memref<8x256xf32, #tpu.memory_space<vmem>>, vector<8x2xf32>
    %c0_249 = arith.constant 0 : index
    %c172 = arith.constant 172 : index
    %173 = vector.load %arg2[%c0_249, %c172] : memref<8x512xf32, #tpu.memory_space<vmem>>, vector<8x2xf32>
    tpu.vector_store %arg2[%c0_249, %c172], %172 {strides = array<i32>} : memref<8x512xf32, #tpu.memory_space<vmem>>, vector<8x2xf32>,
    %c0_250 = arith.constant 0 : index
    %c218 = arith.constant 218 : index
    %174 = vector.load %arg1[%c0_250, %c218] : memref<8x256xf32, #tpu.memory_space<vmem>>, vector<8x2xf32>
    %c0_251 = arith.constant 0 : index
    %c174 = arith.constant 174 : index
    %175 = vector.load %arg2[%c0_251, %c174] : memref<8x512xf32, #tpu.memory_space<vmem>>, vector<8x2xf32>
    tpu.vector_store %arg2[%c0_251, %c174], %174 {strides = array<i32>} : memref<8x512xf32, #tpu.memory_space<vmem>>, vector<8x2xf32>,
    %c0_252 = arith.constant 0 : index
    %c140_253 = arith.constant 140 : index
    %176 = vector.load %arg1[%c0_252, %c140_253] : memref<8x256xf32, #tpu.memory_space<vmem>>, vector<8x2xf32>
    %c0_254 = arith.constant 0 : index
    %c176 = arith.constant 176 : index
    %177 = vector.load %arg2[%c0_254, %c176] : memref<8x512xf32, #tpu.memory_space<vmem>>, vector<8x2xf32>
    tpu.vector_store %arg2[%c0_254, %c176], %176 {strides = array<i32>} : memref<8x512xf32, #tpu.memory_space<vmem>>, vector<8x2xf32>,
    %c0_255 = arith.constant 0 : index
    %c156_256 = arith.constant 156 : index
    %178 = vector.load %arg1[%c0_255, %c156_256] : memref<8x256xf32, #tpu.memory_space<vmem>>, vector<8x2xf32>
    %c0_257 = arith.constant 0 : index
    %c178 = arith.constant 178 : index
    %179 = vector.load %arg2[%c0_257, %c178] : memref<8x512xf32, #tpu.memory_space<vmem>>, vector<8x2xf32>
    tpu.vector_store %arg2[%c0_257, %c178], %178 {strides = array<i32>} : memref<8x512xf32, #tpu.memory_space<vmem>>, vector<8x2xf32>,
    %c0_258 = arith.constant 0 : index
    %c142_259 = arith.constant 142 : index
    %180 = vector.load %arg1[%c0_258, %c142_259] : memref<8x256xf32, #tpu.memory_space<vmem>>, vector<8x2xf32>
    %c0_260 = arith.constant 0 : index
    %c180 = arith.constant 180 : index
    %181 = vector.load %arg2[%c0_260, %c180] : memref<8x512xf32, #tpu.memory_space<vmem>>, vector<8x2xf32>
    tpu.vector_store %arg2[%c0_260, %c180], %180 {strides = array<i32>} : memref<8x512xf32, #tpu.memory_space<vmem>>, vector<8x2xf32>,
    %c0_261 = arith.constant 0 : index
    %c158_262 = arith.constant 158 : index
    %182 = vector.load %arg1[%c0_261, %c158_262] : memref<8x256xf32, #tpu.memory_space<vmem>>, vector<8x2xf32>
    %c0_263 = arith.constant 0 : index
    %c182 = arith.constant 182 : index
    %183 = vector.load %arg2[%c0_263, %c182] : memref<8x512xf32, #tpu.memory_space<vmem>>, vector<8x2xf32>
    tpu.vector_store %arg2[%c0_263, %c182], %182 {strides = array<i32>} : memref<8x512xf32, #tpu.memory_space<vmem>>, vector<8x2xf32>,
    %c0_264 = arith.constant 0 : index
    %c204 = arith.constant 204 : index
    %184 = vector.load %arg1[%c0_264, %c204] : memref<8x256xf32, #tpu.memory_space<vmem>>, vector<8x2xf32>
    %c0_265 = arith.constant 0 : index
    %c184 = arith.constant 184 : index
    %185 = vector.load %arg2[%c0_265, %c184] : memref<8x512xf32, #tpu.memory_space<vmem>>, vector<8x2xf32>
    tpu.vector_store %arg2[%c0_265, %c184], %184 {strides = array<i32>} : memref<8x512xf32, #tpu.memory_space<vmem>>, vector<8x2xf32>,
    %c0_266 = arith.constant 0 : index
    %c220 = arith.constant 220 : index
    %186 = vector.load %arg1[%c0_266, %c220] : memref<8x256xf32, #tpu.memory_space<vmem>>, vector<8x2xf32>
    %c0_267 = arith.constant 0 : index
    %c186 = arith.constant 186 : index
    %187 = vector.load %arg2[%c0_267, %c186] : memref<8x512xf32, #tpu.memory_space<vmem>>, vector<8x2xf32>
    tpu.vector_store %arg2[%c0_267, %c186], %186 {strides = array<i32>} : memref<8x512xf32, #tpu.memory_space<vmem>>, vector<8x2xf32>,
    %c0_268 = arith.constant 0 : index
    %c206 = arith.constant 206 : index
    %188 = vector.load %arg1[%c0_268, %c206] : memref<8x256xf32, #tpu.memory_space<vmem>>, vector<8x2xf32>
    %c0_269 = arith.constant 0 : index
    %c188 = arith.constant 188 : index
    %189 = vector.load %arg2[%c0_269, %c188] : memref<8x512xf32, #tpu.memory_space<vmem>>, vector<8x2xf32>
    tpu.vector_store %arg2[%c0_269, %c188], %188 {strides = array<i32>} : memref<8x512xf32, #tpu.memory_space<vmem>>, vector<8x2xf32>,
    %c0_270 = arith.constant 0 : index
    %c222 = arith.constant 222 : index
    %190 = vector.load %arg1[%c0_270, %c222] : memref<8x256xf32, #tpu.memory_space<vmem>>, vector<8x2xf32>
    %c0_271 = arith.constant 0 : index
    %c190 = arith.constant 190 : index
    %191 = vector.load %arg2[%c0_271, %c190] : memref<8x512xf32, #tpu.memory_space<vmem>>, vector<8x2xf32>
    tpu.vector_store %arg2[%c0_271, %c190], %190 {strides = array<i32>} : memref<8x512xf32, #tpu.memory_space<vmem>>, vector<8x2xf32>,
    %c0_272 = arith.constant 0 : index
    %c160_273 = arith.constant 160 : index
    %192 = vector.load %arg1[%c0_272, %c160_273] : memref<8x256xf32, #tpu.memory_space<vmem>>, vector<8x2xf32>
    %c0_274 = arith.constant 0 : index
    %c192_275 = arith.constant 192 : index
    %193 = vector.load %arg2[%c0_274, %c192_275] : memref<8x512xf32, #tpu.memory_space<vmem>>, vector<8x2xf32>
    tpu.vector_store %arg2[%c0_274, %c192_275], %192 {strides = array<i32>} : memref<8x512xf32, #tpu.memory_space<vmem>>, vector<8x2xf32>,
    %c0_276 = arith.constant 0 : index
    %c176_277 = arith.constant 176 : index
    %194 = vector.load %arg1[%c0_276, %c176_277] : memref<8x256xf32, #tpu.memory_space<vmem>>, vector<8x2xf32>
    %c0_278 = arith.constant 0 : index
    %c194_279 = arith.constant 194 : index
    %195 = vector.load %arg2[%c0_278, %c194_279] : memref<8x512xf32, #tpu.memory_space<vmem>>, vector<8x2xf32>
    tpu.vector_store %arg2[%c0_278, %c194_279], %194 {strides = array<i32>} : memref<8x512xf32, #tpu.memory_space<vmem>>, vector<8x2xf32>,
    %c0_280 = arith.constant 0 : index
    %c162_281 = arith.constant 162 : index
    %196 = vector.load %arg1[%c0_280, %c162_281] : memref<8x256xf32, #tpu.memory_space<vmem>>, vector<8x2xf32>
    %c0_282 = arith.constant 0 : index
    %c196_283 = arith.constant 196 : index
    %197 = vector.load %arg2[%c0_282, %c196_283] : memref<8x512xf32, #tpu.memory_space<vmem>>, vector<8x2xf32>
    tpu.vector_store %arg2[%c0_282, %c196_283], %196 {strides = array<i32>} : memref<8x512xf32, #tpu.memory_space<vmem>>, vector<8x2xf32>,
    %c0_284 = arith.constant 0 : index
    %c178_285 = arith.constant 178 : index
    %198 = vector.load %arg1[%c0_284, %c178_285] : memref<8x256xf32, #tpu.memory_space<vmem>>, vector<8x2xf32>
    %c0_286 = arith.constant 0 : index
    %c198_287 = arith.constant 198 : index
    %199 = vector.load %arg2[%c0_286, %c198_287] : memref<8x512xf32, #tpu.memory_space<vmem>>, vector<8x2xf32>
    tpu.vector_store %arg2[%c0_286, %c198_287], %198 {strides = array<i32>} : memref<8x512xf32, #tpu.memory_space<vmem>>, vector<8x2xf32>,
    %c0_288 = arith.constant 0 : index
    %c224 = arith.constant 224 : index
    %200 = vector.load %arg1[%c0_288, %c224] : memref<8x256xf32, #tpu.memory_space<vmem>>, vector<8x2xf32>
    %c0_289 = arith.constant 0 : index
    %c200_290 = arith.constant 200 : index
    %201 = vector.load %arg2[%c0_289, %c200_290] : memref<8x512xf32, #tpu.memory_space<vmem>>, vector<8x2xf32>
    tpu.vector_store %arg2[%c0_289, %c200_290], %200 {strides = array<i32>} : memref<8x512xf32, #tpu.memory_space<vmem>>, vector<8x2xf32>,
    %c0_291 = arith.constant 0 : index
    %c240 = arith.constant 240 : index
    %202 = vector.load %arg1[%c0_291, %c240] : memref<8x256xf32, #tpu.memory_space<vmem>>, vector<8x2xf32>
    %c0_292 = arith.constant 0 : index
    %c202_293 = arith.constant 202 : index
    %203 = vector.load %arg2[%c0_292, %c202_293] : memref<8x512xf32, #tpu.memory_space<vmem>>, vector<8x2xf32>
    tpu.vector_store %arg2[%c0_292, %c202_293], %202 {strides = array<i32>} : memref<8x512xf32, #tpu.memory_space<vmem>>, vector<8x2xf32>,
    %c0_294 = arith.constant 0 : index
    %c226 = arith.constant 226 : index
    %204 = vector.load %arg1[%c0_294, %c226] : memref<8x256xf32, #tpu.memory_space<vmem>>, vector<8x2xf32>
    %c0_295 = arith.constant 0 : index
    %c204_296 = arith.constant 204 : index
    %205 = vector.load %arg2[%c0_295, %c204_296] : memref<8x512xf32, #tpu.memory_space<vmem>>, vector<8x2xf32>
    tpu.vector_store %arg2[%c0_295, %c204_296], %204 {strides = array<i32>} : memref<8x512xf32, #tpu.memory_space<vmem>>, vector<8x2xf32>,
    %c0_297 = arith.constant 0 : index
    %c242 = arith.constant 242 : index
    %206 = vector.load %arg1[%c0_297, %c242] : memref<8x256xf32, #tpu.memory_space<vmem>>, vector<8x2xf32>
    %c0_298 = arith.constant 0 : index
    %c206_299 = arith.constant 206 : index
    %207 = vector.load %arg2[%c0_298, %c206_299] : memref<8x512xf32, #tpu.memory_space<vmem>>, vector<8x2xf32>
    tpu.vector_store %arg2[%c0_298, %c206_299], %206 {strides = array<i32>} : memref<8x512xf32, #tpu.memory_space<vmem>>, vector<8x2xf32>,
    %c0_300 = arith.constant 0 : index
    %c164_301 = arith.constant 164 : index
    %208 = vector.load %arg1[%c0_300, %c164_301] : memref<8x256xf32, #tpu.memory_space<vmem>>, vector<8x2xf32>
    %c0_302 = arith.constant 0 : index
    %c208_303 = arith.constant 208 : index
    %209 = vector.load %arg2[%c0_302, %c208_303] : memref<8x512xf32, #tpu.memory_space<vmem>>, vector<8x2xf32>
    tpu.vector_store %arg2[%c0_302, %c208_303], %208 {strides = array<i32>} : memref<8x512xf32, #tpu.memory_space<vmem>>, vector<8x2xf32>,
    %c0_304 = arith.constant 0 : index
    %c180_305 = arith.constant 180 : index
    %210 = vector.load %arg1[%c0_304, %c180_305] : memref<8x256xf32, #tpu.memory_space<vmem>>, vector<8x2xf32>
    %c0_306 = arith.constant 0 : index
    %c210_307 = arith.constant 210 : index
    %211 = vector.load %arg2[%c0_306, %c210_307] : memref<8x512xf32, #tpu.memory_space<vmem>>, vector<8x2xf32>
    tpu.vector_store %arg2[%c0_306, %c210_307], %210 {strides = array<i32>} : memref<8x512xf32, #tpu.memory_space<vmem>>, vector<8x2xf32>,
    %c0_308 = arith.constant 0 : index
    %c166_309 = arith.constant 166 : index
    %212 = vector.load %arg1[%c0_308, %c166_309] : memref<8x256xf32, #tpu.memory_space<vmem>>, vector<8x2xf32>
    %c0_310 = arith.constant 0 : index
    %c212_311 = arith.constant 212 : index
    %213 = vector.load %arg2[%c0_310, %c212_311] : memref<8x512xf32, #tpu.memory_space<vmem>>, vector<8x2xf32>
    tpu.vector_store %arg2[%c0_310, %c212_311], %212 {strides = array<i32>} : memref<8x512xf32, #tpu.memory_space<vmem>>, vector<8x2xf32>,
    %c0_312 = arith.constant 0 : index
    %c182_313 = arith.constant 182 : index
    %214 = vector.load %arg1[%c0_312, %c182_313] : memref<8x256xf32, #tpu.memory_space<vmem>>, vector<8x2xf32>
    %c0_314 = arith.constant 0 : index
    %c214_315 = arith.constant 214 : index
    %215 = vector.load %arg2[%c0_314, %c214_315] : memref<8x512xf32, #tpu.memory_space<vmem>>, vector<8x2xf32>
    tpu.vector_store %arg2[%c0_314, %c214_315], %214 {strides = array<i32>} : memref<8x512xf32, #tpu.memory_space<vmem>>, vector<8x2xf32>,
    %c0_316 = arith.constant 0 : index
    %c228 = arith.constant 228 : index
    %216 = vector.load %arg1[%c0_316, %c228] : memref<8x256xf32, #tpu.memory_space<vmem>>, vector<8x2xf32>
    %c0_317 = arith.constant 0 : index
    %c216_318 = arith.constant 216 : index
    %217 = vector.load %arg2[%c0_317, %c216_318] : memref<8x512xf32, #tpu.memory_space<vmem>>, vector<8x2xf32>
    tpu.vector_store %arg2[%c0_317, %c216_318], %216 {strides = array<i32>} : memref<8x512xf32, #tpu.memory_space<vmem>>, vector<8x2xf32>,
    %c0_319 = arith.constant 0 : index
    %c244 = arith.constant 244 : index
    %218 = vector.load %arg1[%c0_319, %c244] : memref<8x256xf32, #tpu.memory_space<vmem>>, vector<8x2xf32>
    %c0_320 = arith.constant 0 : index
    %c218_321 = arith.constant 218 : index
    %219 = vector.load %arg2[%c0_320, %c218_321] : memref<8x512xf32, #tpu.memory_space<vmem>>, vector<8x2xf32>
    tpu.vector_store %arg2[%c0_320, %c218_321], %218 {strides = array<i32>} : memref<8x512xf32, #tpu.memory_space<vmem>>, vector<8x2xf32>,
    %c0_322 = arith.constant 0 : index
    %c230 = arith.constant 230 : index
    %220 = vector.load %arg1[%c0_322, %c230] : memref<8x256xf32, #tpu.memory_space<vmem>>, vector<8x2xf32>
    %c0_323 = arith.constant 0 : index
    %c220_324 = arith.constant 220 : index
    %221 = vector.load %arg2[%c0_323, %c220_324] : memref<8x512xf32, #tpu.memory_space<vmem>>, vector<8x2xf32>
    tpu.vector_store %arg2[%c0_323, %c220_324], %220 {strides = array<i32>} : memref<8x512xf32, #tpu.memory_space<vmem>>, vector<8x2xf32>,
    %c0_325 = arith.constant 0 : index
    %c246 = arith.constant 246 : index
    %222 = vector.load %arg1[%c0_325, %c246] : memref<8x256xf32, #tpu.memory_space<vmem>>, vector<8x2xf32>
    %c0_326 = arith.constant 0 : index
    %c222_327 = arith.constant 222 : index
    %223 = vector.load %arg2[%c0_326, %c222_327] : memref<8x512xf32, #tpu.memory_space<vmem>>, vector<8x2xf32>
    tpu.vector_store %arg2[%c0_326, %c222_327], %222 {strides = array<i32>} : memref<8x512xf32, #tpu.memory_space<vmem>>, vector<8x2xf32>,
    %c0_328 = arith.constant 0 : index
    %c168_329 = arith.constant 168 : index
    %224 = vector.load %arg1[%c0_328, %c168_329] : memref<8x256xf32, #tpu.memory_space<vmem>>, vector<8x2xf32>
    %c0_330 = arith.constant 0 : index
    %c224_331 = arith.constant 224 : index
    %225 = vector.load %arg2[%c0_330, %c224_331] : memref<8x512xf32, #tpu.memory_space<vmem>>, vector<8x2xf32>
    tpu.vector_store %arg2[%c0_330, %c224_331], %224 {strides = array<i32>} : memref<8x512xf32, #tpu.memory_space<vmem>>, vector<8x2xf32>,
    %c0_332 = arith.constant 0 : index
    %c184_333 = arith.constant 184 : index
    %226 = vector.load %arg1[%c0_332, %c184_333] : memref<8x256xf32, #tpu.memory_space<vmem>>, vector<8x2xf32>
    %c0_334 = arith.constant 0 : index
    %c226_335 = arith.constant 226 : index
    %227 = vector.load %arg2[%c0_334, %c226_335] : memref<8x512xf32, #tpu.memory_space<vmem>>, vector<8x2xf32>
    tpu.vector_store %arg2[%c0_334, %c226_335], %226 {strides = array<i32>} : memref<8x512xf32, #tpu.memory_space<vmem>>, vector<8x2xf32>,
    %c0_336 = arith.constant 0 : index
    %c170_337 = arith.constant 170 : index
    %228 = vector.load %arg1[%c0_336, %c170_337] : memref<8x256xf32, #tpu.memory_space<vmem>>, vector<8x2xf32>
    %c0_338 = arith.constant 0 : index
    %c228_339 = arith.constant 228 : index
    %229 = vector.load %arg2[%c0_338, %c228_339] : memref<8x512xf32, #tpu.memory_space<vmem>>, vector<8x2xf32>
    tpu.vector_store %arg2[%c0_338, %c228_339], %228 {strides = array<i32>} : memref<8x512xf32, #tpu.memory_space<vmem>>, vector<8x2xf32>,
    %c0_340 = arith.constant 0 : index
    %c186_341 = arith.constant 186 : index
    %230 = vector.load %arg1[%c0_340, %c186_341] : memref<8x256xf32, #tpu.memory_space<vmem>>, vector<8x2xf32>
    %c0_342 = arith.constant 0 : index
    %c230_343 = arith.constant 230 : index
    %231 = vector.load %arg2[%c0_342, %c230_343] : memref<8x512xf32, #tpu.memory_space<vmem>>, vector<8x2xf32>
    tpu.vector_store %arg2[%c0_342, %c230_343], %230 {strides = array<i32>} : memref<8x512xf32, #tpu.memory_space<vmem>>, vector<8x2xf32>,
    %c0_344 = arith.constant 0 : index
    %c232 = arith.constant 232 : index
    %232 = vector.load %arg1[%c0_344, %c232] : memref<8x256xf32, #tpu.memory_space<vmem>>, vector<8x2xf32>
    %c0_345 = arith.constant 0 : index
    %c232_346 = arith.constant 232 : index
    %233 = vector.load %arg2[%c0_345, %c232_346] : memref<8x512xf32, #tpu.memory_space<vmem>>, vector<8x2xf32>
    tpu.vector_store %arg2[%c0_345, %c232_346], %232 {strides = array<i32>} : memref<8x512xf32, #tpu.memory_space<vmem>>, vector<8x2xf32>,
    %c0_347 = arith.constant 0 : index
    %c248 = arith.constant 248 : index
    %234 = vector.load %arg1[%c0_347, %c248] : memref<8x256xf32, #tpu.memory_space<vmem>>, vector<8x2xf32>
    %c0_348 = arith.constant 0 : index
    %c234 = arith.constant 234 : index
    %235 = vector.load %arg2[%c0_348, %c234] : memref<8x512xf32, #tpu.memory_space<vmem>>, vector<8x2xf32>
    tpu.vector_store %arg2[%c0_348, %c234], %234 {strides = array<i32>} : memref<8x512xf32, #tpu.memory_space<vmem>>, vector<8x2xf32>,
    %c0_349 = arith.constant 0 : index
    %c234_350 = arith.constant 234 : index
    %236 = vector.load %arg1[%c0_349, %c234_350] : memref<8x256xf32, #tpu.memory_space<vmem>>, vector<8x2xf32>
    %c0_351 = arith.constant 0 : index
    %c236 = arith.constant 236 : index
    %237 = vector.load %arg2[%c0_351, %c236] : memref<8x512xf32, #tpu.memory_space<vmem>>, vector<8x2xf32>
    tpu.vector_store %arg2[%c0_351, %c236], %236 {strides = array<i32>} : memref<8x512xf32, #tpu.memory_space<vmem>>, vector<8x2xf32>,
    %c0_352 = arith.constant 0 : index
    %c250 = arith.constant 250 : index
    %238 = vector.load %arg1[%c0_352, %c250] : memref<8x256xf32, #tpu.memory_space<vmem>>, vector<8x2xf32>
    %c0_353 = arith.constant 0 : index
    %c238 = arith.constant 238 : index
    %239 = vector.load %arg2[%c0_353, %c238] : memref<8x512xf32, #tpu.memory_space<vmem>>, vector<8x2xf32>
    tpu.vector_store %arg2[%c0_353, %c238], %238 {strides = array<i32>} : memref<8x512xf32, #tpu.memory_space<vmem>>, vector<8x2xf32>,
    %c0_354 = arith.constant 0 : index
    %c172_355 = arith.constant 172 : index
    %240 = vector.load %arg1[%c0_354, %c172_355] : memref<8x256xf32, #tpu.memory_space<vmem>>, vector<8x2xf32>
    %c0_356 = arith.constant 0 : index
    %c240_357 = arith.constant 240 : index
    %241 = vector.load %arg2[%c0_356, %c240_357] : memref<8x512xf32, #tpu.memory_space<vmem>>, vector<8x2xf32>
    tpu.vector_store %arg2[%c0_356, %c240_357], %240 {strides = array<i32>} : memref<8x512xf32, #tpu.memory_space<vmem>>, vector<8x2xf32>,
    %c0_358 = arith.constant 0 : index
    %c188_359 = arith.constant 188 : index
    %242 = vector.load %arg1[%c0_358, %c188_359] : memref<8x256xf32, #tpu.memory_space<vmem>>, vector<8x2xf32>
    %c0_360 = arith.constant 0 : index
    %c242_361 = arith.constant 242 : index
    %243 = vector.load %arg2[%c0_360, %c242_361] : memref<8x512xf32, #tpu.memory_space<vmem>>, vector<8x2xf32>
    tpu.vector_store %arg2[%c0_360, %c242_361], %242 {strides = array<i32>} : memref<8x512xf32, #tpu.memory_space<vmem>>, vector<8x2xf32>,
    %c0_362 = arith.constant 0 : index
    %c174_363 = arith.constant 174 : index
    %244 = vector.load %arg1[%c0_362, %c174_363] : memref<8x256xf32, #tpu.memory_space<vmem>>, vector<8x2xf32>
    %c0_364 = arith.constant 0 : index
    %c244_365 = arith.constant 244 : index
    %245 = vector.load %arg2[%c0_364, %c244_365] : memref<8x512xf32, #tpu.memory_space<vmem>>, vector<8x2xf32>
    tpu.vector_store %arg2[%c0_364, %c244_365], %244 {strides = array<i32>} : memref<8x512xf32, #tpu.memory_space<vmem>>, vector<8x2xf32>,
    %c0_366 = arith.constant 0 : index
    %c190_367 = arith.constant 190 : index
    %246 = vector.load %arg1[%c0_366, %c190_367] : memref<8x256xf32, #tpu.memory_space<vmem>>, vector<8x2xf32>
    %c0_368 = arith.constant 0 : index
    %c246_369 = arith.constant 246 : index
    %247 = vector.load %arg2[%c0_368, %c246_369] : memref<8x512xf32, #tpu.memory_space<vmem>>, vector<8x2xf32>
    tpu.vector_store %arg2[%c0_368, %c246_369], %246 {strides = array<i32>} : memref<8x512xf32, #tpu.memory_space<vmem>>, vector<8x2xf32>,
    %c0_370 = arith.constant 0 : index
    %c236_371 = arith.constant 236 : index
    %248 = vector.load %arg1[%c0_370, %c236_371] : memref<8x256xf32, #tpu.memory_space<vmem>>, vector<8x2xf32>
    %c0_372 = arith.constant 0 : index
    %c248_373 = arith.constant 248 : index
    %249 = vector.load %arg2[%c0_372, %c248_373] : memref<8x512xf32, #tpu.memory_space<vmem>>, vector<8x2xf32>
    tpu.vector_store %arg2[%c0_372, %c248_373], %248 {strides = array<i32>} : memref<8x512xf32, #tpu.memory_space<vmem>>, vector<8x2xf32>,
    %c0_374 = arith.constant 0 : index
    %c252 = arith.constant 252 : index
    %250 = vector.load %arg1[%c0_374, %c252] : memref<8x256xf32, #tpu.memory_space<vmem>>, vector<8x2xf32>
    %c0_375 = arith.constant 0 : index
    %c250_376 = arith.constant 250 : index
    %251 = vector.load %arg2[%c0_375, %c250_376] : memref<8x512xf32, #tpu.memory_space<vmem>>, vector<8x2xf32>
    tpu.vector_store %arg2[%c0_375, %c250_376], %250 {strides = array<i32>} : memref<8x512xf32, #tpu.memory_space<vmem>>, vector<8x2xf32>,
    %c0_377 = arith.constant 0 : index
    %c238_378 = arith.constant 238 : index
    %252 = vector.load %arg1[%c0_377, %c238_378] : memref<8x256xf32, #tpu.memory_space<vmem>>, vector<8x2xf32>
    %c0_379 = arith.constant 0 : index
    %c252_380 = arith.constant 252 : index
    %253 = vector.load %arg2[%c0_379, %c252_380] : memref<8x512xf32, #tpu.memory_space<vmem>>, vector<8x2xf32>
    tpu.vector_store %arg2[%c0_379, %c252_380], %252 {strides = array<i32>} : memref<8x512xf32, #tpu.memory_space<vmem>>, vector<8x2xf32>,
    %c0_381 = arith.constant 0 : index
    %c254 = arith.constant 254 : index
    %254 = vector.load %arg1[%c0_381, %c254] : memref<8x256xf32, #tpu.memory_space<vmem>>, vector<8x2xf32>
    %c0_382 = arith.constant 0 : index
    %c254_383 = arith.constant 254 : index
    %255 = vector.load %arg2[%c0_382, %c254_383] : memref<8x512xf32, #tpu.memory_space<vmem>>, vector<8x2xf32>
    tpu.vector_store %arg2[%c0_382, %c254_383], %254 {strides = array<i32>} : memref<8x512xf32, #tpu.memory_space<vmem>>, vector<8x2xf32>,
    %c0_384 = arith.constant 0 : index
    %c0_385 = arith.constant 0 : index
    %256 = vector.load %arg1[%c0_384, %c0_385] : memref<8x256xf32, #tpu.memory_space<vmem>>, vector<8x2xf32>
    %c0_386 = arith.constant 0 : index
    %c256 = arith.constant 256 : index
    %257 = vector.load %arg2[%c0_386, %c256] : memref<8x512xf32, #tpu.memory_space<vmem>>, vector<8x2xf32>
    tpu.vector_store %arg2[%c0_386, %c256], %256 {strides = array<i32>} : memref<8x512xf32, #tpu.memory_space<vmem>>, vector<8x2xf32>,
    %c0_387 = arith.constant 0 : index
    %c32_388 = arith.constant 32 : index
    %258 = vector.load %arg1[%c0_387, %c32_388] : memref<8x256xf32, #tpu.memory_space<vmem>>, vector<8x2xf32>
    %c0_389 = arith.constant 0 : index
    %c258 = arith.constant 258 : index
    %259 = vector.load %arg2[%c0_389, %c258] : memref<8x512xf32, #tpu.memory_space<vmem>>, vector<8x2xf32>
    tpu.vector_store %arg2[%c0_389, %c258], %258 {strides = array<i32>} : memref<8x512xf32, #tpu.memory_space<vmem>>, vector<8x2xf32>,
    %c0_390 = arith.constant 0 : index
    %c2_391 = arith.constant 2 : index
    %260 = vector.load %arg1[%c0_390, %c2_391] : memref<8x256xf32, #tpu.memory_space<vmem>>, vector<8x2xf32>
    %c0_392 = arith.constant 0 : index
    %c260 = arith.constant 260 : index
    %261 = vector.load %arg2[%c0_392, %c260] : memref<8x512xf32, #tpu.memory_space<vmem>>, vector<8x2xf32>
    tpu.vector_store %arg2[%c0_392, %c260], %260 {strides = array<i32>} : memref<8x512xf32, #tpu.memory_space<vmem>>, vector<8x2xf32>,
    %c0_393 = arith.constant 0 : index
    %c34_394 = arith.constant 34 : index
    %262 = vector.load %arg1[%c0_393, %c34_394] : memref<8x256xf32, #tpu.memory_space<vmem>>, vector<8x2xf32>
    %c0_395 = arith.constant 0 : index
    %c262 = arith.constant 262 : index
    %263 = vector.load %arg2[%c0_395, %c262] : memref<8x512xf32, #tpu.memory_space<vmem>>, vector<8x2xf32>
    tpu.vector_store %arg2[%c0_395, %c262], %262 {strides = array<i32>} : memref<8x512xf32, #tpu.memory_space<vmem>>, vector<8x2xf32>,
    %c0_396 = arith.constant 0 : index
    %c128_397 = arith.constant 128 : index
    %264 = vector.load %arg1[%c0_396, %c128_397] : memref<8x256xf32, #tpu.memory_space<vmem>>, vector<8x2xf32>
    %c0_398 = arith.constant 0 : index
    %c264 = arith.constant 264 : index
    %265 = vector.load %arg2[%c0_398, %c264] : memref<8x512xf32, #tpu.memory_space<vmem>>, vector<8x2xf32>
    tpu.vector_store %arg2[%c0_398, %c264], %264 {strides = array<i32>} : memref<8x512xf32, #tpu.memory_space<vmem>>, vector<8x2xf32>,
    %c0_399 = arith.constant 0 : index
    %c160_400 = arith.constant 160 : index
    %266 = vector.load %arg1[%c0_399, %c160_400] : memref<8x256xf32, #tpu.memory_space<vmem>>, vector<8x2xf32>
    %c0_401 = arith.constant 0 : index
    %c266 = arith.constant 266 : index
    %267 = vector.load %arg2[%c0_401, %c266] : memref<8x512xf32, #tpu.memory_space<vmem>>, vector<8x2xf32>
    tpu.vector_store %arg2[%c0_401, %c266], %266 {strides = array<i32>} : memref<8x512xf32, #tpu.memory_space<vmem>>, vector<8x2xf32>,
    %c0_402 = arith.constant 0 : index
    %c130_403 = arith.constant 130 : index
    %268 = vector.load %arg1[%c0_402, %c130_403] : memref<8x256xf32, #tpu.memory_space<vmem>>, vector<8x2xf32>
    %c0_404 = arith.constant 0 : index
    %c268 = arith.constant 268 : index
    %269 = vector.load %arg2[%c0_404, %c268] : memref<8x512xf32, #tpu.memory_space<vmem>>, vector<8x2xf32>
    tpu.vector_store %arg2[%c0_404, %c268], %268 {strides = array<i32>} : memref<8x512xf32, #tpu.memory_space<vmem>>, vector<8x2xf32>,
    %c0_405 = arith.constant 0 : index
    %c162_406 = arith.constant 162 : index
    %270 = vector.load %arg1[%c0_405, %c162_406] : memref<8x256xf32, #tpu.memory_space<vmem>>, vector<8x2xf32>
    %c0_407 = arith.constant 0 : index
    %c270 = arith.constant 270 : index
    %271 = vector.load %arg2[%c0_407, %c270] : memref<8x512xf32, #tpu.memory_space<vmem>>, vector<8x2xf32>
    tpu.vector_store %arg2[%c0_407, %c270], %270 {strides = array<i32>} : memref<8x512xf32, #tpu.memory_space<vmem>>, vector<8x2xf32>,
    %c0_408 = arith.constant 0 : index
    %c4_409 = arith.constant 4 : index
    %272 = vector.load %arg1[%c0_408, %c4_409] : memref<8x256xf32, #tpu.memory_space<vmem>>, vector<8x2xf32>
    %c0_410 = arith.constant 0 : index
    %c272 = arith.constant 272 : index
    %273 = vector.load %arg2[%c0_410, %c272] : memref<8x512xf32, #tpu.memory_space<vmem>>, vector<8x2xf32>
    tpu.vector_store %arg2[%c0_410, %c272], %272 {strides = array<i32>} : memref<8x512xf32, #tpu.memory_space<vmem>>, vector<8x2xf32>,
    %c0_411 = arith.constant 0 : index
    %c36_412 = arith.constant 36 : index
    %274 = vector.load %arg1[%c0_411, %c36_412] : memref<8x256xf32, #tpu.memory_space<vmem>>, vector<8x2xf32>
    %c0_413 = arith.constant 0 : index
    %c274 = arith.constant 274 : index
    %275 = vector.load %arg2[%c0_413, %c274] : memref<8x512xf32, #tpu.memory_space<vmem>>, vector<8x2xf32>
    tpu.vector_store %arg2[%c0_413, %c274], %274 {strides = array<i32>} : memref<8x512xf32, #tpu.memory_space<vmem>>, vector<8x2xf32>,
    %c0_414 = arith.constant 0 : index
    %c6_415 = arith.constant 6 : index
    %276 = vector.load %arg1[%c0_414, %c6_415] : memref<8x256xf32, #tpu.memory_space<vmem>>, vector<8x2xf32>
    %c0_416 = arith.constant 0 : index
    %c276 = arith.constant 276 : index
    %277 = vector.load %arg2[%c0_416, %c276] : memref<8x512xf32, #tpu.memory_space<vmem>>, vector<8x2xf32>
    tpu.vector_store %arg2[%c0_416, %c276], %276 {strides = array<i32>} : memref<8x512xf32, #tpu.memory_space<vmem>>, vector<8x2xf32>,
    %c0_417 = arith.constant 0 : index
    %c38_418 = arith.constant 38 : index
    %278 = vector.load %arg1[%c0_417, %c38_418] : memref<8x256xf32, #tpu.memory_space<vmem>>, vector<8x2xf32>
    %c0_419 = arith.constant 0 : index
    %c278 = arith.constant 278 : index
    %279 = vector.load %arg2[%c0_419, %c278] : memref<8x512xf32, #tpu.memory_space<vmem>>, vector<8x2xf32>
    tpu.vector_store %arg2[%c0_419, %c278], %278 {strides = array<i32>} : memref<8x512xf32, #tpu.memory_space<vmem>>, vector<8x2xf32>,
    %c0_420 = arith.constant 0 : index
    %c132_421 = arith.constant 132 : index
    %280 = vector.load %arg1[%c0_420, %c132_421] : memref<8x256xf32, #tpu.memory_space<vmem>>, vector<8x2xf32>
    %c0_422 = arith.constant 0 : index
    %c280 = arith.constant 280 : index
    %281 = vector.load %arg2[%c0_422, %c280] : memref<8x512xf32, #tpu.memory_space<vmem>>, vector<8x2xf32>
    tpu.vector_store %arg2[%c0_422, %c280], %280 {strides = array<i32>} : memref<8x512xf32, #tpu.memory_space<vmem>>, vector<8x2xf32>,
    %c0_423 = arith.constant 0 : index
    %c164_424 = arith.constant 164 : index
    %282 = vector.load %arg1[%c0_423, %c164_424] : memref<8x256xf32, #tpu.memory_space<vmem>>, vector<8x2xf32>
    %c0_425 = arith.constant 0 : index
    %c282 = arith.constant 282 : index
    %283 = vector.load %arg2[%c0_425, %c282] : memref<8x512xf32, #tpu.memory_space<vmem>>, vector<8x2xf32>
    tpu.vector_store %arg2[%c0_425, %c282], %282 {strides = array<i32>} : memref<8x512xf32, #tpu.memory_space<vmem>>, vector<8x2xf32>,
    %c0_426 = arith.constant 0 : index
    %c134_427 = arith.constant 134 : index
    %284 = vector.load %arg1[%c0_426, %c134_427] : memref<8x256xf32, #tpu.memory_space<vmem>>, vector<8x2xf32>
    %c0_428 = arith.constant 0 : index
    %c284 = arith.constant 284 : index
    %285 = vector.load %arg2[%c0_428, %c284] : memref<8x512xf32, #tpu.memory_space<vmem>>, vector<8x2xf32>
    tpu.vector_store %arg2[%c0_428, %c284], %284 {strides = array<i32>} : memref<8x512xf32, #tpu.memory_space<vmem>>, vector<8x2xf32>,
    %c0_429 = arith.constant 0 : index
    %c166_430 = arith.constant 166 : index
    %286 = vector.load %arg1[%c0_429, %c166_430] : memref<8x256xf32, #tpu.memory_space<vmem>>, vector<8x2xf32>
    %c0_431 = arith.constant 0 : index
    %c286 = arith.constant 286 : index
    %287 = vector.load %arg2[%c0_431, %c286] : memref<8x512xf32, #tpu.memory_space<vmem>>, vector<8x2xf32>
    tpu.vector_store %arg2[%c0_431, %c286], %286 {strides = array<i32>} : memref<8x512xf32, #tpu.memory_space<vmem>>, vector<8x2xf32>,
    %c0_432 = arith.constant 0 : index
    %c8_433 = arith.constant 8 : index
    %288 = vector.load %arg1[%c0_432, %c8_433] : memref<8x256xf32, #tpu.memory_space<vmem>>, vector<8x2xf32>
    %c0_434 = arith.constant 0 : index
    %c288 = arith.constant 288 : index
    %289 = vector.load %arg2[%c0_434, %c288] : memref<8x512xf32, #tpu.memory_space<vmem>>, vector<8x2xf32>
    tpu.vector_store %arg2[%c0_434, %c288], %288 {strides = array<i32>} : memref<8x512xf32, #tpu.memory_space<vmem>>, vector<8x2xf32>,
    %c0_435 = arith.constant 0 : index
    %c40_436 = arith.constant 40 : index
    %290 = vector.load %arg1[%c0_435, %c40_436] : memref<8x256xf32, #tpu.memory_space<vmem>>, vector<8x2xf32>
    %c0_437 = arith.constant 0 : index
    %c290 = arith.constant 290 : index
    %291 = vector.load %arg2[%c0_437, %c290] : memref<8x512xf32, #tpu.memory_space<vmem>>, vector<8x2xf32>
    tpu.vector_store %arg2[%c0_437, %c290], %290 {strides = array<i32>} : memref<8x512xf32, #tpu.memory_space<vmem>>, vector<8x2xf32>,
    %c0_438 = arith.constant 0 : index
    %c10_439 = arith.constant 10 : index
    %292 = vector.load %arg1[%c0_438, %c10_439] : memref<8x256xf32, #tpu.memory_space<vmem>>, vector<8x2xf32>
    %c0_440 = arith.constant 0 : index
    %c292 = arith.constant 292 : index
    %293 = vector.load %arg2[%c0_440, %c292] : memref<8x512xf32, #tpu.memory_space<vmem>>, vector<8x2xf32>
    tpu.vector_store %arg2[%c0_440, %c292], %292 {strides = array<i32>} : memref<8x512xf32, #tpu.memory_space<vmem>>, vector<8x2xf32>,
    %c0_441 = arith.constant 0 : index
    %c42_442 = arith.constant 42 : index
    %294 = vector.load %arg1[%c0_441, %c42_442] : memref<8x256xf32, #tpu.memory_space<vmem>>, vector<8x2xf32>
    %c0_443 = arith.constant 0 : index
    %c294 = arith.constant 294 : index
    %295 = vector.load %arg2[%c0_443, %c294] : memref<8x512xf32, #tpu.memory_space<vmem>>, vector<8x2xf32>
    tpu.vector_store %arg2[%c0_443, %c294], %294 {strides = array<i32>} : memref<8x512xf32, #tpu.memory_space<vmem>>, vector<8x2xf32>,
    %c0_444 = arith.constant 0 : index
    %c136_445 = arith.constant 136 : index
    %296 = vector.load %arg1[%c0_444, %c136_445] : memref<8x256xf32, #tpu.memory_space<vmem>>, vector<8x2xf32>
    %c0_446 = arith.constant 0 : index
    %c296 = arith.constant 296 : index
    %297 = vector.load %arg2[%c0_446, %c296] : memref<8x512xf32, #tpu.memory_space<vmem>>, vector<8x2xf32>
    tpu.vector_store %arg2[%c0_446, %c296], %296 {strides = array<i32>} : memref<8x512xf32, #tpu.memory_space<vmem>>, vector<8x2xf32>,
    %c0_447 = arith.constant 0 : index
    %c168_448 = arith.constant 168 : index
    %298 = vector.load %arg1[%c0_447, %c168_448] : memref<8x256xf32, #tpu.memory_space<vmem>>, vector<8x2xf32>
    %c0_449 = arith.constant 0 : index
    %c298 = arith.constant 298 : index
    %299 = vector.load %arg2[%c0_449, %c298] : memref<8x512xf32, #tpu.memory_space<vmem>>, vector<8x2xf32>
    tpu.vector_store %arg2[%c0_449, %c298], %298 {strides = array<i32>} : memref<8x512xf32, #tpu.memory_space<vmem>>, vector<8x2xf32>,
    %c0_450 = arith.constant 0 : index
    %c138_451 = arith.constant 138 : index
    %300 = vector.load %arg1[%c0_450, %c138_451] : memref<8x256xf32, #tpu.memory_space<vmem>>, vector<8x2xf32>
    %c0_452 = arith.constant 0 : index
    %c300 = arith.constant 300 : index
    %301 = vector.load %arg2[%c0_452, %c300] : memref<8x512xf32, #tpu.memory_space<vmem>>, vector<8x2xf32>
    tpu.vector_store %arg2[%c0_452, %c300], %300 {strides = array<i32>} : memref<8x512xf32, #tpu.memory_space<vmem>>, vector<8x2xf32>,
    %c0_453 = arith.constant 0 : index
    %c170_454 = arith.constant 170 : index
    %302 = vector.load %arg1[%c0_453, %c170_454] : memref<8x256xf32, #tpu.memory_space<vmem>>, vector<8x2xf32>
    %c0_455 = arith.constant 0 : index
    %c302 = arith.constant 302 : index
    %303 = vector.load %arg2[%c0_455, %c302] : memref<8x512xf32, #tpu.memory_space<vmem>>, vector<8x2xf32>
    tpu.vector_store %arg2[%c0_455, %c302], %302 {strides = array<i32>} : memref<8x512xf32, #tpu.memory_space<vmem>>, vector<8x2xf32>,
    %c0_456 = arith.constant 0 : index
    %c12_457 = arith.constant 12 : index
    %304 = vector.load %arg1[%c0_456, %c12_457] : memref<8x256xf32, #tpu.memory_space<vmem>>, vector<8x2xf32>
    %c0_458 = arith.constant 0 : index
    %c304 = arith.constant 304 : index
    %305 = vector.load %arg2[%c0_458, %c304] : memref<8x512xf32, #tpu.memory_space<vmem>>, vector<8x2xf32>
    tpu.vector_store %arg2[%c0_458, %c304], %304 {strides = array<i32>} : memref<8x512xf32, #tpu.memory_space<vmem>>, vector<8x2xf32>,
    %c0_459 = arith.constant 0 : index
    %c44_460 = arith.constant 44 : index
    %306 = vector.load %arg1[%c0_459, %c44_460] : memref<8x256xf32, #tpu.memory_space<vmem>>, vector<8x2xf32>
    %c0_461 = arith.constant 0 : index
    %c306 = arith.constant 306 : index
    %307 = vector.load %arg2[%c0_461, %c306] : memref<8x512xf32, #tpu.memory_space<vmem>>, vector<8x2xf32>
    tpu.vector_store %arg2[%c0_461, %c306], %306 {strides = array<i32>} : memref<8x512xf32, #tpu.memory_space<vmem>>, vector<8x2xf32>,
    %c0_462 = arith.constant 0 : index
    %c14_463 = arith.constant 14 : index
    %308 = vector.load %arg1[%c0_462, %c14_463] : memref<8x256xf32, #tpu.memory_space<vmem>>, vector<8x2xf32>
    %c0_464 = arith.constant 0 : index
    %c308 = arith.constant 308 : index
    %309 = vector.load %arg2[%c0_464, %c308] : memref<8x512xf32, #tpu.memory_space<vmem>>, vector<8x2xf32>
    tpu.vector_store %arg2[%c0_464, %c308], %308 {strides = array<i32>} : memref<8x512xf32, #tpu.memory_space<vmem>>, vector<8x2xf32>,
    %c0_465 = arith.constant 0 : index
    %c46_466 = arith.constant 46 : index
    %310 = vector.load %arg1[%c0_465, %c46_466] : memref<8x256xf32, #tpu.memory_space<vmem>>, vector<8x2xf32>
    %c0_467 = arith.constant 0 : index
    %c310 = arith.constant 310 : index
    %311 = vector.load %arg2[%c0_467, %c310] : memref<8x512xf32, #tpu.memory_space<vmem>>, vector<8x2xf32>
    tpu.vector_store %arg2[%c0_467, %c310], %310 {strides = array<i32>} : memref<8x512xf32, #tpu.memory_space<vmem>>, vector<8x2xf32>,
    %c0_468 = arith.constant 0 : index
    %c140_469 = arith.constant 140 : index
    %312 = vector.load %arg1[%c0_468, %c140_469] : memref<8x256xf32, #tpu.memory_space<vmem>>, vector<8x2xf32>
    %c0_470 = arith.constant 0 : index
    %c312 = arith.constant 312 : index
    %313 = vector.load %arg2[%c0_470, %c312] : memref<8x512xf32, #tpu.memory_space<vmem>>, vector<8x2xf32>
    tpu.vector_store %arg2[%c0_470, %c312], %312 {strides = array<i32>} : memref<8x512xf32, #tpu.memory_space<vmem>>, vector<8x2xf32>,
    %c0_471 = arith.constant 0 : index
    %c172_472 = arith.constant 172 : index
    %314 = vector.load %arg1[%c0_471, %c172_472] : memref<8x256xf32, #tpu.memory_space<vmem>>, vector<8x2xf32>
    %c0_473 = arith.constant 0 : index
    %c314 = arith.constant 314 : index
    %315 = vector.load %arg2[%c0_473, %c314] : memref<8x512xf32, #tpu.memory_space<vmem>>, vector<8x2xf32>
    tpu.vector_store %arg2[%c0_473, %c314], %314 {strides = array<i32>} : memref<8x512xf32, #tpu.memory_space<vmem>>, vector<8x2xf32>,
    %c0_474 = arith.constant 0 : index
    %c142_475 = arith.constant 142 : index
    %316 = vector.load %arg1[%c0_474, %c142_475] : memref<8x256xf32, #tpu.memory_space<vmem>>, vector<8x2xf32>
    %c0_476 = arith.constant 0 : index
    %c316 = arith.constant 316 : index
    %317 = vector.load %arg2[%c0_476, %c316] : memref<8x512xf32, #tpu.memory_space<vmem>>, vector<8x2xf32>
    tpu.vector_store %arg2[%c0_476, %c316], %316 {strides = array<i32>} : memref<8x512xf32, #tpu.memory_space<vmem>>, vector<8x2xf32>,
    %c0_477 = arith.constant 0 : index
    %c174_478 = arith.constant 174 : index
    %318 = vector.load %arg1[%c0_477, %c174_478] : memref<8x256xf32, #tpu.memory_space<vmem>>, vector<8x2xf32>
    %c0_479 = arith.constant 0 : index
    %c318 = arith.constant 318 : index
    %319 = vector.load %arg2[%c0_479, %c318] : memref<8x512xf32, #tpu.memory_space<vmem>>, vector<8x2xf32>
    tpu.vector_store %arg2[%c0_479, %c318], %318 {strides = array<i32>} : memref<8x512xf32, #tpu.memory_space<vmem>>, vector<8x2xf32>,
    %c0_480 = arith.constant 0 : index
    %c16_481 = arith.constant 16 : index
    %320 = vector.load %arg1[%c0_480, %c16_481] : memref<8x256xf32, #tpu.memory_space<vmem>>, vector<8x2xf32>
    %c0_482 = arith.constant 0 : index
    %c320 = arith.constant 320 : index
    %321 = vector.load %arg2[%c0_482, %c320] : memref<8x512xf32, #tpu.memory_space<vmem>>, vector<8x2xf32>
    tpu.vector_store %arg2[%c0_482, %c320], %320 {strides = array<i32>} : memref<8x512xf32, #tpu.memory_space<vmem>>, vector<8x2xf32>,
    %c0_483 = arith.constant 0 : index
    %c48_484 = arith.constant 48 : index
    %322 = vector.load %arg1[%c0_483, %c48_484] : memref<8x256xf32, #tpu.memory_space<vmem>>, vector<8x2xf32>
    %c0_485 = arith.constant 0 : index
    %c322 = arith.constant 322 : index
    %323 = vector.load %arg2[%c0_485, %c322] : memref<8x512xf32, #tpu.memory_space<vmem>>, vector<8x2xf32>
    tpu.vector_store %arg2[%c0_485, %c322], %322 {strides = array<i32>} : memref<8x512xf32, #tpu.memory_space<vmem>>, vector<8x2xf32>,
    %c0_486 = arith.constant 0 : index
    %c18_487 = arith.constant 18 : index
    %324 = vector.load %arg1[%c0_486, %c18_487] : memref<8x256xf32, #tpu.memory_space<vmem>>, vector<8x2xf32>
    %c0_488 = arith.constant 0 : index
    %c324 = arith.constant 324 : index
    %325 = vector.load %arg2[%c0_488, %c324] : memref<8x512xf32, #tpu.memory_space<vmem>>, vector<8x2xf32>
    tpu.vector_store %arg2[%c0_488, %c324], %324 {strides = array<i32>} : memref<8x512xf32, #tpu.memory_space<vmem>>, vector<8x2xf32>,
    %c0_489 = arith.constant 0 : index
    %c50_490 = arith.constant 50 : index
    %326 = vector.load %arg1[%c0_489, %c50_490] : memref<8x256xf32, #tpu.memory_space<vmem>>, vector<8x2xf32>
    %c0_491 = arith.constant 0 : index
    %c326 = arith.constant 326 : index
    %327 = vector.load %arg2[%c0_491, %c326] : memref<8x512xf32, #tpu.memory_space<vmem>>, vector<8x2xf32>
    tpu.vector_store %arg2[%c0_491, %c326], %326 {strides = array<i32>} : memref<8x512xf32, #tpu.memory_space<vmem>>, vector<8x2xf32>,
    %c0_492 = arith.constant 0 : index
    %c144_493 = arith.constant 144 : index
    %328 = vector.load %arg1[%c0_492, %c144_493] : memref<8x256xf32, #tpu.memory_space<vmem>>, vector<8x2xf32>
    %c0_494 = arith.constant 0 : index
    %c328 = arith.constant 328 : index
    %329 = vector.load %arg2[%c0_494, %c328] : memref<8x512xf32, #tpu.memory_space<vmem>>, vector<8x2xf32>
    tpu.vector_store %arg2[%c0_494, %c328], %328 {strides = array<i32>} : memref<8x512xf32, #tpu.memory_space<vmem>>, vector<8x2xf32>,
    %c0_495 = arith.constant 0 : index
    %c176_496 = arith.constant 176 : index
    %330 = vector.load %arg1[%c0_495, %c176_496] : memref<8x256xf32, #tpu.memory_space<vmem>>, vector<8x2xf32>
    %c0_497 = arith.constant 0 : index
    %c330 = arith.constant 330 : index
    %331 = vector.load %arg2[%c0_497, %c330] : memref<8x512xf32, #tpu.memory_space<vmem>>, vector<8x2xf32>
    tpu.vector_store %arg2[%c0_497, %c330], %330 {strides = array<i32>} : memref<8x512xf32, #tpu.memory_space<vmem>>, vector<8x2xf32>,
    %c0_498 = arith.constant 0 : index
    %c146_499 = arith.constant 146 : index
    %332 = vector.load %arg1[%c0_498, %c146_499] : memref<8x256xf32, #tpu.memory_space<vmem>>, vector<8x2xf32>
    %c0_500 = arith.constant 0 : index
    %c332 = arith.constant 332 : index
    %333 = vector.load %arg2[%c0_500, %c332] : memref<8x512xf32, #tpu.memory_space<vmem>>, vector<8x2xf32>
    tpu.vector_store %arg2[%c0_500, %c332], %332 {strides = array<i32>} : memref<8x512xf32, #tpu.memory_space<vmem>>, vector<8x2xf32>,
    %c0_501 = arith.constant 0 : index
    %c178_502 = arith.constant 178 : index
    %334 = vector.load %arg1[%c0_501, %c178_502] : memref<8x256xf32, #tpu.memory_space<vmem>>, vector<8x2xf32>
    %c0_503 = arith.constant 0 : index
    %c334 = arith.constant 334 : index
    %335 = vector.load %arg2[%c0_503, %c334] : memref<8x512xf32, #tpu.memory_space<vmem>>, vector<8x2xf32>
    tpu.vector_store %arg2[%c0_503, %c334], %334 {strides = array<i32>} : memref<8x512xf32, #tpu.memory_space<vmem>>, vector<8x2xf32>,
    %c0_504 = arith.constant 0 : index
    %c20_505 = arith.constant 20 : index
    %336 = vector.load %arg1[%c0_504, %c20_505] : memref<8x256xf32, #tpu.memory_space<vmem>>, vector<8x2xf32>
    %c0_506 = arith.constant 0 : index
    %c336 = arith.constant 336 : index
    %337 = vector.load %arg2[%c0_506, %c336] : memref<8x512xf32, #tpu.memory_space<vmem>>, vector<8x2xf32>
    tpu.vector_store %arg2[%c0_506, %c336], %336 {strides = array<i32>} : memref<8x512xf32, #tpu.memory_space<vmem>>, vector<8x2xf32>,
    %c0_507 = arith.constant 0 : index
    %c52_508 = arith.constant 52 : index
    %338 = vector.load %arg1[%c0_507, %c52_508] : memref<8x256xf32, #tpu.memory_space<vmem>>, vector<8x2xf32>
    %c0_509 = arith.constant 0 : index
    %c338 = arith.constant 338 : index
    %339 = vector.load %arg2[%c0_509, %c338] : memref<8x512xf32, #tpu.memory_space<vmem>>, vector<8x2xf32>
    tpu.vector_store %arg2[%c0_509, %c338], %338 {strides = array<i32>} : memref<8x512xf32, #tpu.memory_space<vmem>>, vector<8x2xf32>,
    %c0_510 = arith.constant 0 : index
    %c22_511 = arith.constant 22 : index
    %340 = vector.load %arg1[%c0_510, %c22_511] : memref<8x256xf32, #tpu.memory_space<vmem>>, vector<8x2xf32>
    %c0_512 = arith.constant 0 : index
    %c340 = arith.constant 340 : index
    %341 = vector.load %arg2[%c0_512, %c340] : memref<8x512xf32, #tpu.memory_space<vmem>>, vector<8x2xf32>
    tpu.vector_store %arg2[%c0_512, %c340], %340 {strides = array<i32>} : memref<8x512xf32, #tpu.memory_space<vmem>>, vector<8x2xf32>,
    %c0_513 = arith.constant 0 : index
    %c54_514 = arith.constant 54 : index
    %342 = vector.load %arg1[%c0_513, %c54_514] : memref<8x256xf32, #tpu.memory_space<vmem>>, vector<8x2xf32>
    %c0_515 = arith.constant 0 : index
    %c342 = arith.constant 342 : index
    %343 = vector.load %arg2[%c0_515, %c342] : memref<8x512xf32, #tpu.memory_space<vmem>>, vector<8x2xf32>
    tpu.vector_store %arg2[%c0_515, %c342], %342 {strides = array<i32>} : memref<8x512xf32, #tpu.memory_space<vmem>>, vector<8x2xf32>,
    %c0_516 = arith.constant 0 : index
    %c148_517 = arith.constant 148 : index
    %344 = vector.load %arg1[%c0_516, %c148_517] : memref<8x256xf32, #tpu.memory_space<vmem>>, vector<8x2xf32>
    %c0_518 = arith.constant 0 : index
    %c344 = arith.constant 344 : index
    %345 = vector.load %arg2[%c0_518, %c344] : memref<8x512xf32, #tpu.memory_space<vmem>>, vector<8x2xf32>
    tpu.vector_store %arg2[%c0_518, %c344], %344 {strides = array<i32>} : memref<8x512xf32, #tpu.memory_space<vmem>>, vector<8x2xf32>,
    %c0_519 = arith.constant 0 : index
    %c180_520 = arith.constant 180 : index
    %346 = vector.load %arg1[%c0_519, %c180_520] : memref<8x256xf32, #tpu.memory_space<vmem>>, vector<8x2xf32>
    %c0_521 = arith.constant 0 : index
    %c346 = arith.constant 346 : index
    %347 = vector.load %arg2[%c0_521, %c346] : memref<8x512xf32, #tpu.memory_space<vmem>>, vector<8x2xf32>
    tpu.vector_store %arg2[%c0_521, %c346], %346 {strides = array<i32>} : memref<8x512xf32, #tpu.memory_space<vmem>>, vector<8x2xf32>,
    %c0_522 = arith.constant 0 : index
    %c150_523 = arith.constant 150 : index
    %348 = vector.load %arg1[%c0_522, %c150_523] : memref<8x256xf32, #tpu.memory_space<vmem>>, vector<8x2xf32>
    %c0_524 = arith.constant 0 : index
    %c348 = arith.constant 348 : index
    %349 = vector.load %arg2[%c0_524, %c348] : memref<8x512xf32, #tpu.memory_space<vmem>>, vector<8x2xf32>
    tpu.vector_store %arg2[%c0_524, %c348], %348 {strides = array<i32>} : memref<8x512xf32, #tpu.memory_space<vmem>>, vector<8x2xf32>,
    %c0_525 = arith.constant 0 : index
    %c182_526 = arith.constant 182 : index
    %350 = vector.load %arg1[%c0_525, %c182_526] : memref<8x256xf32, #tpu.memory_space<vmem>>, vector<8x2xf32>
    %c0_527 = arith.constant 0 : index
    %c350 = arith.constant 350 : index
    %351 = vector.load %arg2[%c0_527, %c350] : memref<8x512xf32, #tpu.memory_space<vmem>>, vector<8x2xf32>
    tpu.vector_store %arg2[%c0_527, %c350], %350 {strides = array<i32>} : memref<8x512xf32, #tpu.memory_space<vmem>>, vector<8x2xf32>,
    %c0_528 = arith.constant 0 : index
    %c24_529 = arith.constant 24 : index
    %352 = vector.load %arg1[%c0_528, %c24_529] : memref<8x256xf32, #tpu.memory_space<vmem>>, vector<8x2xf32>
    %c0_530 = arith.constant 0 : index
    %c352 = arith.constant 352 : index
    %353 = vector.load %arg2[%c0_530, %c352] : memref<8x512xf32, #tpu.memory_space<vmem>>, vector<8x2xf32>
    tpu.vector_store %arg2[%c0_530, %c352], %352 {strides = array<i32>} : memref<8x512xf32, #tpu.memory_space<vmem>>, vector<8x2xf32>,
    %c0_531 = arith.constant 0 : index
    %c56_532 = arith.constant 56 : index
    %354 = vector.load %arg1[%c0_531, %c56_532] : memref<8x256xf32, #tpu.memory_space<vmem>>, vector<8x2xf32>
    %c0_533 = arith.constant 0 : index
    %c354 = arith.constant 354 : index
    %355 = vector.load %arg2[%c0_533, %c354] : memref<8x512xf32, #tpu.memory_space<vmem>>, vector<8x2xf32>
    tpu.vector_store %arg2[%c0_533, %c354], %354 {strides = array<i32>} : memref<8x512xf32, #tpu.memory_space<vmem>>, vector<8x2xf32>,
    %c0_534 = arith.constant 0 : index
    %c26_535 = arith.constant 26 : index
    %356 = vector.load %arg1[%c0_534, %c26_535] : memref<8x256xf32, #tpu.memory_space<vmem>>, vector<8x2xf32>
    %c0_536 = arith.constant 0 : index
    %c356 = arith.constant 356 : index
    %357 = vector.load %arg2[%c0_536, %c356] : memref<8x512xf32, #tpu.memory_space<vmem>>, vector<8x2xf32>
    tpu.vector_store %arg2[%c0_536, %c356], %356 {strides = array<i32>} : memref<8x512xf32, #tpu.memory_space<vmem>>, vector<8x2xf32>,
    %c0_537 = arith.constant 0 : index
    %c58_538 = arith.constant 58 : index
    %358 = vector.load %arg1[%c0_537, %c58_538] : memref<8x256xf32, #tpu.memory_space<vmem>>, vector<8x2xf32>
    %c0_539 = arith.constant 0 : index
    %c358 = arith.constant 358 : index
    %359 = vector.load %arg2[%c0_539, %c358] : memref<8x512xf32, #tpu.memory_space<vmem>>, vector<8x2xf32>
    tpu.vector_store %arg2[%c0_539, %c358], %358 {strides = array<i32>} : memref<8x512xf32, #tpu.memory_space<vmem>>, vector<8x2xf32>,
    %c0_540 = arith.constant 0 : index
    %c152_541 = arith.constant 152 : index
    %360 = vector.load %arg1[%c0_540, %c152_541] : memref<8x256xf32, #tpu.memory_space<vmem>>, vector<8x2xf32>
    %c0_542 = arith.constant 0 : index
    %c360 = arith.constant 360 : index
    %361 = vector.load %arg2[%c0_542, %c360] : memref<8x512xf32, #tpu.memory_space<vmem>>, vector<8x2xf32>
    tpu.vector_store %arg2[%c0_542, %c360], %360 {strides = array<i32>} : memref<8x512xf32, #tpu.memory_space<vmem>>, vector<8x2xf32>,
    %c0_543 = arith.constant 0 : index
    %c184_544 = arith.constant 184 : index
    %362 = vector.load %arg1[%c0_543, %c184_544] : memref<8x256xf32, #tpu.memory_space<vmem>>, vector<8x2xf32>
    %c0_545 = arith.constant 0 : index
    %c362 = arith.constant 362 : index
    %363 = vector.load %arg2[%c0_545, %c362] : memref<8x512xf32, #tpu.memory_space<vmem>>, vector<8x2xf32>
    tpu.vector_store %arg2[%c0_545, %c362], %362 {strides = array<i32>} : memref<8x512xf32, #tpu.memory_space<vmem>>, vector<8x2xf32>,
    %c0_546 = arith.constant 0 : index
    %c154_547 = arith.constant 154 : index
    %364 = vector.load %arg1[%c0_546, %c154_547] : memref<8x256xf32, #tpu.memory_space<vmem>>, vector<8x2xf32>
    %c0_548 = arith.constant 0 : index
    %c364 = arith.constant 364 : index
    %365 = vector.load %arg2[%c0_548, %c364] : memref<8x512xf32, #tpu.memory_space<vmem>>, vector<8x2xf32>
    tpu.vector_store %arg2[%c0_548, %c364], %364 {strides = array<i32>} : memref<8x512xf32, #tpu.memory_space<vmem>>, vector<8x2xf32>,
    %c0_549 = arith.constant 0 : index
    %c186_550 = arith.constant 186 : index
    %366 = vector.load %arg1[%c0_549, %c186_550] : memref<8x256xf32, #tpu.memory_space<vmem>>, vector<8x2xf32>
    %c0_551 = arith.constant 0 : index
    %c366 = arith.constant 366 : index
    %367 = vector.load %arg2[%c0_551, %c366] : memref<8x512xf32, #tpu.memory_space<vmem>>, vector<8x2xf32>
    tpu.vector_store %arg2[%c0_551, %c366], %366 {strides = array<i32>} : memref<8x512xf32, #tpu.memory_space<vmem>>, vector<8x2xf32>,
    %c0_552 = arith.constant 0 : index
    %c28_553 = arith.constant 28 : index
    %368 = vector.load %arg1[%c0_552, %c28_553] : memref<8x256xf32, #tpu.memory_space<vmem>>, vector<8x2xf32>
    %c0_554 = arith.constant 0 : index
    %c368 = arith.constant 368 : index
    %369 = vector.load %arg2[%c0_554, %c368] : memref<8x512xf32, #tpu.memory_space<vmem>>, vector<8x2xf32>
    tpu.vector_store %arg2[%c0_554, %c368], %368 {strides = array<i32>} : memref<8x512xf32, #tpu.memory_space<vmem>>, vector<8x2xf32>,
    %c0_555 = arith.constant 0 : index
    %c60_556 = arith.constant 60 : index
    %370 = vector.load %arg1[%c0_555, %c60_556] : memref<8x256xf32, #tpu.memory_space<vmem>>, vector<8x2xf32>
    %c0_557 = arith.constant 0 : index
    %c370 = arith.constant 370 : index
    %371 = vector.load %arg2[%c0_557, %c370] : memref<8x512xf32, #tpu.memory_space<vmem>>, vector<8x2xf32>
    tpu.vector_store %arg2[%c0_557, %c370], %370 {strides = array<i32>} : memref<8x512xf32, #tpu.memory_space<vmem>>, vector<8x2xf32>,
    %c0_558 = arith.constant 0 : index
    %c30_559 = arith.constant 30 : index
    %372 = vector.load %arg1[%c0_558, %c30_559] : memref<8x256xf32, #tpu.memory_space<vmem>>, vector<8x2xf32>
    %c0_560 = arith.constant 0 : index
    %c372 = arith.constant 372 : index
    %373 = vector.load %arg2[%c0_560, %c372] : memref<8x512xf32, #tpu.memory_space<vmem>>, vector<8x2xf32>
    tpu.vector_store %arg2[%c0_560, %c372], %372 {strides = array<i32>} : memref<8x512xf32, #tpu.memory_space<vmem>>, vector<8x2xf32>,
    %c0_561 = arith.constant 0 : index
    %c62_562 = arith.constant 62 : index
    %374 = vector.load %arg1[%c0_561, %c62_562] : memref<8x256xf32, #tpu.memory_space<vmem>>, vector<8x2xf32>
    %c0_563 = arith.constant 0 : index
    %c374 = arith.constant 374 : index
    %375 = vector.load %arg2[%c0_563, %c374] : memref<8x512xf32, #tpu.memory_space<vmem>>, vector<8x2xf32>
    tpu.vector_store %arg2[%c0_563, %c374], %374 {strides = array<i32>} : memref<8x512xf32, #tpu.memory_space<vmem>>, vector<8x2xf32>,
    %c0_564 = arith.constant 0 : index
    %c156_565 = arith.constant 156 : index
    %376 = vector.load %arg1[%c0_564, %c156_565] : memref<8x256xf32, #tpu.memory_space<vmem>>, vector<8x2xf32>
    %c0_566 = arith.constant 0 : index
    %c376 = arith.constant 376 : index
    %377 = vector.load %arg2[%c0_566, %c376] : memref<8x512xf32, #tpu.memory_space<vmem>>, vector<8x2xf32>
    tpu.vector_store %arg2[%c0_566, %c376], %376 {strides = array<i32>} : memref<8x512xf32, #tpu.memory_space<vmem>>, vector<8x2xf32>,
    %c0_567 = arith.constant 0 : index
    %c188_568 = arith.constant 188 : index
    %378 = vector.load %arg1[%c0_567, %c188_568] : memref<8x256xf32, #tpu.memory_space<vmem>>, vector<8x2xf32>
    %c0_569 = arith.constant 0 : index
    %c378 = arith.constant 378 : index
    %379 = vector.load %arg2[%c0_569, %c378] : memref<8x512xf32, #tpu.memory_space<vmem>>, vector<8x2xf32>
    tpu.vector_store %arg2[%c0_569, %c378], %378 {strides = array<i32>} : memref<8x512xf32, #tpu.memory_space<vmem>>, vector<8x2xf32>,
    %c0_570 = arith.constant 0 : index
    %c158_571 = arith.constant 158 : index
    %380 = vector.load %arg1[%c0_570, %c158_571] : memref<8x256xf32, #tpu.memory_space<vmem>>, vector<8x2xf32>
    %c0_572 = arith.constant 0 : index
    %c380 = arith.constant 380 : index
    %381 = vector.load %arg2[%c0_572, %c380] : memref<8x512xf32, #tpu.memory_space<vmem>>, vector<8x2xf32>
    tpu.vector_store %arg2[%c0_572, %c380], %380 {strides = array<i32>} : memref<8x512xf32, #tpu.memory_space<vmem>>, vector<8x2xf32>,
    %c0_573 = arith.constant 0 : index
    %c190_574 = arith.constant 190 : index
    %382 = vector.load %arg1[%c0_573, %c190_574] : memref<8x256xf32, #tpu.memory_space<vmem>>, vector<8x2xf32>
    %c0_575 = arith.constant 0 : index
    %c382 = arith.constant 382 : index
    %383 = vector.load %arg2[%c0_575, %c382] : memref<8x512xf32, #tpu.memory_space<vmem>>, vector<8x2xf32>
    tpu.vector_store %arg2[%c0_575, %c382], %382 {strides = array<i32>} : memref<8x512xf32, #tpu.memory_space<vmem>>, vector<8x2xf32>,
    %c0_576 = arith.constant 0 : index
    %c64_577 = arith.constant 64 : index
    %384 = vector.load %arg1[%c0_576, %c64_577] : memref<8x256xf32, #tpu.memory_space<vmem>>, vector<8x2xf32>
    %c0_578 = arith.constant 0 : index
    %c384 = arith.constant 384 : index
    %385 = vector.load %arg2[%c0_578, %c384] : memref<8x512xf32, #tpu.memory_space<vmem>>, vector<8x2xf32>
    tpu.vector_store %arg2[%c0_578, %c384], %384 {strides = array<i32>} : memref<8x512xf32, #tpu.memory_space<vmem>>, vector<8x2xf32>,
    %c0_579 = arith.constant 0 : index
    %c96_580 = arith.constant 96 : index
    %386 = vector.load %arg1[%c0_579, %c96_580] : memref<8x256xf32, #tpu.memory_space<vmem>>, vector<8x2xf32>
    %c0_581 = arith.constant 0 : index
    %c386 = arith.constant 386 : index
    %387 = vector.load %arg2[%c0_581, %c386] : memref<8x512xf32, #tpu.memory_space<vmem>>, vector<8x2xf32>
    tpu.vector_store %arg2[%c0_581, %c386], %386 {strides = array<i32>} : memref<8x512xf32, #tpu.memory_space<vmem>>, vector<8x2xf32>,
    %c0_582 = arith.constant 0 : index
    %c66_583 = arith.constant 66 : index
    %388 = vector.load %arg1[%c0_582, %c66_583] : memref<8x256xf32, #tpu.memory_space<vmem>>, vector<8x2xf32>
    %c0_584 = arith.constant 0 : index
    %c388 = arith.constant 388 : index
    %389 = vector.load %arg2[%c0_584, %c388] : memref<8x512xf32, #tpu.memory_space<vmem>>, vector<8x2xf32>
    tpu.vector_store %arg2[%c0_584, %c388], %388 {strides = array<i32>} : memref<8x512xf32, #tpu.memory_space<vmem>>, vector<8x2xf32>,
    %c0_585 = arith.constant 0 : index
    %c98_586 = arith.constant 98 : index
    %390 = vector.load %arg1[%c0_585, %c98_586] : memref<8x256xf32, #tpu.memory_space<vmem>>, vector<8x2xf32>
    %c0_587 = arith.constant 0 : index
    %c390 = arith.constant 390 : index
    %391 = vector.load %arg2[%c0_587, %c390] : memref<8x512xf32, #tpu.memory_space<vmem>>, vector<8x2xf32>
    tpu.vector_store %arg2[%c0_587, %c390], %390 {strides = array<i32>} : memref<8x512xf32, #tpu.memory_space<vmem>>, vector<8x2xf32>,
    %c0_588 = arith.constant 0 : index
    %c192_589 = arith.constant 192 : index
    %392 = vector.load %arg1[%c0_588, %c192_589] : memref<8x256xf32, #tpu.memory_space<vmem>>, vector<8x2xf32>
    %c0_590 = arith.constant 0 : index
    %c392 = arith.constant 392 : index
    %393 = vector.load %arg2[%c0_590, %c392] : memref<8x512xf32, #tpu.memory_space<vmem>>, vector<8x2xf32>
    tpu.vector_store %arg2[%c0_590, %c392], %392 {strides = array<i32>} : memref<8x512xf32, #tpu.memory_space<vmem>>, vector<8x2xf32>,
    %c0_591 = arith.constant 0 : index
    %c224_592 = arith.constant 224 : index
    %394 = vector.load %arg1[%c0_591, %c224_592] : memref<8x256xf32, #tpu.memory_space<vmem>>, vector<8x2xf32>
    %c0_593 = arith.constant 0 : index
    %c394 = arith.constant 394 : index
    %395 = vector.load %arg2[%c0_593, %c394] : memref<8x512xf32, #tpu.memory_space<vmem>>, vector<8x2xf32>
    tpu.vector_store %arg2[%c0_593, %c394], %394 {strides = array<i32>} : memref<8x512xf32, #tpu.memory_space<vmem>>, vector<8x2xf32>,
    %c0_594 = arith.constant 0 : index
    %c194_595 = arith.constant 194 : index
    %396 = vector.load %arg1[%c0_594, %c194_595] : memref<8x256xf32, #tpu.memory_space<vmem>>, vector<8x2xf32>
    %c0_596 = arith.constant 0 : index
    %c396 = arith.constant 396 : index
    %397 = vector.load %arg2[%c0_596, %c396] : memref<8x512xf32, #tpu.memory_space<vmem>>, vector<8x2xf32>
    tpu.vector_store %arg2[%c0_596, %c396], %396 {strides = array<i32>} : memref<8x512xf32, #tpu.memory_space<vmem>>, vector<8x2xf32>,
    %c0_597 = arith.constant 0 : index
    %c226_598 = arith.constant 226 : index
    %398 = vector.load %arg1[%c0_597, %c226_598] : memref<8x256xf32, #tpu.memory_space<vmem>>, vector<8x2xf32>
    %c0_599 = arith.constant 0 : index
    %c398 = arith.constant 398 : index
    %399 = vector.load %arg2[%c0_599, %c398] : memref<8x512xf32, #tpu.memory_space<vmem>>, vector<8x2xf32>
    tpu.vector_store %arg2[%c0_599, %c398], %398 {strides = array<i32>} : memref<8x512xf32, #tpu.memory_space<vmem>>, vector<8x2xf32>,
    %c0_600 = arith.constant 0 : index
    %c68_601 = arith.constant 68 : index
    %400 = vector.load %arg1[%c0_600, %c68_601] : memref<8x256xf32, #tpu.memory_space<vmem>>, vector<8x2xf32>
    %c0_602 = arith.constant 0 : index
    %c400 = arith.constant 400 : index
    %401 = vector.load %arg2[%c0_602, %c400] : memref<8x512xf32, #tpu.memory_space<vmem>>, vector<8x2xf32>
    tpu.vector_store %arg2[%c0_602, %c400], %400 {strides = array<i32>} : memref<8x512xf32, #tpu.memory_space<vmem>>, vector<8x2xf32>,
    %c0_603 = arith.constant 0 : index
    %c100_604 = arith.constant 100 : index
    %402 = vector.load %arg1[%c0_603, %c100_604] : memref<8x256xf32, #tpu.memory_space<vmem>>, vector<8x2xf32>
    %c0_605 = arith.constant 0 : index
    %c402 = arith.constant 402 : index
    %403 = vector.load %arg2[%c0_605, %c402] : memref<8x512xf32, #tpu.memory_space<vmem>>, vector<8x2xf32>
    tpu.vector_store %arg2[%c0_605, %c402], %402 {strides = array<i32>} : memref<8x512xf32, #tpu.memory_space<vmem>>, vector<8x2xf32>,
    %c0_606 = arith.constant 0 : index
    %c70_607 = arith.constant 70 : index
    %404 = vector.load %arg1[%c0_606, %c70_607] : memref<8x256xf32, #tpu.memory_space<vmem>>, vector<8x2xf32>
    %c0_608 = arith.constant 0 : index
    %c404 = arith.constant 404 : index
    %405 = vector.load %arg2[%c0_608, %c404] : memref<8x512xf32, #tpu.memory_space<vmem>>, vector<8x2xf32>
    tpu.vector_store %arg2[%c0_608, %c404], %404 {strides = array<i32>} : memref<8x512xf32, #tpu.memory_space<vmem>>, vector<8x2xf32>,
    %c0_609 = arith.constant 0 : index
    %c102_610 = arith.constant 102 : index
    %406 = vector.load %arg1[%c0_609, %c102_610] : memref<8x256xf32, #tpu.memory_space<vmem>>, vector<8x2xf32>
    %c0_611 = arith.constant 0 : index
    %c406 = arith.constant 406 : index
    %407 = vector.load %arg2[%c0_611, %c406] : memref<8x512xf32, #tpu.memory_space<vmem>>, vector<8x2xf32>
    tpu.vector_store %arg2[%c0_611, %c406], %406 {strides = array<i32>} : memref<8x512xf32, #tpu.memory_space<vmem>>, vector<8x2xf32>,
    %c0_612 = arith.constant 0 : index
    %c196_613 = arith.constant 196 : index
    %408 = vector.load %arg1[%c0_612, %c196_613] : memref<8x256xf32, #tpu.memory_space<vmem>>, vector<8x2xf32>
    %c0_614 = arith.constant 0 : index
    %c408 = arith.constant 408 : index
    %409 = vector.load %arg2[%c0_614, %c408] : memref<8x512xf32, #tpu.memory_space<vmem>>, vector<8x2xf32>
    tpu.vector_store %arg2[%c0_614, %c408], %408 {strides = array<i32>} : memref<8x512xf32, #tpu.memory_space<vmem>>, vector<8x2xf32>,
    %c0_615 = arith.constant 0 : index
    %c228_616 = arith.constant 228 : index
    %410 = vector.load %arg1[%c0_615, %c228_616] : memref<8x256xf32, #tpu.memory_space<vmem>>, vector<8x2xf32>
    %c0_617 = arith.constant 0 : index
    %c410 = arith.constant 410 : index
    %411 = vector.load %arg2[%c0_617, %c410] : memref<8x512xf32, #tpu.memory_space<vmem>>, vector<8x2xf32>
    tpu.vector_store %arg2[%c0_617, %c410], %410 {strides = array<i32>} : memref<8x512xf32, #tpu.memory_space<vmem>>, vector<8x2xf32>,
    %c0_618 = arith.constant 0 : index
    %c198_619 = arith.constant 198 : index
    %412 = vector.load %arg1[%c0_618, %c198_619] : memref<8x256xf32, #tpu.memory_space<vmem>>, vector<8x2xf32>
    %c0_620 = arith.constant 0 : index
    %c412 = arith.constant 412 : index
    %413 = vector.load %arg2[%c0_620, %c412] : memref<8x512xf32, #tpu.memory_space<vmem>>, vector<8x2xf32>
    tpu.vector_store %arg2[%c0_620, %c412], %412 {strides = array<i32>} : memref<8x512xf32, #tpu.memory_space<vmem>>, vector<8x2xf32>,
    %c0_621 = arith.constant 0 : index
    %c230_622 = arith.constant 230 : index
    %414 = vector.load %arg1[%c0_621, %c230_622] : memref<8x256xf32, #tpu.memory_space<vmem>>, vector<8x2xf32>
    %c0_623 = arith.constant 0 : index
    %c414 = arith.constant 414 : index
    %415 = vector.load %arg2[%c0_623, %c414] : memref<8x512xf32, #tpu.memory_space<vmem>>, vector<8x2xf32>
    tpu.vector_store %arg2[%c0_623, %c414], %414 {strides = array<i32>} : memref<8x512xf32, #tpu.memory_space<vmem>>, vector<8x2xf32>,
    %c0_624 = arith.constant 0 : index
    %c72_625 = arith.constant 72 : index
    %416 = vector.load %arg1[%c0_624, %c72_625] : memref<8x256xf32, #tpu.memory_space<vmem>>, vector<8x2xf32>
    %c0_626 = arith.constant 0 : index
    %c416 = arith.constant 416 : index
    %417 = vector.load %arg2[%c0_626, %c416] : memref<8x512xf32, #tpu.memory_space<vmem>>, vector<8x2xf32>
    tpu.vector_store %arg2[%c0_626, %c416], %416 {strides = array<i32>} : memref<8x512xf32, #tpu.memory_space<vmem>>, vector<8x2xf32>,
    %c0_627 = arith.constant 0 : index
    %c104_628 = arith.constant 104 : index
    %418 = vector.load %arg1[%c0_627, %c104_628] : memref<8x256xf32, #tpu.memory_space<vmem>>, vector<8x2xf32>
    %c0_629 = arith.constant 0 : index
    %c418 = arith.constant 418 : index
    %419 = vector.load %arg2[%c0_629, %c418] : memref<8x512xf32, #tpu.memory_space<vmem>>, vector<8x2xf32>
    tpu.vector_store %arg2[%c0_629, %c418], %418 {strides = array<i32>} : memref<8x512xf32, #tpu.memory_space<vmem>>, vector<8x2xf32>,
    %c0_630 = arith.constant 0 : index
    %c74_631 = arith.constant 74 : index
    %420 = vector.load %arg1[%c0_630, %c74_631] : memref<8x256xf32, #tpu.memory_space<vmem>>, vector<8x2xf32>
    %c0_632 = arith.constant 0 : index
    %c420 = arith.constant 420 : index
    %421 = vector.load %arg2[%c0_632, %c420] : memref<8x512xf32, #tpu.memory_space<vmem>>, vector<8x2xf32>
    tpu.vector_store %arg2[%c0_632, %c420], %420 {strides = array<i32>} : memref<8x512xf32, #tpu.memory_space<vmem>>, vector<8x2xf32>,
    %c0_633 = arith.constant 0 : index
    %c106_634 = arith.constant 106 : index
    %422 = vector.load %arg1[%c0_633, %c106_634] : memref<8x256xf32, #tpu.memory_space<vmem>>, vector<8x2xf32>
    %c0_635 = arith.constant 0 : index
    %c422 = arith.constant 422 : index
    %423 = vector.load %arg2[%c0_635, %c422] : memref<8x512xf32, #tpu.memory_space<vmem>>, vector<8x2xf32>
    tpu.vector_store %arg2[%c0_635, %c422], %422 {strides = array<i32>} : memref<8x512xf32, #tpu.memory_space<vmem>>, vector<8x2xf32>,
    %c0_636 = arith.constant 0 : index
    %c200_637 = arith.constant 200 : index
    %424 = vector.load %arg1[%c0_636, %c200_637] : memref<8x256xf32, #tpu.memory_space<vmem>>, vector<8x2xf32>
    %c0_638 = arith.constant 0 : index
    %c424 = arith.constant 424 : index
    %425 = vector.load %arg2[%c0_638, %c424] : memref<8x512xf32, #tpu.memory_space<vmem>>, vector<8x2xf32>
    tpu.vector_store %arg2[%c0_638, %c424], %424 {strides = array<i32>} : memref<8x512xf32, #tpu.memory_space<vmem>>, vector<8x2xf32>,
    %c0_639 = arith.constant 0 : index
    %c232_640 = arith.constant 232 : index
    %426 = vector.load %arg1[%c0_639, %c232_640] : memref<8x256xf32, #tpu.memory_space<vmem>>, vector<8x2xf32>
    %c0_641 = arith.constant 0 : index
    %c426 = arith.constant 426 : index
    %427 = vector.load %arg2[%c0_641, %c426] : memref<8x512xf32, #tpu.memory_space<vmem>>, vector<8x2xf32>
    tpu.vector_store %arg2[%c0_641, %c426], %426 {strides = array<i32>} : memref<8x512xf32, #tpu.memory_space<vmem>>, vector<8x2xf32>,
    %c0_642 = arith.constant 0 : index
    %c202_643 = arith.constant 202 : index
    %428 = vector.load %arg1[%c0_642, %c202_643] : memref<8x256xf32, #tpu.memory_space<vmem>>, vector<8x2xf32>
    %c0_644 = arith.constant 0 : index
    %c428 = arith.constant 428 : index
    %429 = vector.load %arg2[%c0_644, %c428] : memref<8x512xf32, #tpu.memory_space<vmem>>, vector<8x2xf32>
    tpu.vector_store %arg2[%c0_644, %c428], %428 {strides = array<i32>} : memref<8x512xf32, #tpu.memory_space<vmem>>, vector<8x2xf32>,
    %c0_645 = arith.constant 0 : index
    %c234_646 = arith.constant 234 : index
    %430 = vector.load %arg1[%c0_645, %c234_646] : memref<8x256xf32, #tpu.memory_space<vmem>>, vector<8x2xf32>
    %c0_647 = arith.constant 0 : index
    %c430 = arith.constant 430 : index
    %431 = vector.load %arg2[%c0_647, %c430] : memref<8x512xf32, #tpu.memory_space<vmem>>, vector<8x2xf32>
    tpu.vector_store %arg2[%c0_647, %c430], %430 {strides = array<i32>} : memref<8x512xf32, #tpu.memory_space<vmem>>, vector<8x2xf32>,
    %c0_648 = arith.constant 0 : index
    %c76_649 = arith.constant 76 : index
    %432 = vector.load %arg1[%c0_648, %c76_649] : memref<8x256xf32, #tpu.memory_space<vmem>>, vector<8x2xf32>
    %c0_650 = arith.constant 0 : index
    %c432 = arith.constant 432 : index
    %433 = vector.load %arg2[%c0_650, %c432] : memref<8x512xf32, #tpu.memory_space<vmem>>, vector<8x2xf32>
    tpu.vector_store %arg2[%c0_650, %c432], %432 {strides = array<i32>} : memref<8x512xf32, #tpu.memory_space<vmem>>, vector<8x2xf32>,
    %c0_651 = arith.constant 0 : index
    %c108_652 = arith.constant 108 : index
    %434 = vector.load %arg1[%c0_651, %c108_652] : memref<8x256xf32, #tpu.memory_space<vmem>>, vector<8x2xf32>
    %c0_653 = arith.constant 0 : index
    %c434 = arith.constant 434 : index
    %435 = vector.load %arg2[%c0_653, %c434] : memref<8x512xf32, #tpu.memory_space<vmem>>, vector<8x2xf32>
    tpu.vector_store %arg2[%c0_653, %c434], %434 {strides = array<i32>} : memref<8x512xf32, #tpu.memory_space<vmem>>, vector<8x2xf32>,
    %c0_654 = arith.constant 0 : index
    %c78_655 = arith.constant 78 : index
    %436 = vector.load %arg1[%c0_654, %c78_655] : memref<8x256xf32, #tpu.memory_space<vmem>>, vector<8x2xf32>
    %c0_656 = arith.constant 0 : index
    %c436 = arith.constant 436 : index
    %437 = vector.load %arg2[%c0_656, %c436] : memref<8x512xf32, #tpu.memory_space<vmem>>, vector<8x2xf32>
    tpu.vector_store %arg2[%c0_656, %c436], %436 {strides = array<i32>} : memref<8x512xf32, #tpu.memory_space<vmem>>, vector<8x2xf32>,
    %c0_657 = arith.constant 0 : index
    %c110_658 = arith.constant 110 : index
    %438 = vector.load %arg1[%c0_657, %c110_658] : memref<8x256xf32, #tpu.memory_space<vmem>>, vector<8x2xf32>
    %c0_659 = arith.constant 0 : index
    %c438 = arith.constant 438 : index
    %439 = vector.load %arg2[%c0_659, %c438] : memref<8x512xf32, #tpu.memory_space<vmem>>, vector<8x2xf32>
    tpu.vector_store %arg2[%c0_659, %c438], %438 {strides = array<i32>} : memref<8x512xf32, #tpu.memory_space<vmem>>, vector<8x2xf32>,
    %c0_660 = arith.constant 0 : index
    %c204_661 = arith.constant 204 : index
    %440 = vector.load %arg1[%c0_660, %c204_661] : memref<8x256xf32, #tpu.memory_space<vmem>>, vector<8x2xf32>
    %c0_662 = arith.constant 0 : index
    %c440 = arith.constant 440 : index
    %441 = vector.load %arg2[%c0_662, %c440] : memref<8x512xf32, #tpu.memory_space<vmem>>, vector<8x2xf32>
    tpu.vector_store %arg2[%c0_662, %c440], %440 {strides = array<i32>} : memref<8x512xf32, #tpu.memory_space<vmem>>, vector<8x2xf32>,
    %c0_663 = arith.constant 0 : index
    %c236_664 = arith.constant 236 : index
    %442 = vector.load %arg1[%c0_663, %c236_664] : memref<8x256xf32, #tpu.memory_space<vmem>>, vector<8x2xf32>
    %c0_665 = arith.constant 0 : index
    %c442 = arith.constant 442 : index
    %443 = vector.load %arg2[%c0_665, %c442] : memref<8x512xf32, #tpu.memory_space<vmem>>, vector<8x2xf32>
    tpu.vector_store %arg2[%c0_665, %c442], %442 {strides = array<i32>} : memref<8x512xf32, #tpu.memory_space<vmem>>, vector<8x2xf32>,
    %c0_666 = arith.constant 0 : index
    %c206_667 = arith.constant 206 : index
    %444 = vector.load %arg1[%c0_666, %c206_667] : memref<8x256xf32, #tpu.memory_space<vmem>>, vector<8x2xf32>
    %c0_668 = arith.constant 0 : index
    %c444 = arith.constant 444 : index
    %445 = vector.load %arg2[%c0_668, %c444] : memref<8x512xf32, #tpu.memory_space<vmem>>, vector<8x2xf32>
    tpu.vector_store %arg2[%c0_668, %c444], %444 {strides = array<i32>} : memref<8x512xf32, #tpu.memory_space<vmem>>, vector<8x2xf32>,
    %c0_669 = arith.constant 0 : index
    %c238_670 = arith.constant 238 : index
    %446 = vector.load %arg1[%c0_669, %c238_670] : memref<8x256xf32, #tpu.memory_space<vmem>>, vector<8x2xf32>
    %c0_671 = arith.constant 0 : index
    %c446 = arith.constant 446 : index
    %447 = vector.load %arg2[%c0_671, %c446] : memref<8x512xf32, #tpu.memory_space<vmem>>, vector<8x2xf32>
    tpu.vector_store %arg2[%c0_671, %c446], %446 {strides = array<i32>} : memref<8x512xf32, #tpu.memory_space<vmem>>, vector<8x2xf32>,
    %c0_672 = arith.constant 0 : index
    %c80_673 = arith.constant 80 : index
    %448 = vector.load %arg1[%c0_672, %c80_673] : memref<8x256xf32, #tpu.memory_space<vmem>>, vector<8x2xf32>
    %c0_674 = arith.constant 0 : index
    %c448 = arith.constant 448 : index
    %449 = vector.load %arg2[%c0_674, %c448] : memref<8x512xf32, #tpu.memory_space<vmem>>, vector<8x2xf32>
    tpu.vector_store %arg2[%c0_674, %c448], %448 {strides = array<i32>} : memref<8x512xf32, #tpu.memory_space<vmem>>, vector<8x2xf32>,
    %c0_675 = arith.constant 0 : index
    %c112_676 = arith.constant 112 : index
    %450 = vector.load %arg1[%c0_675, %c112_676] : memref<8x256xf32, #tpu.memory_space<vmem>>, vector<8x2xf32>
    %c0_677 = arith.constant 0 : index
    %c450 = arith.constant 450 : index
    %451 = vector.load %arg2[%c0_677, %c450] : memref<8x512xf32, #tpu.memory_space<vmem>>, vector<8x2xf32>
    tpu.vector_store %arg2[%c0_677, %c450], %450 {strides = array<i32>} : memref<8x512xf32, #tpu.memory_space<vmem>>, vector<8x2xf32>,
    %c0_678 = arith.constant 0 : index
    %c82_679 = arith.constant 82 : index
    %452 = vector.load %arg1[%c0_678, %c82_679] : memref<8x256xf32, #tpu.memory_space<vmem>>, vector<8x2xf32>
    %c0_680 = arith.constant 0 : index
    %c452 = arith.constant 452 : index
    %453 = vector.load %arg2[%c0_680, %c452] : memref<8x512xf32, #tpu.memory_space<vmem>>, vector<8x2xf32>
    tpu.vector_store %arg2[%c0_680, %c452], %452 {strides = array<i32>} : memref<8x512xf32, #tpu.memory_space<vmem>>, vector<8x2xf32>,
    %c0_681 = arith.constant 0 : index
    %c114_682 = arith.constant 114 : index
    %454 = vector.load %arg1[%c0_681, %c114_682] : memref<8x256xf32, #tpu.memory_space<vmem>>, vector<8x2xf32>
    %c0_683 = arith.constant 0 : index
    %c454 = arith.constant 454 : index
    %455 = vector.load %arg2[%c0_683, %c454] : memref<8x512xf32, #tpu.memory_space<vmem>>, vector<8x2xf32>
    tpu.vector_store %arg2[%c0_683, %c454], %454 {strides = array<i32>} : memref<8x512xf32, #tpu.memory_space<vmem>>, vector<8x2xf32>,
    %c0_684 = arith.constant 0 : index
    %c208_685 = arith.constant 208 : index
    %456 = vector.load %arg1[%c0_684, %c208_685] : memref<8x256xf32, #tpu.memory_space<vmem>>, vector<8x2xf32>
    %c0_686 = arith.constant 0 : index
    %c456 = arith.constant 456 : index
    %457 = vector.load %arg2[%c0_686, %c456] : memref<8x512xf32, #tpu.memory_space<vmem>>, vector<8x2xf32>
    tpu.vector_store %arg2[%c0_686, %c456], %456 {strides = array<i32>} : memref<8x512xf32, #tpu.memory_space<vmem>>, vector<8x2xf32>,
    %c0_687 = arith.constant 0 : index
    %c240_688 = arith.constant 240 : index
    %458 = vector.load %arg1[%c0_687, %c240_688] : memref<8x256xf32, #tpu.memory_space<vmem>>, vector<8x2xf32>
    %c0_689 = arith.constant 0 : index
    %c458 = arith.constant 458 : index
    %459 = vector.load %arg2[%c0_689, %c458] : memref<8x512xf32, #tpu.memory_space<vmem>>, vector<8x2xf32>
    tpu.vector_store %arg2[%c0_689, %c458], %458 {strides = array<i32>} : memref<8x512xf32, #tpu.memory_space<vmem>>, vector<8x2xf32>,
    %c0_690 = arith.constant 0 : index
    %c210_691 = arith.constant 210 : index
    %460 = vector.load %arg1[%c0_690, %c210_691] : memref<8x256xf32, #tpu.memory_space<vmem>>, vector<8x2xf32>
    %c0_692 = arith.constant 0 : index
    %c460 = arith.constant 460 : index
    %461 = vector.load %arg2[%c0_692, %c460] : memref<8x512xf32, #tpu.memory_space<vmem>>, vector<8x2xf32>
    tpu.vector_store %arg2[%c0_692, %c460], %460 {strides = array<i32>} : memref<8x512xf32, #tpu.memory_space<vmem>>, vector<8x2xf32>,
    %c0_693 = arith.constant 0 : index
    %c242_694 = arith.constant 242 : index
    %462 = vector.load %arg1[%c0_693, %c242_694] : memref<8x256xf32, #tpu.memory_space<vmem>>, vector<8x2xf32>
    %c0_695 = arith.constant 0 : index
    %c462 = arith.constant 462 : index
    %463 = vector.load %arg2[%c0_695, %c462] : memref<8x512xf32, #tpu.memory_space<vmem>>, vector<8x2xf32>
    tpu.vector_store %arg2[%c0_695, %c462], %462 {strides = array<i32>} : memref<8x512xf32, #tpu.memory_space<vmem>>, vector<8x2xf32>,
    %c0_696 = arith.constant 0 : index
    %c84_697 = arith.constant 84 : index
    %464 = vector.load %arg1[%c0_696, %c84_697] : memref<8x256xf32, #tpu.memory_space<vmem>>, vector<8x2xf32>
    %c0_698 = arith.constant 0 : index
    %c464 = arith.constant 464 : index
    %465 = vector.load %arg2[%c0_698, %c464] : memref<8x512xf32, #tpu.memory_space<vmem>>, vector<8x2xf32>
    tpu.vector_store %arg2[%c0_698, %c464], %464 {strides = array<i32>} : memref<8x512xf32, #tpu.memory_space<vmem>>, vector<8x2xf32>,
    %c0_699 = arith.constant 0 : index
    %c116_700 = arith.constant 116 : index
    %466 = vector.load %arg1[%c0_699, %c116_700] : memref<8x256xf32, #tpu.memory_space<vmem>>, vector<8x2xf32>
    %c0_701 = arith.constant 0 : index
    %c466 = arith.constant 466 : index
    %467 = vector.load %arg2[%c0_701, %c466] : memref<8x512xf32, #tpu.memory_space<vmem>>, vector<8x2xf32>
    tpu.vector_store %arg2[%c0_701, %c466], %466 {strides = array<i32>} : memref<8x512xf32, #tpu.memory_space<vmem>>, vector<8x2xf32>,
    %c0_702 = arith.constant 0 : index
    %c86_703 = arith.constant 86 : index
    %468 = vector.load %arg1[%c0_702, %c86_703] : memref<8x256xf32, #tpu.memory_space<vmem>>, vector<8x2xf32>
    %c0_704 = arith.constant 0 : index
    %c468 = arith.constant 468 : index
    %469 = vector.load %arg2[%c0_704, %c468] : memref<8x512xf32, #tpu.memory_space<vmem>>, vector<8x2xf32>
    tpu.vector_store %arg2[%c0_704, %c468], %468 {strides = array<i32>} : memref<8x512xf32, #tpu.memory_space<vmem>>, vector<8x2xf32>,
    %c0_705 = arith.constant 0 : index
    %c118_706 = arith.constant 118 : index
    %470 = vector.load %arg1[%c0_705, %c118_706] : memref<8x256xf32, #tpu.memory_space<vmem>>, vector<8x2xf32>
    %c0_707 = arith.constant 0 : index
    %c470 = arith.constant 470 : index
    %471 = vector.load %arg2[%c0_707, %c470] : memref<8x512xf32, #tpu.memory_space<vmem>>, vector<8x2xf32>
    tpu.vector_store %arg2[%c0_707, %c470], %470 {strides = array<i32>} : memref<8x512xf32, #tpu.memory_space<vmem>>, vector<8x2xf32>,
    %c0_708 = arith.constant 0 : index
    %c212_709 = arith.constant 212 : index
    %472 = vector.load %arg1[%c0_708, %c212_709] : memref<8x256xf32, #tpu.memory_space<vmem>>, vector<8x2xf32>
    %c0_710 = arith.constant 0 : index
    %c472 = arith.constant 472 : index
    %473 = vector.load %arg2[%c0_710, %c472] : memref<8x512xf32, #tpu.memory_space<vmem>>, vector<8x2xf32>
    tpu.vector_store %arg2[%c0_710, %c472], %472 {strides = array<i32>} : memref<8x512xf32, #tpu.memory_space<vmem>>, vector<8x2xf32>,
    %c0_711 = arith.constant 0 : index
    %c244_712 = arith.constant 244 : index
    %474 = vector.load %arg1[%c0_711, %c244_712] : memref<8x256xf32, #tpu.memory_space<vmem>>, vector<8x2xf32>
    %c0_713 = arith.constant 0 : index
    %c474 = arith.constant 474 : index
    %475 = vector.load %arg2[%c0_713, %c474] : memref<8x512xf32, #tpu.memory_space<vmem>>, vector<8x2xf32>
    tpu.vector_store %arg2[%c0_713, %c474], %474 {strides = array<i32>} : memref<8x512xf32, #tpu.memory_space<vmem>>, vector<8x2xf32>,
    %c0_714 = arith.constant 0 : index
    %c214_715 = arith.constant 214 : index
    %476 = vector.load %arg1[%c0_714, %c214_715] : memref<8x256xf32, #tpu.memory_space<vmem>>, vector<8x2xf32>
    %c0_716 = arith.constant 0 : index
    %c476 = arith.constant 476 : index
    %477 = vector.load %arg2[%c0_716, %c476] : memref<8x512xf32, #tpu.memory_space<vmem>>, vector<8x2xf32>
    tpu.vector_store %arg2[%c0_716, %c476], %476 {strides = array<i32>} : memref<8x512xf32, #tpu.memory_space<vmem>>, vector<8x2xf32>,
    %c0_717 = arith.constant 0 : index
    %c246_718 = arith.constant 246 : index
    %478 = vector.load %arg1[%c0_717, %c246_718] : memref<8x256xf32, #tpu.memory_space<vmem>>, vector<8x2xf32>
    %c0_719 = arith.constant 0 : index
    %c478 = arith.constant 478 : index
    %479 = vector.load %arg2[%c0_719, %c478] : memref<8x512xf32, #tpu.memory_space<vmem>>, vector<8x2xf32>
    tpu.vector_store %arg2[%c0_719, %c478], %478 {strides = array<i32>} : memref<8x512xf32, #tpu.memory_space<vmem>>, vector<8x2xf32>,
    %c0_720 = arith.constant 0 : index
    %c88_721 = arith.constant 88 : index
    %480 = vector.load %arg1[%c0_720, %c88_721] : memref<8x256xf32, #tpu.memory_space<vmem>>, vector<8x2xf32>
    %c0_722 = arith.constant 0 : index
    %c480 = arith.constant 480 : index
    %481 = vector.load %arg2[%c0_722, %c480] : memref<8x512xf32, #tpu.memory_space<vmem>>, vector<8x2xf32>
    tpu.vector_store %arg2[%c0_722, %c480], %480 {strides = array<i32>} : memref<8x512xf32, #tpu.memory_space<vmem>>, vector<8x2xf32>,
    %c0_723 = arith.constant 0 : index
    %c120_724 = arith.constant 120 : index
    %482 = vector.load %arg1[%c0_723, %c120_724] : memref<8x256xf32, #tpu.memory_space<vmem>>, vector<8x2xf32>
    %c0_725 = arith.constant 0 : index
    %c482 = arith.constant 482 : index
    %483 = vector.load %arg2[%c0_725, %c482] : memref<8x512xf32, #tpu.memory_space<vmem>>, vector<8x2xf32>
    tpu.vector_store %arg2[%c0_725, %c482], %482 {strides = array<i32>} : memref<8x512xf32, #tpu.memory_space<vmem>>, vector<8x2xf32>,
    %c0_726 = arith.constant 0 : index
    %c90_727 = arith.constant 90 : index
    %484 = vector.load %arg1[%c0_726, %c90_727] : memref<8x256xf32, #tpu.memory_space<vmem>>, vector<8x2xf32>
    %c0_728 = arith.constant 0 : index
    %c484 = arith.constant 484 : index
    %485 = vector.load %arg2[%c0_728, %c484] : memref<8x512xf32, #tpu.memory_space<vmem>>, vector<8x2xf32>
    tpu.vector_store %arg2[%c0_728, %c484], %484 {strides = array<i32>} : memref<8x512xf32, #tpu.memory_space<vmem>>, vector<8x2xf32>,
    %c0_729 = arith.constant 0 : index
    %c122_730 = arith.constant 122 : index
    %486 = vector.load %arg1[%c0_729, %c122_730] : memref<8x256xf32, #tpu.memory_space<vmem>>, vector<8x2xf32>
    %c0_731 = arith.constant 0 : index
    %c486 = arith.constant 486 : index
    %487 = vector.load %arg2[%c0_731, %c486] : memref<8x512xf32, #tpu.memory_space<vmem>>, vector<8x2xf32>
    tpu.vector_store %arg2[%c0_731, %c486], %486 {strides = array<i32>} : memref<8x512xf32, #tpu.memory_space<vmem>>, vector<8x2xf32>,
    %c0_732 = arith.constant 0 : index
    %c216_733 = arith.constant 216 : index
    %488 = vector.load %arg1[%c0_732, %c216_733] : memref<8x256xf32, #tpu.memory_space<vmem>>, vector<8x2xf32>
    %c0_734 = arith.constant 0 : index
    %c488 = arith.constant 488 : index
    %489 = vector.load %arg2[%c0_734, %c488] : memref<8x512xf32, #tpu.memory_space<vmem>>, vector<8x2xf32>
    tpu.vector_store %arg2[%c0_734, %c488], %488 {strides = array<i32>} : memref<8x512xf32, #tpu.memory_space<vmem>>, vector<8x2xf32>,
    %c0_735 = arith.constant 0 : index
    %c248_736 = arith.constant 248 : index
    %490 = vector.load %arg1[%c0_735, %c248_736] : memref<8x256xf32, #tpu.memory_space<vmem>>, vector<8x2xf32>
    %c0_737 = arith.constant 0 : index
    %c490 = arith.constant 490 : index
    %491 = vector.load %arg2[%c0_737, %c490] : memref<8x512xf32, #tpu.memory_space<vmem>>, vector<8x2xf32>
    tpu.vector_store %arg2[%c0_737, %c490], %490 {strides = array<i32>} : memref<8x512xf32, #tpu.memory_space<vmem>>, vector<8x2xf32>,
    %c0_738 = arith.constant 0 : index
    %c218_739 = arith.constant 218 : index
    %492 = vector.load %arg1[%c0_738, %c218_739] : memref<8x256xf32, #tpu.memory_space<vmem>>, vector<8x2xf32>
    %c0_740 = arith.constant 0 : index
    %c492 = arith.constant 492 : index
    %493 = vector.load %arg2[%c0_740, %c492] : memref<8x512xf32, #tpu.memory_space<vmem>>, vector<8x2xf32>
    tpu.vector_store %arg2[%c0_740, %c492], %492 {strides = array<i32>} : memref<8x512xf32, #tpu.memory_space<vmem>>, vector<8x2xf32>,
    %c0_741 = arith.constant 0 : index
    %c250_742 = arith.constant 250 : index
    %494 = vector.load %arg1[%c0_741, %c250_742] : memref<8x256xf32, #tpu.memory_space<vmem>>, vector<8x2xf32>
    %c0_743 = arith.constant 0 : index
    %c494 = arith.constant 494 : index
    %495 = vector.load %arg2[%c0_743, %c494] : memref<8x512xf32, #tpu.memory_space<vmem>>, vector<8x2xf32>
    tpu.vector_store %arg2[%c0_743, %c494], %494 {strides = array<i32>} : memref<8x512xf32, #tpu.memory_space<vmem>>, vector<8x2xf32>,
    %c0_744 = arith.constant 0 : index
    %c92_745 = arith.constant 92 : index
    %496 = vector.load %arg1[%c0_744, %c92_745] : memref<8x256xf32, #tpu.memory_space<vmem>>, vector<8x2xf32>
    %c0_746 = arith.constant 0 : index
    %c496 = arith.constant 496 : index
    %497 = vector.load %arg2[%c0_746, %c496] : memref<8x512xf32, #tpu.memory_space<vmem>>, vector<8x2xf32>
    tpu.vector_store %arg2[%c0_746, %c496], %496 {strides = array<i32>} : memref<8x512xf32, #tpu.memory_space<vmem>>, vector<8x2xf32>,
    %c0_747 = arith.constant 0 : index
    %c124_748 = arith.constant 124 : index
    %498 = vector.load %arg1[%c0_747, %c124_748] : memref<8x256xf32, #tpu.memory_space<vmem>>, vector<8x2xf32>
    %c0_749 = arith.constant 0 : index
    %c498 = arith.constant 498 : index
    %499 = vector.load %arg2[%c0_749, %c498] : memref<8x512xf32, #tpu.memory_space<vmem>>, vector<8x2xf32>
    tpu.vector_store %arg2[%c0_749, %c498], %498 {strides = array<i32>} : memref<8x512xf32, #tpu.memory_space<vmem>>, vector<8x2xf32>,
    %c0_750 = arith.constant 0 : index
    %c94_751 = arith.constant 94 : index
    %500 = vector.load %arg1[%c0_750, %c94_751] : memref<8x256xf32, #tpu.memory_space<vmem>>, vector<8x2xf32>
    %c0_752 = arith.constant 0 : index
    %c500 = arith.constant 500 : index
    %501 = vector.load %arg2[%c0_752, %c500] : memref<8x512xf32, #tpu.memory_space<vmem>>, vector<8x2xf32>
    tpu.vector_store %arg2[%c0_752, %c500], %500 {strides = array<i32>} : memref<8x512xf32, #tpu.memory_space<vmem>>, vector<8x2xf32>,
    %c0_753 = arith.constant 0 : index
    %c126_754 = arith.constant 126 : index
    %502 = vector.load %arg1[%c0_753, %c126_754] : memref<8x256xf32, #tpu.memory_space<vmem>>, vector<8x2xf32>
    %c0_755 = arith.constant 0 : index
    %c502 = arith.constant 502 : index
    %503 = vector.load %arg2[%c0_755, %c502] : memref<8x512xf32, #tpu.memory_space<vmem>>, vector<8x2xf32>
    tpu.vector_store %arg2[%c0_755, %c502], %502 {strides = array<i32>} : memref<8x512xf32, #tpu.memory_space<vmem>>, vector<8x2xf32>,
    %c0_756 = arith.constant 0 : index
    %c220_757 = arith.constant 220 : index
    %504 = vector.load %arg1[%c0_756, %c220_757] : memref<8x256xf32, #tpu.memory_space<vmem>>, vector<8x2xf32>
    %c0_758 = arith.constant 0 : index
    %c504 = arith.constant 504 : index
    %505 = vector.load %arg2[%c0_758, %c504] : memref<8x512xf32, #tpu.memory_space<vmem>>, vector<8x2xf32>
    tpu.vector_store %arg2[%c0_758, %c504], %504 {strides = array<i32>} : memref<8x512xf32, #tpu.memory_space<vmem>>, vector<8x2xf32>,
    %c0_759 = arith.constant 0 : index
    %c252_760 = arith.constant 252 : index
    %506 = vector.load %arg1[%c0_759, %c252_760] : memref<8x256xf32, #tpu.memory_space<vmem>>, vector<8x2xf32>
    %c0_761 = arith.constant 0 : index
    %c506 = arith.constant 506 : index
    %507 = vector.load %arg2[%c0_761, %c506] : memref<8x512xf32, #tpu.memory_space<vmem>>, vector<8x2xf32>
    tpu.vector_store %arg2[%c0_761, %c506], %506 {strides = array<i32>} : memref<8x512xf32, #tpu.memory_space<vmem>>, vector<8x2xf32>,
    %c0_762 = arith.constant 0 : index
    %c222_763 = arith.constant 222 : index
    %508 = vector.load %arg1[%c0_762, %c222_763] : memref<8x256xf32, #tpu.memory_space<vmem>>, vector<8x2xf32>
    %c0_764 = arith.constant 0 : index
    %c508 = arith.constant 508 : index
    %509 = vector.load %arg2[%c0_764, %c508] : memref<8x512xf32, #tpu.memory_space<vmem>>, vector<8x2xf32>
    tpu.vector_store %arg2[%c0_764, %c508], %508 {strides = array<i32>} : memref<8x512xf32, #tpu.memory_space<vmem>>, vector<8x2xf32>,
    %c0_765 = arith.constant 0 : index
    %c254_766 = arith.constant 254 : index
    %510 = vector.load %arg1[%c0_765, %c254_766] : memref<8x256xf32, #tpu.memory_space<vmem>>, vector<8x2xf32>
    %c0_767 = arith.constant 0 : index
    %c510 = arith.constant 510 : index
    %511 = vector.load %arg2[%c0_767, %c510] : memref<8x512xf32, #tpu.memory_space<vmem>>, vector<8x2xf32>
    tpu.vector_store %arg2[%c0_767, %c510], %510 {strides = array<i32>} : memref<8x512xf32, #tpu.memory_space<vmem>>, vector<8x2xf32>,
    return
  }
  func.func @transform_0(%arg0: i32) -> (i32, i32) {
    %c0_i32 = arith.constant 0 : i32
    %c0_i32_0 = arith.constant 0 : i32
    return %arg0, %c0_i32 : i32, i32
  }
  func.func @transform_1(%arg0: i32) -> (i32, i32) {
    %c0_i32 = arith.constant 0 : i32
    %c0_i32_0 = arith.constant 0 : i32
    return %arg0, %c0_i32 : i32, i32
  }
}

</mosaic_0001>

<llo_original>
// kernel: tpu_custom_call.1
$region0: #{tpu_custom_call.1}
  #allocation0 [shape = 'u32[]', space=smem, size = 0x4, offset = 0x4, fixed_abs, tag = 'smem constant byte address 0x4 - core index']
  #allocation1 [shape = 'u32[144,128]{1,0:T(1,128)}', space=vmem, size = 0x12000, scoped, tag = 'internal scratch']
  %s0 = inlined_call_operand.hbm [shape: f32[16,256], index: 0, kind: input, shape index: {}]
  %s1 = inlined_call_operand.hbm [shape: f32[16,512], index: 1, kind: output, shape index: {}]
  %s2 = sld [smem:[#allocation0]]
  $region41: #{tpu_custom_call.1} parent=0
    _
  %s4 = ssub.s32 1, %s2
  %s5 = scalar_select 0, %s4, %s2
  $region1: #{tpu_custom_call.1} parent=0
    #allocation2 [shape = 'u8[16384]{0}', space=vmem, size = 0x4000, scoped, tag = 'input window, operand 0']
    #allocation3 [shape = 's32[2]{0}', space=sflag, size = 0x8, scoped, tag = 'scoped memory for tpu_custom_call.1']
    #allocation4 [shape = 's32[2]{0}', space=sflag, size = 0x8, scoped, tag = 'scoped memory for tpu_custom_call.1']
    #allocation5 [shape = 'u8[32768]{0}', space=vmem, size = 0x8000, scoped, tag = 'output window, operand 0']
    %6 = vsyncpa [#allocation3], 0
    %s7 = scalar_lea.sflag [#allocation3], 1
    %8 = vsyncpa %s7, 0
    %9 = vsyncpa [#allocation4], 0
    %s10 = scalar_lea.sflag [#allocation4], 1
    %11 = vsyncpa %s10, 0
    loop: start=0, step=1, limit=4
    $region2: #{tpu_custom_call.1} parent=1 // loop_pre_header
      _
    $region3: #{tpu_custom_call.1} parent=1 // loop_header
      %s13 = sphi 0, %s17
      %p14 = scmp.ge.s32.totalorder %s13, 4
      %s23 = sphi 0, %s25
      %s26 = sphi 0, %s23
      %s27 = sphi 0, %s26
      %s43 = sphi 0, %s27
      %s49 = sphi 0, %s51
      %s52 = sphi 0, %s49
      %s53 = sphi 0, %s52
      %s69 = sphi 0, %s53
    $region4: #{tpu_custom_call.1} parent=1 // loop_header_branch
      %16 = sbr.rel (%p14) target = $region8
    $region5: #{tpu_custom_call.1} parent=1 // loop_body
      %s18 = ssub.s32 %s13, 1
      %s19 = ssub.s32 %s13, 2
      %s20 = sadd.s32 %s13, 1
      %s21 = ssub.s32 %s13, %s20
      %p22 = scmp.eq.s32.totalorder %s21, 0
      %s24 = sadd.s32 %s23, 1
      %s25 = scalar_select %p22, %s23, %s24
      %p28 = pneg %p22
      %p29 = scmp.eq.s32.totalorder %s13, 1
      %p30 = por %p28, %p29
      %p31 = scmp.ne.s32.totalorder %s23, %s26
      %p32 = scmp.eq.s32.totalorder %s13, 0
      %p33 = por %p31, %p32
      %p34 = scmp.ne.s32.totalorder %s23, %s26
      %p35 = scmp.eq.s32.totalorder %s18, 1
      %p36 = por %p34, %p35
      %p37 = scmp.ne.s32.totalorder %s26, %s27
      %p38 = scmp.eq.s32.totalorder %s18, 0
      %p39 = por %p37, %p38
      %p40 = scmp.ne.s32.totalorder %s26, %s27
      %p41 = scmp.eq.s32.totalorder %s19, 1
      %p42 = por %p40, %p41
      %p44 = scmp.ne.s32.totalorder %s27, %s43
      %p45 = scmp.eq.s32.totalorder %s19, 0
      %p46 = por %p44, %p45
      %s47 = ssub.s32 %s13, %s20
      %p48 = scmp.eq.s32.totalorder %s47, 0
      %s50 = sadd.s32 %s49, 1
      %s51 = scalar_select %p48, %s49, %s50
      %p54 = pneg %p48
      %p55 = scmp.eq.s32.totalorder %s13, 1
      %p56 = por %p54, %p55
      %p57 = scmp.ne.s32.totalorder %s49, %s52
      %p58 = scmp.eq.s32.totalorder %s13, 0
      %p59 = por %p57, %p58
      %p60 = scmp.ne.s32.totalorder %s49, %s52
      %p61 = scmp.eq.s32.totalorder %s18, 1
      %p62 = por %p60, %p61
      %p63 = scmp.ne.s32.totalorder %s52, %s53
      %p64 = scmp.eq.s32.totalorder %s18, 0
      %p65 = por %p63, %p64
      %p66 = scmp.ne.s32.totalorder %s52, %s53
      %p67 = scmp.eq.s32.totalorder %s19, 1
      %p68 = por %p66, %p67
      %p70 = scmp.ne.s32.totalorder %s53, %s69
      %p71 = scmp.eq.s32.totalorder %s19, 0
      %p72 = por %p70, %p71
      %p73 = scmp.le.s32.totalorder 1, %s13
      %p74 = scmp.lt.s32.totalorder %s13, 3
      %p75 = pnand %p73, %p74
      %p76 = pneg %p75
      // Predicated region
      $region9: #{tpu_custom_call.1} parent=5 // pred_check
        _
      $region10: #{tpu_custom_call.1} parent=5 // pred_check_branch
        %78 = sbr.rel (%p75) target = $region12
      $region11: #{tpu_custom_call.1} parent=5 // pred_region
        %s79 = ssub.s32 %s13, 1
      $region12: #{tpu_custom_call.1} parent=5 // pred_fallthru
        _
      %p80 = scmp.lt.s32.totalorder %s13, 2
      // Predicated region
      $region13: #{tpu_custom_call.1} parent=5 // pred_check
        %p81 = pneg %p80
      $region14: #{tpu_custom_call.1} parent=5 // pred_check_branch
        %83 = sbr.rel (%p81) target = $region16
      $region15: #{tpu_custom_call.1} parent=5 // pred_region
        // Predicated region
        $region17: #{tpu_custom_call.1} parent=15 // pred_check
          %p84 = pneg %p33
        $region18: #{tpu_custom_call.1} parent=15 // pred_check_branch
          %86 = sbr.rel (%p84) target = $region20
        $region19: #{tpu_custom_call.1} parent=15 // pred_region
          %s87 = sand.u32 %s23, 1
          %s88 = scalar_lea.sflag [#allocation3], %s87
          %s89 = sand.u32 %s23, 1
          %s90 = smul.addr %s89, 16
          %s91 = scalar_lea.vmem [#allocation2], %s90
          %s93 = ssub.s32 256, 256
          %94 = vsyncadd %s88, %s93
          %s95 = smul.addr %s13, 2
          %s96 = smul.addr %s95, 128
          %s97 = scalar_lea.hbm %s0, %s96
          %s99 = sshll.u32 %s91, 4
          %s100 = int_to_ptr.vmem [resolvable:$true] %s99
          %102 = dma.hbm_to_vmem [thread:$0]  %s97, 256, %s100, %s88
        $region20: #{tpu_custom_call.1} parent=15 // pred_fallthru
          _
      $region16: #{tpu_custom_call.1} parent=5 // pred_fallthru
        _
      %p103 = scmp.le.s32.totalorder 1, %s13
      %p104 = scmp.lt.s32.totalorder %s13, 3
      %p105 = pnand %p103, %p104
      %p106 = pneg %p105
      // Predicated region
      $region21: #{tpu_custom_call.1} parent=5 // pred_check
        _
      $region22: #{tpu_custom_call.1} parent=5 // pred_check_branch
        %108 = sbr.rel (%p105) target = $region24
      $region23: #{tpu_custom_call.1} parent=5 // pred_region
        %s109 = ssub.s32 %s13, 1
        %s110 = sand.u32 %s26, 1
        %s111 = scalar_lea.sflag [#allocation3], %s110
        %s112 = sand.u32 %s26, 1
        %s113 = smul.addr %s112, 16
        %s114 = scalar_lea.vmem [#allocation2], %s113
        // Predicated region
        $region25: #{tpu_custom_call.1} parent=23 // pred_check
          %p115 = pneg %p39
        $region26: #{tpu_custom_call.1} parent=23 // pred_check_branch
          %117 = sbr.rel (%p115) target = $region28
        $region27: #{tpu_custom_call.1} parent=23 // pred_region
          %118 = dma.done %s111, 256
        $region28: #{tpu_custom_call.1} parent=23 // pred_fallthru
          _
        %s119 = sand.u32 %s26, 1
        %s120 = scalar_lea.sflag [#allocation3], %s119
        %s121 = sand.u32 %s26, 1
        %s122 = smul.addr %s121, 16
        %s123 = scalar_lea.vmem [#allocation2], %s122
        %p124 = pneg %p39
        %p125 = pneg %p36
        %p126 = pneg %p65
        %p127 = pneg %p62
        %s128 = sand.u32 %s52, 1
        %s129 = scalar_lea.sflag [#allocation4], %s128
        %s130 = sand.u32 %s52, 1
        %s131 = smul.addr %s130, 32
        %s132 = scalar_lea.vmem [#allocation5], %s131
        %v133 = vld [vmem:[%s114] sm:$0xff]
        %vm134 = vcmask 15360
        %135 = vst.msk [vmem:[%s132] sm:$0xff] %vm134, %v133
        %v136 = vld [vmem:[%s114] sm:$0xff]
        %138 = vrot.lane.b32.xlu0 %v136, 114
        %v139 = vpop.permute.xlu0 %138
        %vm141 = vcmask 31760
        %142 = vst.msk [vmem:[%s132] sm:$0xff] %vm141, %v139
        %v143 = vld [vmem:[%s114] sm:$0xff]
        %145 = vrot.lane.b32.xlu0 %v143, 2
        %v146 = vpop.permute.xlu0 %145
        %vm148 = vcmask 48160
        %149 = vst.msk [vmem:[%s132] sm:$0xff] %vm148, %v146
        %v150 = vld [vmem:[%s114] sm:$0xff]
        %152 = vrot.lane.b32.xlu0 %v150, 116
        %v153 = vpop.permute.xlu0 %152
        %vm155 = vcmask 64560
        %156 = vst.msk [vmem:[%s132] sm:$0xff] %vm155, %v153
        %v157 = vld [vmem:[%s114] sm:$0xff]
        %159 = vrot.lane.b32.xlu0 %v157, 72
        %v160 = vpop.permute.xlu0 %159
        %vm162 = vcmask 80960
        %163 = vst.msk [vmem:[%s132] sm:$0xff] %vm162, %v160
        %v164 = vld [vmem:[%s114] sm:$0xff]
        %166 = vrot.lane.b32.xlu0 %v164, 58
        %v167 = vpop.permute.xlu0 %166
        %vm169 = vcmask 97360
        %170 = vst.msk [vmem:[%s132] sm:$0xff] %vm169, %v167
        %v171 = vld [vmem:[%s114] sm:$0xff]
        %173 = vrot.lane.b32.xlu0 %v171, 74
        %v174 = vpop.permute.xlu0 %173
        %vm176 = vcmask 113760
        %177 = vst.msk [vmem:[%s132] sm:$0xff] %vm176, %v174
        %v178 = vld [vmem:[%s114] sm:$0xff]
        %180 = vrot.lane.b32.xlu0 %v178, 60
        %v181 = vpop.permute.xlu0 %180
        %vm183 = vcmask 130160
        %184 = vst.msk [vmem:[%s132] sm:$0xff] %vm183, %v181
        %v185 = vld [vmem:[%s114] sm:$0xff]
        %187 = vrot.lane.b32.xlu0 %v185, 12
        %v188 = vpop.permute.xlu0 %187
        %vm190 = vcmask 146560
        %191 = vst.msk [vmem:[%s132] sm:$0xff] %vm190, %v188
        %v192 = vld [vmem:[%s114] sm:$0xff]
        %194 = vrot.lane.b32.xlu0 %v192, 126
        %v195 = vpop.permute.xlu0 %194
        %vm197 = vcmask 162960
        %198 = vst.msk [vmem:[%s132] sm:$0xff] %vm197, %v195
        %v199 = vld [vmem:[%s114] sm:$0xff]
        %201 = vrot.lane.b32.xlu0 %v199, 14
        %v202 = vpop.permute.xlu0 %201
        %vm204 = vcmask 179360
        %205 = vst.msk [vmem:[%s132] sm:$0xff] %vm204, %v202
        %v206 = vld [vmem:[%s114] sm:$0xff]
        %vm207 = vcmask 195760
        %208 = vst.msk [vmem:[%s132] sm:$0xff] %vm207, %v206
        %v209 = vld [vmem:[%s114] sm:$0xff]
        %211 = vrot.lane.b32.xlu0 %v209, 84
        %v212 = vpop.permute.xlu0 %211
        %vm214 = vcmask 212160
        %215 = vst.msk [vmem:[%s132] sm:$0xff] %vm214, %v212
        %v216 = vld [vmem:[%s114] sm:$0xff]
        %218 = vrot.lane.b32.xlu0 %v216, 70
        %v219 = vpop.permute.xlu0 %218
        %vm221 = vcmask 228560
        %222 = vst.msk [vmem:[%s132] sm:$0xff] %vm221, %v219
        %v223 = vld [vmem:[%s114] sm:$0xff]
        %225 = vrot.lane.b32.xlu0 %v223, 86
        %v226 = vpop.permute.xlu0 %225
        %vm228 = vcmask 244960
        %229 = vst.msk [vmem:[%s132] sm:$0xff] %vm228, %v226
        %v230 = vld [vmem:[%s114] sm:$0xff]
        %232 = vrot.lane.b32.xlu0 %v230, 72
        %v233 = vpop.permute.xlu0 %232
        %vm235 = vcmask 261360
        %236 = vst.msk [vmem:[%s132] sm:$0xff] %vm235, %v233
        %v237 = vld [vmem:[%s114] sm:$0xff]
        %239 = vrot.lane.b32.xlu0 %v237, 24
        %v240 = vpop.permute.xlu0 %239
        %vm242 = vcmask 277760
        %243 = vst.msk [vmem:[%s132] sm:$0xff] %vm242, %v240
        %v244 = vld [vmem:[%s114] sm:$0xff]
        %246 = vrot.lane.b32.xlu0 %v244, 10
        %v247 = vpop.permute.xlu0 %246
        %vm249 = vcmask 294160
        %250 = vst.msk [vmem:[%s132] sm:$0xff] %vm249, %v247
        %v251 = vld [vmem:[%s114] sm:$0xff]
        %253 = vrot.lane.b32.xlu0 %v251, 26
        %v254 = vpop.permute.xlu0 %253
        %vm256 = vcmask 310560
        %257 = vst.msk [vmem:[%s132] sm:$0xff] %vm256, %v254
        %v258 = vld [vmem:[%s114] sm:$0xff]
        %260 = vrot.lane.b32.xlu0 %v258, 12
        %v261 = vpop.permute.xlu0 %260
        %vm263 = vcmask 326960
        %264 = vst.msk [vmem:[%s132] sm:$0xff] %vm263, %v261
        %v265 = vld [vmem:[%s114] sm:$0xff]
        %267 = vrot.lane.b32.xlu0 %v265, 96
        %v268 = vpop.permute.xlu0 %267
        %vm270 = vcmask 343360
        %271 = vst.msk [vmem:[%s132] sm:$0xff] %vm270, %v268
        %v272 = vld [vmem:[%s114] sm:$0xff]
        %274 = vrot.lane.b32.xlu0 %v272, 82
        %v275 = vpop.permute.xlu0 %274
        %vm277 = vcmask 359760
        %278 = vst.msk [vmem:[%s132] sm:$0xff] %vm277, %v275
        %v279 = vld [vmem:[%s114] sm:$0xff]
        %281 = vrot.lane.b32.xlu0 %v279, 98
        %v282 = vpop.permute.xlu0 %281
        %vm284 = vcmask 376160
        %285 = vst.msk [vmem:[%s132] sm:$0xff] %vm284, %v282
        %v286 = vld [vmem:[%s114] sm:$0xff]
        %288 = vrot.lane.b32.xlu0 %v286, 84
        %v289 = vpop.permute.xlu0 %288
        %vm291 = vcmask 392560
        %292 = vst.msk [vmem:[%s132] sm:$0xff] %vm291, %v289
        %v293 = vld [vmem:[%s114] sm:$0xff]
        %295 = vrot.lane.b32.xlu0 %v293, 36
        %v296 = vpop.permute.xlu0 %295
        %vm298 = vcmask 408960
        %299 = vst.msk [vmem:[%s132] sm:$0xff] %vm298, %v296
        %v300 = vld [vmem:[%s114] sm:$0xff]
        %302 = vrot.lane.b32.xlu0 %v300, 22
        %v303 = vpop.permute.xlu0 %302
        %vm305 = vcmask 425360
        %306 = vst.msk [vmem:[%s132] sm:$0xff] %vm305, %v303
        %v307 = vld [vmem:[%s114] sm:$0xff]
        %309 = vrot.lane.b32.xlu0 %v307, 38
        %v310 = vpop.permute.xlu0 %309
        %vm312 = vcmask 441760
        %313 = vst.msk [vmem:[%s132] sm:$0xff] %vm312, %v310
        %v314 = vld [vmem:[%s114] sm:$0xff]
        %316 = vrot.lane.b32.xlu0 %v314, 24
        %v317 = vpop.permute.xlu0 %316
        %vm319 = vcmask 458160
        %320 = vst.msk [vmem:[%s132] sm:$0xff] %vm319, %v317
        %v321 = vld [vmem:[%s114] sm:$0xff]
        %323 = vrot.lane.b32.xlu0 %v321, 108
        %v324 = vpop.permute.xlu0 %323
        %vm326 = vcmask 474560
        %327 = vst.msk [vmem:[%s132] sm:$0xff] %vm326, %v324
        %v328 = vld [vmem:[%s114] sm:$0xff]
        %330 = vrot.lane.b32.xlu0 %v328, 94
        %v331 = vpop.permute.xlu0 %330
        %vm333 = vcmask 490960
        %334 = vst.msk [vmem:[%s132] sm:$0xff] %vm333, %v331
        %v335 = vld [vmem:[%s114] sm:$0xff]
        %337 = vrot.lane.b32.xlu0 %v335, 110
        %v338 = vpop.permute.xlu0 %337
        %vm340 = vcmask 507360
        %341 = vst.msk [vmem:[%s132] sm:$0xff] %vm340, %v338
        %v342 = vld [vmem:[%s114] sm:$0xff]
        %344 = vrot.lane.b32.xlu0 %v342, 96
        %v345 = vpop.permute.xlu0 %344
        %vm347 = vcmask 523760
        %348 = vst.msk [vmem:[%s132] sm:$0xff] %vm347, %v345
        %v349 = vld [vmem:[%s114] sm:$0xff]
        %351 = vrot.lane.b32.xlu0 %v349, 32
        %v352 = vpop.permute.xlu0 %351
        %vm354 = vcmask 540160
        %355 = vst.msk [vmem:[%s132] sm:$0xff] %vm354, %v352
        %v356 = vld [vmem:[%s114] sm:$0xff]
        %358 = vrot.lane.b32.xlu0 %v356, 18
        %v359 = vpop.permute.xlu0 %358
        %vm361 = vcmask 556560
        %362 = vst.msk [vmem:[%s132] sm:$0xff] %vm361, %v359
        %v363 = vld [vmem:[%s114] sm:$0xff]
        %365 = vrot.lane.b32.xlu0 %v363, 34
        %v366 = vpop.permute.xlu0 %365
        %vm368 = vcmask 572960
        %369 = vst.msk [vmem:[%s132] sm:$0xff] %vm368, %v366
        %v370 = vld [vmem:[%s114] sm:$0xff]
        %372 = vrot.lane.b32.xlu0 %v370, 20
        %v373 = vpop.permute.xlu0 %372
        %vm375 = vcmask 589360
        %376 = vst.msk [vmem:[%s132] sm:$0xff] %vm375, %v373
        %v377 = vld [vmem:[%s114] sm:$0xff]
        %379 = vrot.lane.b32.xlu0 %v377, 104
        %v380 = vpop.permute.xlu0 %379
        %vm382 = vcmask 605760
        %383 = vst.msk [vmem:[%s132] sm:$0xff] %vm382, %v380
        %v384 = vld [vmem:[%s114] sm:$0xff]
        %386 = vrot.lane.b32.xlu0 %v384, 90
        %v387 = vpop.permute.xlu0 %386
        %vm389 = vcmask 622160
        %390 = vst.msk [vmem:[%s132] sm:$0xff] %vm389, %v387
        %v391 = vld [vmem:[%s114] sm:$0xff]
        %393 = vrot.lane.b32.xlu0 %v391, 106
        %v394 = vpop.permute.xlu0 %393
        %vm396 = vcmask 638560
        %397 = vst.msk [vmem:[%s132] sm:$0xff] %vm396, %v394
        %v398 = vld [vmem:[%s114] sm:$0xff]
        %400 = vrot.lane.b32.xlu0 %v398, 92
        %v401 = vpop.permute.xlu0 %400
        %vm403 = vcmask 654960
        %404 = vst.msk [vmem:[%s132] sm:$0xff] %vm403, %v401
        %v405 = vld [vmem:[%s114] sm:$0xff]
        %407 = vrot.lane.b32.xlu0 %v405, 44
        %v408 = vpop.permute.xlu0 %407
        %vm410 = vcmask 671360
        %411 = vst.msk [vmem:[%s132] sm:$0xff] %vm410, %v408
        %v412 = vld [vmem:[%s114] sm:$0xff]
        %414 = vrot.lane.b32.xlu0 %v412, 30
        %v415 = vpop.permute.xlu0 %414
        %vm417 = vcmask 687760
        %418 = vst.msk [vmem:[%s132] sm:$0xff] %vm417, %v415
        %v419 = vld [vmem:[%s114] sm:$0xff]
        %421 = vrot.lane.b32.xlu0 %v419, 46
        %v422 = vpop.permute.xlu0 %421
        %vm424 = vcmask 704160
        %425 = vst.msk [vmem:[%s132] sm:$0xff] %vm424, %v422
        %v426 = vld [vmem:[%s114] sm:$0xff]
        %428 = vrot.lane.b32.xlu0 %v426, 32
        %v429 = vpop.permute.xlu0 %428
        %vm431 = vcmask 720560
        %432 = vst.msk [vmem:[%s132] sm:$0xff] %vm431, %v429
        %v433 = vld [vmem:[%s114] sm:$0xff]
        %435 = vrot.lane.b32.xlu0 %v433, 116
        %v436 = vpop.permute.xlu0 %435
        %vm438 = vcmask 736960
        %439 = vst.msk [vmem:[%s132] sm:$0xff] %vm438, %v436
        %v440 = vld [vmem:[%s114] sm:$0xff]
        %442 = vrot.lane.b32.xlu0 %v440, 102
        %v443 = vpop.permute.xlu0 %442
        %vm445 = vcmask 753360
        %446 = vst.msk [vmem:[%s132] sm:$0xff] %vm445, %v443
        %v447 = vld [vmem:[%s114] sm:$0xff]
        %449 = vrot.lane.b32.xlu0 %v447, 118
        %v450 = vpop.permute.xlu0 %449
        %vm452 = vcmask 769760
        %453 = vst.msk [vmem:[%s132] sm:$0xff] %vm452, %v450
        %v454 = vld [vmem:[%s114] sm:$0xff]
        %456 = vrot.lane.b32.xlu0 %v454, 104
        %v457 = vpop.permute.xlu0 %456
        %vm459 = vcmask 786160
        %460 = vst.msk [vmem:[%s132] sm:$0xff] %vm459, %v457
        %v461 = vld [vmem:[%s114] sm:$0xff]
        %463 = vrot.lane.b32.xlu0 %v461, 56
        %v464 = vpop.permute.xlu0 %463
        %vm466 = vcmask 802560
        %467 = vst.msk [vmem:[%s132] sm:$0xff] %vm466, %v464
        %v468 = vld [vmem:[%s114] sm:$0xff]
        %470 = vrot.lane.b32.xlu0 %v468, 42
        %v471 = vpop.permute.xlu0 %470
        %vm473 = vcmask 818960
        %474 = vst.msk [vmem:[%s132] sm:$0xff] %vm473, %v471
        %v475 = vld [vmem:[%s114] sm:$0xff]
        %477 = vrot.lane.b32.xlu0 %v475, 58
        %v478 = vpop.permute.xlu0 %477
        %vm480 = vcmask 835360
        %481 = vst.msk [vmem:[%s132] sm:$0xff] %vm480, %v478
        %v482 = vld [vmem:[%s114] sm:$0xff]
        %484 = vrot.lane.b32.xlu0 %v482, 44
        %v485 = vpop.permute.xlu0 %484
        %vm487 = vcmask 851760
        %488 = vst.msk [vmem:[%s132] sm:$0xff] %vm487, %v485
        %v489 = vld [vmem:[%s114] sm:$0xff]
        %vm490 = vcmask 868160
        %491 = vst.msk [vmem:[%s132] sm:$0xff] %vm490, %v489
        %v492 = vld [vmem:[%s114] sm:$0xff]
        %494 = vrot.lane.b32.xlu0 %v492, 114
        %v495 = vpop.permute.xlu0 %494
        %vm497 = vcmask 884560
        %498 = vst.msk [vmem:[%s132] sm:$0xff] %vm497, %v495
        %v499 = vld [vmem:[%s114] sm:$0xff]
        %501 = vrot.lane.b32.xlu0 %v499, 2
        %v502 = vpop.permute.xlu0 %501
        %vm504 = vcmask 900960
        %505 = vst.msk [vmem:[%s132] sm:$0xff] %vm504, %v502
        %v506 = vld [vmem:[%s114] sm:$0xff]
        %508 = vrot.lane.b32.xlu0 %v506, 116
        %v509 = vpop.permute.xlu0 %508
        %vm511 = vcmask 917360
        %512 = vst.msk [vmem:[%s132] sm:$0xff] %vm511, %v509
        %v513 = vld [vmem:[%s114] sm:$0xff]
        %515 = vrot.lane.b32.xlu0 %v513, 68
        %v516 = vpop.permute.xlu0 %515
        %vm518 = vcmask 933760
        %519 = vst.msk [vmem:[%s132] sm:$0xff] %vm518, %v516
        %v520 = vld [vmem:[%s114] sm:$0xff]
        %522 = vrot.lane.b32.xlu0 %v520, 54
        %v523 = vpop.permute.xlu0 %522
        %vm525 = vcmask 950160
        %526 = vst.msk [vmem:[%s132] sm:$0xff] %vm525, %v523
        %v527 = vld [vmem:[%s114] sm:$0xff]
        %529 = vrot.lane.b32.xlu0 %v527, 70
        %v530 = vpop.permute.xlu0 %529
        %vm532 = vcmask 966560
        %533 = vst.msk [vmem:[%s132] sm:$0xff] %vm532, %v530
        %v534 = vld [vmem:[%s114] sm:$0xff]
        %536 = vrot.lane.b32.xlu0 %v534, 56
        %v537 = vpop.permute.xlu0 %536
        %vm539 = vcmask 982960
        %540 = vst.msk [vmem:[%s132] sm:$0xff] %vm539, %v537
        %v541 = vld [vmem:[%s114] sm:$0xff]
        %543 = vrot.lane.b32.xlu0 %v541, 12
        %v544 = vpop.permute.xlu0 %543
        %vm546 = vcmask 999360
        %547 = vst.msk [vmem:[%s132] sm:$0xff] %vm546, %v544
        %v548 = vld [vmem:[%s114] sm:$0xff]
        %550 = vrot.lane.b32.xlu0 %v548, 126
        %v551 = vpop.permute.xlu0 %550
        %vm553 = vcmask 1015760
        %554 = vst.msk [vmem:[%s132] sm:$0xff] %vm553, %v551
        %v555 = vld [vmem:[%s114] sm:$0xff]
        %557 = vrot.lane.b32.xlu0 %v555, 14
        %v558 = vpop.permute.xlu0 %557
        %vm560 = vcmask 1032160
        %561 = vst.msk [vmem:[%s132] sm:$0xff] %vm560, %v558
        %v562 = vld [vmem:[%s114] sm:$0xff]
        %vm563 = vcmask 1048560
        %564 = vst.msk [vmem:[%s132] sm:$0xff] %vm563, %v562
        %v565 = vld [vmem:[%s114 + $0x8] sm:$0xff]
        %566 = vst.msk [vmem:[%s132 + $0x8] sm:$0xff] %vm134, %v565
        %v567 = vld [vmem:[%s114 + $0x8] sm:$0xff]
        %569 = vrot.lane.b32.xlu0 %v567, 114
        %v570 = vpop.permute.xlu0 %569
        %572 = vst.msk [vmem:[%s132 + $0x8] sm:$0xff] %vm141, %v570
        %v573 = vld [vmem:[%s114 + $0x8] sm:$0xff]
        %575 = vrot.lane.b32.xlu0 %v573, 2
        %v576 = vpop.permute.xlu0 %575
        %578 = vst.msk [vmem:[%s132 + $0x8] sm:$0xff] %vm148, %v576
        %v579 = vld [vmem:[%s114 + $0x8] sm:$0xff]
        %581 = vrot.lane.b32.xlu0 %v579, 116
        %v582 = vpop.permute.xlu0 %581
        %584 = vst.msk [vmem:[%s132 + $0x8] sm:$0xff] %vm155, %v582
        %v585 = vld [vmem:[%s114 + $0x8] sm:$0xff]
        %587 = vrot.lane.b32.xlu0 %v585, 72
        %v588 = vpop.permute.xlu0 %587
        %590 = vst.msk [vmem:[%s132 + $0x8] sm:$0xff] %vm162, %v588
        %v591 = vld [vmem:[%s114 + $0x8] sm:$0xff]
        %593 = vrot.lane.b32.xlu0 %v591, 58
        %v594 = vpop.permute.xlu0 %593
        %596 = vst.msk [vmem:[%s132 + $0x8] sm:$0xff] %vm169, %v594
        %v597 = vld [vmem:[%s114 + $0x8] sm:$0xff]
        %599 = vrot.lane.b32.xlu0 %v597, 74
        %v600 = vpop.permute.xlu0 %599
        %602 = vst.msk [vmem:[%s132 + $0x8] sm:$0xff] %vm176, %v600
        %v603 = vld [vmem:[%s114 + $0x8] sm:$0xff]
        %605 = vrot.lane.b32.xlu0 %v603, 60
        %v606 = vpop.permute.xlu0 %605
        %608 = vst.msk [vmem:[%s132 + $0x8] sm:$0xff] %vm183, %v606
        %v609 = vld [vmem:[%s114 + $0x8] sm:$0xff]
        %611 = vrot.lane.b32.xlu0 %v609, 12
        %v612 = vpop.permute.xlu0 %611
        %614 = vst.msk [vmem:[%s132 + $0x8] sm:$0xff] %vm190, %v612
        %v615 = vld [vmem:[%s114 + $0x8] sm:$0xff]
        %617 = vrot.lane.b32.xlu0 %v615, 126
        %v618 = vpop.permute.xlu0 %617
        %620 = vst.msk [vmem:[%s132 + $0x8] sm:$0xff] %vm197, %v618
        %v621 = vld [vmem:[%s114 + $0x8] sm:$0xff]
        %623 = vrot.lane.b32.xlu0 %v621, 14
        %v624 = vpop.permute.xlu0 %623
        %626 = vst.msk [vmem:[%s132 + $0x8] sm:$0xff] %vm204, %v624
        %v627 = vld [vmem:[%s114 + $0x8] sm:$0xff]
        %628 = vst.msk [vmem:[%s132 + $0x8] sm:$0xff] %vm207, %v627
        %v629 = vld [vmem:[%s114 + $0x8] sm:$0xff]
        %631 = vrot.lane.b32.xlu0 %v629, 84
        %v632 = vpop.permute.xlu0 %631
        %634 = vst.msk [vmem:[%s132 + $0x8] sm:$0xff] %vm214, %v632
        %v635 = vld [vmem:[%s114 + $0x8] sm:$0xff]
        %637 = vrot.lane.b32.xlu0 %v635, 70
        %v638 = vpop.permute.xlu0 %637
        %640 = vst.msk [vmem:[%s132 + $0x8] sm:$0xff] %vm221, %v638
        %v641 = vld [vmem:[%s114 + $0x8] sm:$0xff]
        %643 = vrot.lane.b32.xlu0 %v641, 86
        %v644 = vpop.permute.xlu0 %643
        %646 = vst.msk [vmem:[%s132 + $0x8] sm:$0xff] %vm228, %v644
        %v647 = vld [vmem:[%s114 + $0x8] sm:$0xff]
        %649 = vrot.lane.b32.xlu0 %v647, 72
        %v650 = vpop.permute.xlu0 %649
        %652 = vst.msk [vmem:[%s132 + $0x8] sm:$0xff] %vm235, %v650
        %v653 = vld [vmem:[%s114 + $0x8] sm:$0xff]
        %655 = vrot.lane.b32.xlu0 %v653, 24
        %v656 = vpop.permute.xlu0 %655
        %658 = vst.msk [vmem:[%s132 + $0x8] sm:$0xff] %vm242, %v656
        %v659 = vld [vmem:[%s114 + $0x8] sm:$0xff]
        %661 = vrot.lane.b32.xlu0 %v659, 10
        %v662 = vpop.permute.xlu0 %661
        %664 = vst.msk [vmem:[%s132 + $0x8] sm:$0xff] %vm249, %v662
        %v665 = vld [vmem:[%s114 + $0x8] sm:$0xff]
        %667 = vrot.lane.b32.xlu0 %v665, 26
        %v668 = vpop.permute.xlu0 %667
        %670 = vst.msk [vmem:[%s132 + $0x8] sm:$0xff] %vm256, %v668
        %v671 = vld [vmem:[%s114 + $0x8] sm:$0xff]
        %673 = vrot.lane.b32.xlu0 %v671, 12
        %v674 = vpop.permute.xlu0 %673
        %676 = vst.msk [vmem:[%s132 + $0x8] sm:$0xff] %vm263, %v674
        %v677 = vld [vmem:[%s114 + $0x8] sm:$0xff]
        %679 = vrot.lane.b32.xlu0 %v677, 96
        %v680 = vpop.permute.xlu0 %679
        %682 = vst.msk [vmem:[%s132 + $0x8] sm:$0xff] %vm270, %v680
        %v683 = vld [vmem:[%s114 + $0x8] sm:$0xff]
        %685 = vrot.lane.b32.xlu0 %v683, 82
        %v686 = vpop.permute.xlu0 %685
        %688 = vst.msk [vmem:[%s132 + $0x8] sm:$0xff] %vm277, %v686
        %v689 = vld [vmem:[%s114 + $0x8] sm:$0xff]
        %691 = vrot.lane.b32.xlu0 %v689, 98
        %v692 = vpop.permute.xlu0 %691
        %694 = vst.msk [vmem:[%s132 + $0x8] sm:$0xff] %vm284, %v692
        %v695 = vld [vmem:[%s114 + $0x8] sm:$0xff]
        %697 = vrot.lane.b32.xlu0 %v695, 84
        %v698 = vpop.permute.xlu0 %697
        %700 = vst.msk [vmem:[%s132 + $0x8] sm:$0xff] %vm291, %v698
        %v701 = vld [vmem:[%s114 + $0x8] sm:$0xff]
        %703 = vrot.lane.b32.xlu0 %v701, 36
        %v704 = vpop.permute.xlu0 %703
        %706 = vst.msk [vmem:[%s132 + $0x8] sm:$0xff] %vm298, %v704
        %v707 = vld [vmem:[%s114 + $0x8] sm:$0xff]
        %709 = vrot.lane.b32.xlu0 %v707, 22
        %v710 = vpop.permute.xlu0 %709
        %712 = vst.msk [vmem:[%s132 + $0x8] sm:$0xff] %vm305, %v710
        %v713 = vld [vmem:[%s114 + $0x8] sm:$0xff]
        %715 = vrot.lane.b32.xlu0 %v713, 38
        %v716 = vpop.permute.xlu0 %715
        %718 = vst.msk [vmem:[%s132 + $0x8] sm:$0xff] %vm312, %v716
        %v719 = vld [vmem:[%s114 + $0x8] sm:$0xff]
        %721 = vrot.lane.b32.xlu0 %v719, 24
        %v722 = vpop.permute.xlu0 %721
        %724 = vst.msk [vmem:[%s132 + $0x8] sm:$0xff] %vm319, %v722
        %v725 = vld [vmem:[%s114 + $0x8] sm:$0xff]
        %727 = vrot.lane.b32.xlu0 %v725, 108
        %v728 = vpop.permute.xlu0 %727
        %730 = vst.msk [vmem:[%s132 + $0x8] sm:$0xff] %vm326, %v728
        %v731 = vld [vmem:[%s114 + $0x8] sm:$0xff]
        %733 = vrot.lane.b32.xlu0 %v731, 94
        %v734 = vpop.permute.xlu0 %733
        %736 = vst.msk [vmem:[%s132 + $0x8] sm:$0xff] %vm333, %v734
        %v737 = vld [vmem:[%s114 + $0x8] sm:$0xff]
        %739 = vrot.lane.b32.xlu0 %v737, 110
        %v740 = vpop.permute.xlu0 %739
        %742 = vst.msk [vmem:[%s132 + $0x8] sm:$0xff] %vm340, %v740
        %v743 = vld [vmem:[%s114 + $0x8] sm:$0xff]
        %745 = vrot.lane.b32.xlu0 %v743, 96
        %v746 = vpop.permute.xlu0 %745
        %748 = vst.msk [vmem:[%s132 + $0x8] sm:$0xff] %vm347, %v746
        %v749 = vld [vmem:[%s114 + $0x8] sm:$0xff]
        %751 = vrot.lane.b32.xlu0 %v749, 32
        %v752 = vpop.permute.xlu0 %751
        %754 = vst.msk [vmem:[%s132 + $0x8] sm:$0xff] %vm354, %v752
        %v755 = vld [vmem:[%s114 + $0x8] sm:$0xff]
        %757 = vrot.lane.b32.xlu0 %v755, 18
        %v758 = vpop.permute.xlu0 %757
        %760 = vst.msk [vmem:[%s132 + $0x8] sm:$0xff] %vm361, %v758
        %v761 = vld [vmem:[%s114 + $0x8] sm:$0xff]
        %763 = vrot.lane.b32.xlu0 %v761, 34
        %v764 = vpop.permute.xlu0 %763
        %766 = vst.msk [vmem:[%s132 + $0x8] sm:$0xff] %vm368, %v764
        %v767 = vld [vmem:[%s114 + $0x8] sm:$0xff]
        %769 = vrot.lane.b32.xlu0 %v767, 20
        %v770 = vpop.permute.xlu0 %769
        %772 = vst.msk [vmem:[%s132 + $0x8] sm:$0xff] %vm375, %v770
        %v773 = vld [vmem:[%s114 + $0x8] sm:$0xff]
        %775 = vrot.lane.b32.xlu0 %v773, 104
        %v776 = vpop.permute.xlu0 %775
        %778 = vst.msk [vmem:[%s132 + $0x8] sm:$0xff] %vm382, %v776
        %v779 = vld [vmem:[%s114 + $0x8] sm:$0xff]
        %781 = vrot.lane.b32.xlu0 %v779, 90
        %v782 = vpop.permute.xlu0 %781
        %784 = vst.msk [vmem:[%s132 + $0x8] sm:$0xff] %vm389, %v782
        %v785 = vld [vmem:[%s114 + $0x8] sm:$0xff]
        %787 = vrot.lane.b32.xlu0 %v785, 106
        %v788 = vpop.permute.xlu0 %787
        %790 = vst.msk [vmem:[%s132 + $0x8] sm:$0xff] %vm396, %v788
        %v791 = vld [vmem:[%s114 + $0x8] sm:$0xff]
        %793 = vrot.lane.b32.xlu0 %v791, 92
        %v794 = vpop.permute.xlu0 %793
        %796 = vst.msk [vmem:[%s132 + $0x8] sm:$0xff] %vm403, %v794
        %v797 = vld [vmem:[%s114 + $0x8] sm:$0xff]
        %799 = vrot.lane.b32.xlu0 %v797, 44
        %v800 = vpop.permute.xlu0 %799
        %802 = vst.msk [vmem:[%s132 + $0x8] sm:$0xff] %vm410, %v800
        %v803 = vld [vmem:[%s114 + $0x8] sm:$0xff]
        %805 = vrot.lane.b32.xlu0 %v803, 30
        %v806 = vpop.permute.xlu0 %805
        %808 = vst.msk [vmem:[%s132 + $0x8] sm:$0xff] %vm417, %v806
        %v809 = vld [vmem:[%s114 + $0x8] sm:$0xff]
        %811 = vrot.lane.b32.xlu0 %v809, 46
        %v812 = vpop.permute.xlu0 %811
        %814 = vst.msk [vmem:[%s132 + $0x8] sm:$0xff] %vm424, %v812
        %v815 = vld [vmem:[%s114 + $0x8] sm:$0xff]
        %817 = vrot.lane.b32.xlu0 %v815, 32
        %v818 = vpop.permute.xlu0 %817
        %820 = vst.msk [vmem:[%s132 + $0x8] sm:$0xff] %vm431, %v818
        %v821 = vld [vmem:[%s114 + $0x8] sm:$0xff]
        %823 = vrot.lane.b32.xlu0 %v821, 116
        %v824 = vpop.permute.xlu0 %823
        %826 = vst.msk [vmem:[%s132 + $0x8] sm:$0xff] %vm438, %v824
        %v827 = vld [vmem:[%s114 + $0x8] sm:$0xff]
        %829 = vrot.lane.b32.xlu0 %v827, 102
        %v830 = vpop.permute.xlu0 %829
        %832 = vst.msk [vmem:[%s132 + $0x8] sm:$0xff] %vm445, %v830
        %v833 = vld [vmem:[%s114 + $0x8] sm:$0xff]
        %835 = vrot.lane.b32.xlu0 %v833, 118
        %v836 = vpop.permute.xlu0 %835
        %838 = vst.msk [vmem:[%s132 + $0x8] sm:$0xff] %vm452, %v836
        %v839 = vld [vmem:[%s114 + $0x8] sm:$0xff]
        %841 = vrot.lane.b32.xlu0 %v839, 104
        %v842 = vpop.permute.xlu0 %841
        %844 = vst.msk [vmem:[%s132 + $0x8] sm:$0xff] %vm459, %v842
        %v845 = vld [vmem:[%s114 + $0x8] sm:$0xff]
        %847 = vrot.lane.b32.xlu0 %v845, 56
        %v848 = vpop.permute.xlu0 %847
        %850 = vst.msk [vmem:[%s132 + $0x8] sm:$0xff] %vm466, %v848
        %v851 = vld [vmem:[%s114 + $0x8] sm:$0xff]
        %853 = vrot.lane.b32.xlu0 %v851, 42
        %v854 = vpop.permute.xlu0 %853
        %856 = vst.msk [vmem:[%s132 + $0x8] sm:$0xff] %vm473, %v854
        %v857 = vld [vmem:[%s114 + $0x8] sm:$0xff]
        %859 = vrot.lane.b32.xlu0 %v857, 58
        %v860 = vpop.permute.xlu0 %859
        %862 = vst.msk [vmem:[%s132 + $0x8] sm:$0xff] %vm480, %v860
        %v863 = vld [vmem:[%s114 + $0x8] sm:$0xff]
        %865 = vrot.lane.b32.xlu0 %v863, 44
        %v866 = vpop.permute.xlu0 %865
        %868 = vst.msk [vmem:[%s132 + $0x8] sm:$0xff] %vm487, %v866
        %v869 = vld [vmem:[%s114 + $0x8] sm:$0xff]
        %870 = vst.msk [vmem:[%s132 + $0x8] sm:$0xff] %vm490, %v869
        %v871 = vld [vmem:[%s114 + $0x8] sm:$0xff]
        %873 = vrot.lane.b32.xlu0 %v871, 114
        %v874 = vpop.permute.xlu0 %873
        %876 = vst.msk [vmem:[%s132 + $0x8] sm:$0xff] %vm497, %v874
        %v877 = vld [vmem:[%s114 + $0x8] sm:$0xff]
        %879 = vrot.lane.b32.xlu0 %v877, 2
        %v880 = vpop.permute.xlu0 %879
        %882 = vst.msk [vmem:[%s132 + $0x8] sm:$0xff] %vm504, %v880
        %v883 = vld [vmem:[%s114 + $0x8] sm:$0xff]
        %885 = vrot.lane.b32.xlu0 %v883, 116
        %v886 = vpop.permute.xlu0 %885
        %888 = vst.msk [vmem:[%s132 + $0x8] sm:$0xff] %vm511, %v886
        %v889 = vld [vmem:[%s114 + $0x8] sm:$0xff]
        %891 = vrot.lane.b32.xlu0 %v889, 68
        %v892 = vpop.permute.xlu0 %891
        %894 = vst.msk [vmem:[%s132 + $0x8] sm:$0xff] %vm518, %v892
        %v895 = vld [vmem:[%s114 + $0x8] sm:$0xff]
        %897 = vrot.lane.b32.xlu0 %v895, 54
        %v898 = vpop.permute.xlu0 %897
        %900 = vst.msk [vmem:[%s132 + $0x8] sm:$0xff] %vm525, %v898
        %v901 = vld [vmem:[%s114 + $0x8] sm:$0xff]
        %903 = vrot.lane.b32.xlu0 %v901, 70
        %v904 = vpop.permute.xlu0 %903
        %906 = vst.msk [vmem:[%s132 + $0x8] sm:$0xff] %vm532, %v904
        %v907 = vld [vmem:[%s114 + $0x8] sm:$0xff]
        %909 = vrot.lane.b32.xlu0 %v907, 56
        %v910 = vpop.permute.xlu0 %909
        %912 = vst.msk [vmem:[%s132 + $0x8] sm:$0xff] %vm539, %v910
        %v913 = vld [vmem:[%s114 + $0x8] sm:$0xff]
        %915 = vrot.lane.b32.xlu0 %v913, 12
        %v916 = vpop.permute.xlu0 %915
        %918 = vst.msk [vmem:[%s132 + $0x8] sm:$0xff] %vm546, %v916
        %v919 = vld [vmem:[%s114 + $0x8] sm:$0xff]
        %921 = vrot.lane.b32.xlu0 %v919, 126
        %v922 = vpop.permute.xlu0 %921
        %924 = vst.msk [vmem:[%s132 + $0x8] sm:$0xff] %vm553, %v922
        %v925 = vld [vmem:[%s114 + $0x8] sm:$0xff]
        %927 = vrot.lane.b32.xlu0 %v925, 14
        %v928 = vpop.permute.xlu0 %927
        %930 = vst.msk [vmem:[%s132 + $0x8] sm:$0xff] %vm560, %v928
        %v931 = vld [vmem:[%s114 + $0x8] sm:$0xff]
        %932 = vst.msk [vmem:[%s132 + $0x8] sm:$0xff] %vm563, %v931
        %v933 = vld [vmem:[%s114] sm:$0xff]
        %934 = vst.msk [vmem:[%s132 + $0x10] sm:$0xff] %vm134, %v933
        %v935 = vld [vmem:[%s114] sm:$0xff]
        %937 = vrot.lane.b32.xlu0 %v935, 98
        %v938 = vpop.permute.xlu0 %937
        %940 = vst.msk [vmem:[%s132 + $0x10] sm:$0xff] %vm141, %v938
        %v941 = vld [vmem:[%s114] sm:$0xff]
        %943 = vrot.lane.b32.xlu0 %v941, 2
        %v944 = vpop.permute.xlu0 %943
        %946 = vst.msk [vmem:[%s132 + $0x10] sm:$0xff] %vm148, %v944
        %v947 = vld [vmem:[%s114] sm:$0xff]
        %949 = vrot.lane.b32.xlu0 %v947, 100
        %v950 = vpop.permute.xlu0 %949
        %952 = vst.msk [vmem:[%s132 + $0x10] sm:$0xff] %vm155, %v950
        %v953 = vld [vmem:[%s114 + $0x8] sm:$0xff]
        %955 = vrot.lane.b32.xlu0 %v953, 8
        %v956 = vpop.permute.xlu0 %955
        %958 = vst.msk [vmem:[%s132 + $0x10] sm:$0xff] %vm162, %v956
        %v959 = vld [vmem:[%s114 + $0x8] sm:$0xff]
        %961 = vrot.lane.b32.xlu0 %v959, 106
        %v962 = vpop.permute.xlu0 %961
        %964 = vst.msk [vmem:[%s132 + $0x10] sm:$0xff] %vm169, %v962
        %v965 = vld [vmem:[%s114 + $0x8] sm:$0xff]
        %967 = vrot.lane.b32.xlu0 %v965, 10
        %v968 = vpop.permute.xlu0 %967
        %970 = vst.msk [vmem:[%s132 + $0x10] sm:$0xff] %vm176, %v968
        %v971 = vld [vmem:[%s114 + $0x8] sm:$0xff]
        %973 = vrot.lane.b32.xlu0 %v971, 108
        %v974 = vpop.permute.xlu0 %973
        %976 = vst.msk [vmem:[%s132 + $0x10] sm:$0xff] %vm183, %v974
        %v977 = vld [vmem:[%s114] sm:$0xff]
        %979 = vrot.lane.b32.xlu0 %v977, 12
        %v980 = vpop.permute.xlu0 %979
        %982 = vst.msk [vmem:[%s132 + $0x10] sm:$0xff] %vm190, %v980
        %v983 = vld [vmem:[%s114] sm:$0xff]
        %985 = vrot.lane.b32.xlu0 %v983, 110
        %v986 = vpop.permute.xlu0 %985
        %988 = vst.msk [vmem:[%s132 + $0x10] sm:$0xff] %vm197, %v986
        %v989 = vld [vmem:[%s114] sm:$0xff]
        %991 = vrot.lane.b32.xlu0 %v989, 14
        %v992 = vpop.permute.xlu0 %991
        %994 = vst.msk [vmem:[%s132 + $0x10] sm:$0xff] %vm204, %v992
        %v995 = vld [vmem:[%s114] sm:$0xff]
        %997 = vrot.lane.b32.xlu0 %v995, 112
        %v998 = vpop.permute.xlu0 %997
        %1000 = vst.msk [vmem:[%s132 + $0x10] sm:$0xff] %vm207, %v998
        %v1001 = vld [vmem:[%s114 + $0x8] sm:$0xff]
        %1003 = vrot.lane.b32.xlu0 %v1001, 20
        %v1004 = vpop.permute.xlu0 %1003
        %1006 = vst.msk [vmem:[%s132 + $0x10] sm:$0xff] %vm214, %v1004
        %v1007 = vld [vmem:[%s114 + $0x8] sm:$0xff]
        %1009 = vrot.lane.b32.xlu0 %v1007, 118
        %v1010 = vpop.permute.xlu0 %1009
        %1012 = vst.msk [vmem:[%s132 + $0x10] sm:$0xff] %vm221, %v1010
        %v1013 = vld [vmem:[%s114 + $0x8] sm:$0xff]
        %1015 = vrot.lane.b32.xlu0 %v1013, 22
        %v1016 = vpop.permute.xlu0 %1015
        %1018 = vst.msk [vmem:[%s132 + $0x10] sm:$0xff] %vm228, %v1016
        %v1019 = vld [vmem:[%s114 + $0x8] sm:$0xff]
        %1021 = vrot.lane.b32.xlu0 %v1019, 120
        %v1022 = vpop.permute.xlu0 %1021
        %1024 = vst.msk [vmem:[%s132 + $0x10] sm:$0xff] %vm235, %v1022
        %v1025 = vld [vmem:[%s114] sm:$0xff]
        %1027 = vrot.lane.b32.xlu0 %v1025, 24
        %v1028 = vpop.permute.xlu0 %1027
        %1030 = vst.msk [vmem:[%s132 + $0x10] sm:$0xff] %vm242, %v1028
        %v1031 = vld [vmem:[%s114] sm:$0xff]
        %1033 = vrot.lane.b32.xlu0 %v1031, 122
        %v1034 = vpop.permute.xlu0 %1033
        %1036 = vst.msk [vmem:[%s132 + $0x10] sm:$0xff] %vm249, %v1034
        %v1037 = vld [vmem:[%s114] sm:$0xff]
        %1039 = vrot.lane.b32.xlu0 %v1037, 26
        %v1040 = vpop.permute.xlu0 %1039
        %1042 = vst.msk [vmem:[%s132 + $0x10] sm:$0xff] %vm256, %v1040
        %v1043 = vld [vmem:[%s114] sm:$0xff]
        %1045 = vrot.lane.b32.xlu0 %v1043, 124
        %v1046 = vpop.permute.xlu0 %1045
        %1048 = vst.msk [vmem:[%s132 + $0x10] sm:$0xff] %vm263, %v1046
        %v1049 = vld [vmem:[%s114 + $0x8] sm:$0xff]
        %1051 = vrot.lane.b32.xlu0 %v1049, 32
        %v1052 = vpop.permute.xlu0 %1051
        %1054 = vst.msk [vmem:[%s132 + $0x10] sm:$0xff] %vm270, %v1052
        %v1055 = vld [vmem:[%s114 + $0x8] sm:$0xff]
        %1057 = vrot.lane.b32.xlu0 %v1055, 2
        %v1058 = vpop.permute.xlu0 %1057
        %1060 = vst.msk [vmem:[%s132 + $0x10] sm:$0xff] %vm277, %v1058
        %v1061 = vld [vmem:[%s114 + $0x8] sm:$0xff]
        %1063 = vrot.lane.b32.xlu0 %v1061, 34
        %v1064 = vpop.permute.xlu0 %1063
        %1066 = vst.msk [vmem:[%s132 + $0x10] sm:$0xff] %vm284, %v1064
        %v1067 = vld [vmem:[%s114 + $0x8] sm:$0xff]
        %1069 = vrot.lane.b32.xlu0 %v1067, 4
        %v1070 = vpop.permute.xlu0 %1069
        %1072 = vst.msk [vmem:[%s132 + $0x10] sm:$0xff] %vm291, %v1070
        %v1073 = vld [vmem:[%s114] sm:$0xff]
        %1075 = vrot.lane.b32.xlu0 %v1073, 36
        %v1076 = vpop.permute.xlu0 %1075
        %1078 = vst.msk [vmem:[%s132 + $0x10] sm:$0xff] %vm298, %v1076
        %v1079 = vld [vmem:[%s114] sm:$0xff]
        %1081 = vrot.lane.b32.xlu0 %v1079, 6
        %v1082 = vpop.permute.xlu0 %1081
        %1084 = vst.msk [vmem:[%s132 + $0x10] sm:$0xff] %vm305, %v1082
        %v1085 = vld [vmem:[%s114] sm:$0xff]
        %1087 = vrot.lane.b32.xlu0 %v1085, 38
        %v1088 = vpop.permute.xlu0 %1087
        %1090 = vst.msk [vmem:[%s132 + $0x10] sm:$0xff] %vm312, %v1088
        %v1091 = vld [vmem:[%s114] sm:$0xff]
        %1093 = vrot.lane.b32.xlu0 %v1091, 8
        %v1094 = vpop.permute.xlu0 %1093
        %1096 = vst.msk [vmem:[%s132 + $0x10] sm:$0xff] %vm319, %v1094
        %v1097 = vld [vmem:[%s114 + $0x8] sm:$0xff]
        %1099 = vrot.lane.b32.xlu0 %v1097, 44
        %v1100 = vpop.permute.xlu0 %1099
        %1102 = vst.msk [vmem:[%s132 + $0x10] sm:$0xff] %vm326, %v1100
        %v1103 = vld [vmem:[%s114 + $0x8] sm:$0xff]
        %1105 = vrot.lane.b32.xlu0 %v1103, 14
        %v1106 = vpop.permute.xlu0 %1105
        %1108 = vst.msk [vmem:[%s132 + $0x10] sm:$0xff] %vm333, %v1106
        %v1109 = vld [vmem:[%s114 + $0x8] sm:$0xff]
        %1111 = vrot.lane.b32.xlu0 %v1109, 46
        %v1112 = vpop.permute.xlu0 %1111
        %1114 = vst.msk [vmem:[%s132 + $0x10] sm:$0xff] %vm340, %v1112
        %v1115 = vld [vmem:[%s114 + $0x8] sm:$0xff]
        %1117 = vrot.lane.b32.xlu0 %v1115, 16
        %v1118 = vpop.permute.xlu0 %1117
        %1120 = vst.msk [vmem:[%s132 + $0x10] sm:$0xff] %vm347, %v1118
        %v1121 = vld [vmem:[%s114] sm:$0xff]
        %1123 = vrot.lane.b32.xlu0 %v1121, 48
        %v1124 = vpop.permute.xlu0 %1123
        %1126 = vst.msk [vmem:[%s132 + $0x10] sm:$0xff] %vm354, %v1124
        %v1127 = vld [vmem:[%s114] sm:$0xff]
        %1129 = vrot.lane.b32.xlu0 %v1127, 18
        %v1130 = vpop.permute.xlu0 %1129
        %1132 = vst.msk [vmem:[%s132 + $0x10] sm:$0xff] %vm361, %v1130
        %v1133 = vld [vmem:[%s114] sm:$0xff]
        %1135 = vrot.lane.b32.xlu0 %v1133, 50
        %v1136 = vpop.permute.xlu0 %1135
        %1138 = vst.msk [vmem:[%s132 + $0x10] sm:$0xff] %vm368, %v1136
        %v1139 = vld [vmem:[%s114] sm:$0xff]
        %1141 = vrot.lane.b32.xlu0 %v1139, 20
        %v1142 = vpop.permute.xlu0 %1141
        %1144 = vst.msk [vmem:[%s132 + $0x10] sm:$0xff] %vm375, %v1142
        %v1145 = vld [vmem:[%s114 + $0x8] sm:$0xff]
        %1147 = vrot.lane.b32.xlu0 %v1145, 56
        %v1148 = vpop.permute.xlu0 %1147
        %1150 = vst.msk [vmem:[%s132 + $0x10] sm:$0xff] %vm382, %v1148
        %v1151 = vld [vmem:[%s114 + $0x8] sm:$0xff]
        %1153 = vrot.lane.b32.xlu0 %v1151, 26
        %v1154 = vpop.permute.xlu0 %1153
        %1156 = vst.msk [vmem:[%s132 + $0x10] sm:$0xff] %vm389, %v1154
        %v1157 = vld [vmem:[%s114 + $0x8] sm:$0xff]
        %1159 = vrot.lane.b32.xlu0 %v1157, 58
        %v1160 = vpop.permute.xlu0 %1159
        %1162 = vst.msk [vmem:[%s132 + $0x10] sm:$0xff] %vm396, %v1160
        %v1163 = vld [vmem:[%s114 + $0x8] sm:$0xff]
        %1165 = vrot.lane.b32.xlu0 %v1163, 28
        %v1166 = vpop.permute.xlu0 %1165
        %1168 = vst.msk [vmem:[%s132 + $0x10] sm:$0xff] %vm403, %v1166
        %v1169 = vld [vmem:[%s114] sm:$0xff]
        %1171 = vrot.lane.b32.xlu0 %v1169, 60
        %v1172 = vpop.permute.xlu0 %1171
        %1174 = vst.msk [vmem:[%s132 + $0x10] sm:$0xff] %vm410, %v1172
        %v1175 = vld [vmem:[%s114] sm:$0xff]
        %1177 = vrot.lane.b32.xlu0 %v1175, 30
        %v1178 = vpop.permute.xlu0 %1177
        %1180 = vst.msk [vmem:[%s132 + $0x10] sm:$0xff] %vm417, %v1178
        %v1181 = vld [vmem:[%s114] sm:$0xff]
        %1183 = vrot.lane.b32.xlu0 %v1181, 62
        %v1184 = vpop.permute.xlu0 %1183
        %1186 = vst.msk [vmem:[%s132 + $0x10] sm:$0xff] %vm424, %v1184
        %v1187 = vld [vmem:[%s114] sm:$0xff]
        %1189 = vrot.lane.b32.xlu0 %v1187, 32
        %v1190 = vpop.permute.xlu0 %1189
        %1192 = vst.msk [vmem:[%s132 + $0x10] sm:$0xff] %vm431, %v1190
        %v1193 = vld [vmem:[%s114 + $0x8] sm:$0xff]
        %1195 = vrot.lane.b32.xlu0 %v1193, 68
        %v1196 = vpop.permute.xlu0 %1195
        %1198 = vst.msk [vmem:[%s132 + $0x10] sm:$0xff] %vm438, %v1196
        %v1199 = vld [vmem:[%s114 + $0x8] sm:$0xff]
        %1201 = vrot.lane.b32.xlu0 %v1199, 38
        %v1202 = vpop.permute.xlu0 %1201
        %1204 = vst.msk [vmem:[%s132 + $0x10] sm:$0xff] %vm445, %v1202
        %v1205 = vld [vmem:[%s114 + $0x8] sm:$0xff]
        %1207 = vrot.lane.b32.xlu0 %v1205, 70
        %v1208 = vpop.permute.xlu0 %1207
        %1210 = vst.msk [vmem:[%s132 + $0x10] sm:$0xff] %vm452, %v1208
        %v1211 = vld [vmem:[%s114 + $0x8] sm:$0xff]
        %1213 = vrot.lane.b32.xlu0 %v1211, 40
        %v1214 = vpop.permute.xlu0 %1213
        %1216 = vst.msk [vmem:[%s132 + $0x10] sm:$0xff] %vm459, %v1214
        %v1217 = vld [vmem:[%s114] sm:$0xff]
        %1219 = vrot.lane.b32.xlu0 %v1217, 72
        %v1220 = vpop.permute.xlu0 %1219
        %1222 = vst.msk [vmem:[%s132 + $0x10] sm:$0xff] %vm466, %v1220
        %v1223 = vld [vmem:[%s114] sm:$0xff]
        %1225 = vrot.lane.b32.xlu0 %v1223, 42
        %v1226 = vpop.permute.xlu0 %1225
        %1228 = vst.msk [vmem:[%s132 + $0x10] sm:$0xff] %vm473, %v1226
        %v1229 = vld [vmem:[%s114] sm:$0xff]
        %1231 = vrot.lane.b32.xlu0 %v1229, 74
        %v1232 = vpop.permute.xlu0 %1231
        %1234 = vst.msk [vmem:[%s132 + $0x10] sm:$0xff] %vm480, %v1232
        %v1235 = vld [vmem:[%s114] sm:$0xff]
        %1237 = vrot.lane.b32.xlu0 %v1235, 44
        %v1238 = vpop.permute.xlu0 %1237
        %1240 = vst.msk [vmem:[%s132 + $0x10] sm:$0xff] %vm487, %v1238
        %v1241 = vld [vmem:[%s114 + $0x8] sm:$0xff]
        %1243 = vrot.lane.b32.xlu0 %v1241, 80
        %v1244 = vpop.permute.xlu0 %1243
        %1246 = vst.msk [vmem:[%s132 + $0x10] sm:$0xff] %vm490, %v1244
        %v1247 = vld [vmem:[%s114 + $0x8] sm:$0xff]
        %1249 = vrot.lane.b32.xlu0 %v1247, 50
        %v1250 = vpop.permute.xlu0 %1249
        %1252 = vst.msk [vmem:[%s132 + $0x10] sm:$0xff] %vm497, %v1250
        %v1253 = vld [vmem:[%s114 + $0x8] sm:$0xff]
        %1255 = vrot.lane.b32.xlu0 %v1253, 82
        %v1256 = vpop.permute.xlu0 %1255
        %1258 = vst.msk [vmem:[%s132 + $0x10] sm:$0xff] %vm504, %v1256
        %v1259 = vld [vmem:[%s114 + $0x8] sm:$0xff]
        %1261 = vrot.lane.b32.xlu0 %v1259, 52
        %v1262 = vpop.permute.xlu0 %1261
        %1264 = vst.msk [vmem:[%s132 + $0x10] sm:$0xff] %vm511, %v1262
        %v1265 = vld [vmem:[%s114] sm:$0xff]
        %1267 = vrot.lane.b32.xlu0 %v1265, 84
        %v1268 = vpop.permute.xlu0 %1267
        %1270 = vst.msk [vmem:[%s132 + $0x10] sm:$0xff] %vm518, %v1268
        %v1271 = vld [vmem:[%s114] sm:$0xff]
        %1273 = vrot.lane.b32.xlu0 %v1271, 54
        %v1274 = vpop.permute.xlu0 %1273
        %1276 = vst.msk [vmem:[%s132 + $0x10] sm:$0xff] %vm525, %v1274
        %v1277 = vld [vmem:[%s114] sm:$0xff]
        %1279 = vrot.lane.b32.xlu0 %v1277, 86
        %v1280 = vpop.permute.xlu0 %1279
        %1282 = vst.msk [vmem:[%s132 + $0x10] sm:$0xff] %vm532, %v1280
        %v1283 = vld [vmem:[%s114] sm:$0xff]
        %1285 = vrot.lane.b32.xlu0 %v1283, 56
        %v1286 = vpop.permute.xlu0 %1285
        %1288 = vst.msk [vmem:[%s132 + $0x10] sm:$0xff] %vm539, %v1286
        %v1289 = vld [vmem:[%s114 + $0x8] sm:$0xff]
        %1291 = vrot.lane.b32.xlu0 %v1289, 92
        %v1292 = vpop.permute.xlu0 %1291
        %1294 = vst.msk [vmem:[%s132 + $0x10] sm:$0xff] %vm546, %v1292
        %v1295 = vld [vmem:[%s114 + $0x8] sm:$0xff]
        %1297 = vrot.lane.b32.xlu0 %v1295, 62
        %v1298 = vpop.permute.xlu0 %1297
        %1300 = vst.msk [vmem:[%s132 + $0x10] sm:$0xff] %vm553, %v1298
        %v1301 = vld [vmem:[%s114 + $0x8] sm:$0xff]
        %1303 = vrot.lane.b32.xlu0 %v1301, 94
        %v1304 = vpop.permute.xlu0 %1303
        %1306 = vst.msk [vmem:[%s132 + $0x10] sm:$0xff] %vm560, %v1304
        %v1307 = vld [vmem:[%s114 + $0x8] sm:$0xff]
        %1309 = vrot.lane.b32.xlu0 %v1307, 64
        %v1310 = vpop.permute.xlu0 %1309
        %1312 = vst.msk [vmem:[%s132 + $0x10] sm:$0xff] %vm563, %v1310
        %v1313 = vld [vmem:[%s114] sm:$0xff]
        %1315 = vrot.lane.b32.xlu0 %v1313, 64
        %v1316 = vpop.permute.xlu0 %1315
        %1318 = vst.msk [vmem:[%s132 + $0x18] sm:$0xff] %vm134, %v1316
        %v1319 = vld [vmem:[%s114] sm:$0xff]
        %1321 = vrot.lane.b32.xlu0 %v1319, 34
        %v1322 = vpop.permute.xlu0 %1321
        %1324 = vst.msk [vmem:[%s132 + $0x18] sm:$0xff] %vm141, %v1322
        %v1325 = vld [vmem:[%s114] sm:$0xff]
        %1327 = vrot.lane.b32.xlu0 %v1325, 66
        %v1328 = vpop.permute.xlu0 %1327
        %1330 = vst.msk [vmem:[%s132 + $0x18] sm:$0xff] %vm148, %v1328
        %v1331 = vld [vmem:[%s114] sm:$0xff]
        %1333 = vrot.lane.b32.xlu0 %v1331, 36
        %v1334 = vpop.permute.xlu0 %1333
        %1336 = vst.msk [vmem:[%s132 + $0x18] sm:$0xff] %vm155, %v1334
        %v1337 = vld [vmem:[%s114 + $0x8] sm:$0xff]
        %1339 = vrot.lane.b32.xlu0 %v1337, 72
        %v1340 = vpop.permute.xlu0 %1339
        %1342 = vst.msk [vmem:[%s132 + $0x18] sm:$0xff] %vm162, %v1340
        %v1343 = vld [vmem:[%s114 + $0x8] sm:$0xff]
        %1345 = vrot.lane.b32.xlu0 %v1343, 42
        %v1346 = vpop.permute.xlu0 %1345
        %1348 = vst.msk [vmem:[%s132 + $0x18] sm:$0xff] %vm169, %v1346
        %v1349 = vld [vmem:[%s114 + $0x8] sm:$0xff]
        %1351 = vrot.lane.b32.xlu0 %v1349, 74
        %v1352 = vpop.permute.xlu0 %1351
        %1354 = vst.msk [vmem:[%s132 + $0x18] sm:$0xff] %vm176, %v1352
        %v1355 = vld [vmem:[%s114 + $0x8] sm:$0xff]
        %1357 = vrot.lane.b32.xlu0 %v1355, 44
        %v1358 = vpop.permute.xlu0 %1357
        %1360 = vst.msk [vmem:[%s132 + $0x18] sm:$0xff] %vm183, %v1358
        %v1361 = vld [vmem:[%s114] sm:$0xff]
        %1363 = vrot.lane.b32.xlu0 %v1361, 76
        %v1364 = vpop.permute.xlu0 %1363
        %1366 = vst.msk [vmem:[%s132 + $0x18] sm:$0xff] %vm190, %v1364
        %v1367 = vld [vmem:[%s114] sm:$0xff]
        %1369 = vrot.lane.b32.xlu0 %v1367, 46
        %v1370 = vpop.permute.xlu0 %1369
        %1372 = vst.msk [vmem:[%s132 + $0x18] sm:$0xff] %vm197, %v1370
        %v1373 = vld [vmem:[%s114] sm:$0xff]
        %1375 = vrot.lane.b32.xlu0 %v1373, 78
        %v1376 = vpop.permute.xlu0 %1375
        %1378 = vst.msk [vmem:[%s132 + $0x18] sm:$0xff] %vm204, %v1376
        %v1379 = vld [vmem:[%s114] sm:$0xff]
        %1381 = vrot.lane.b32.xlu0 %v1379, 48
        %v1382 = vpop.permute.xlu0 %1381
        %1384 = vst.msk [vmem:[%s132 + $0x18] sm:$0xff] %vm207, %v1382
        %v1385 = vld [vmem:[%s114 + $0x8] sm:$0xff]
        %1387 = vrot.lane.b32.xlu0 %v1385, 84
        %v1388 = vpop.permute.xlu0 %1387
        %1390 = vst.msk [vmem:[%s132 + $0x18] sm:$0xff] %vm214, %v1388
        %v1391 = vld [vmem:[%s114 + $0x8] sm:$0xff]
        %1393 = vrot.lane.b32.xlu0 %v1391, 54
        %v1394 = vpop.permute.xlu0 %1393
        %1396 = vst.msk [vmem:[%s132 + $0x18] sm:$0xff] %vm221, %v1394
        %v1397 = vld [vmem:[%s114 + $0x8] sm:$0xff]
        %1399 = vrot.lane.b32.xlu0 %v1397, 86
        %v1400 = vpop.permute.xlu0 %1399
        %1402 = vst.msk [vmem:[%s132 + $0x18] sm:$0xff] %vm228, %v1400
        %v1403 = vld [vmem:[%s114 + $0x8] sm:$0xff]
        %1405 = vrot.lane.b32.xlu0 %v1403, 56
        %v1406 = vpop.permute.xlu0 %1405
        %1408 = vst.msk [vmem:[%s132 + $0x18] sm:$0xff] %vm235, %v1406
        %v1409 = vld [vmem:[%s114] sm:$0xff]
        %1411 = vrot.lane.b32.xlu0 %v1409, 88
        %v1412 = vpop.permute.xlu0 %1411
        %1414 = vst.msk [vmem:[%s132 + $0x18] sm:$0xff] %vm242, %v1412
        %v1415 = vld [vmem:[%s114] sm:$0xff]
        %1417 = vrot.lane.b32.xlu0 %v1415, 58
        %v1418 = vpop.permute.xlu0 %1417
        %1420 = vst.msk [vmem:[%s132 + $0x18] sm:$0xff] %vm249, %v1418
        %v1421 = vld [vmem:[%s114] sm:$0xff]
        %1423 = vrot.lane.b32.xlu0 %v1421, 90
        %v1424 = vpop.permute.xlu0 %1423
        %1426 = vst.msk [vmem:[%s132 + $0x18] sm:$0xff] %vm256, %v1424
        %v1427 = vld [vmem:[%s114] sm:$0xff]
        %1429 = vrot.lane.b32.xlu0 %v1427, 60
        %v1430 = vpop.permute.xlu0 %1429
        %1432 = vst.msk [vmem:[%s132 + $0x18] sm:$0xff] %vm263, %v1430
        %v1433 = vld [vmem:[%s114 + $0x8] sm:$0xff]
        %1435 = vrot.lane.b32.xlu0 %v1433, 96
        %v1436 = vpop.permute.xlu0 %1435
        %1438 = vst.msk [vmem:[%s132 + $0x18] sm:$0xff] %vm270, %v1436
        %v1439 = vld [vmem:[%s114 + $0x8] sm:$0xff]
        %1441 = vrot.lane.b32.xlu0 %v1439, 66
        %v1442 = vpop.permute.xlu0 %1441
        %1444 = vst.msk [vmem:[%s132 + $0x18] sm:$0xff] %vm277, %v1442
        %v1445 = vld [vmem:[%s114 + $0x8] sm:$0xff]
        %1447 = vrot.lane.b32.xlu0 %v1445, 98
        %v1448 = vpop.permute.xlu0 %1447
        %1450 = vst.msk [vmem:[%s132 + $0x18] sm:$0xff] %vm284, %v1448
        %v1451 = vld [vmem:[%s114 + $0x8] sm:$0xff]
        %1453 = vrot.lane.b32.xlu0 %v1451, 68
        %v1454 = vpop.permute.xlu0 %1453
        %1456 = vst.msk [vmem:[%s132 + $0x18] sm:$0xff] %vm291, %v1454
        %v1457 = vld [vmem:[%s114] sm:$0xff]
        %1459 = vrot.lane.b32.xlu0 %v1457, 100
        %v1460 = vpop.permute.xlu0 %1459
        %1462 = vst.msk [vmem:[%s132 + $0x18] sm:$0xff] %vm298, %v1460
        %v1463 = vld [vmem:[%s114] sm:$0xff]
        %1465 = vrot.lane.b32.xlu0 %v1463, 70
        %v1466 = vpop.permute.xlu0 %1465
        %1468 = vst.msk [vmem:[%s132 + $0x18] sm:$0xff] %vm305, %v1466
        %v1469 = vld [vmem:[%s114] sm:$0xff]
        %1471 = vrot.lane.b32.xlu0 %v1469, 102
        %v1472 = vpop.permute.xlu0 %1471
        %1474 = vst.msk [vmem:[%s132 + $0x18] sm:$0xff] %vm312, %v1472
        %v1475 = vld [vmem:[%s114] sm:$0xff]
        %1477 = vrot.lane.b32.xlu0 %v1475, 72
        %v1478 = vpop.permute.xlu0 %1477
        %1480 = vst.msk [vmem:[%s132 + $0x18] sm:$0xff] %vm319, %v1478
        %v1481 = vld [vmem:[%s114 + $0x8] sm:$0xff]
        %1483 = vrot.lane.b32.xlu0 %v1481, 108
        %v1484 = vpop.permute.xlu0 %1483
        %1486 = vst.msk [vmem:[%s132 + $0x18] sm:$0xff] %vm326, %v1484
        %v1487 = vld [vmem:[%s114 + $0x8] sm:$0xff]
        %1489 = vrot.lane.b32.xlu0 %v1487, 78
        %v1490 = vpop.permute.xlu0 %1489
        %1492 = vst.msk [vmem:[%s132 + $0x18] sm:$0xff] %vm333, %v1490
        %v1493 = vld [vmem:[%s114 + $0x8] sm:$0xff]
        %1495 = vrot.lane.b32.xlu0 %v1493, 110
        %v1496 = vpop.permute.xlu0 %1495
        %1498 = vst.msk [vmem:[%s132 + $0x18] sm:$0xff] %vm340, %v1496
        %v1499 = vld [vmem:[%s114 + $0x8] sm:$0xff]
        %1501 = vrot.lane.b32.xlu0 %v1499, 80
        %v1502 = vpop.permute.xlu0 %1501
        %1504 = vst.msk [vmem:[%s132 + $0x18] sm:$0xff] %vm347, %v1502
        %v1505 = vld [vmem:[%s114] sm:$0xff]
        %1507 = vrot.lane.b32.xlu0 %v1505, 112
        %v1508 = vpop.permute.xlu0 %1507
        %1510 = vst.msk [vmem:[%s132 + $0x18] sm:$0xff] %vm354, %v1508
        %v1511 = vld [vmem:[%s114] sm:$0xff]
        %1513 = vrot.lane.b32.xlu0 %v1511, 82
        %v1514 = vpop.permute.xlu0 %1513
        %1516 = vst.msk [vmem:[%s132 + $0x18] sm:$0xff] %vm361, %v1514
        %v1517 = vld [vmem:[%s114] sm:$0xff]
        %1519 = vrot.lane.b32.xlu0 %v1517, 114
        %v1520 = vpop.permute.xlu0 %1519
        %1522 = vst.msk [vmem:[%s132 + $0x18] sm:$0xff] %vm368, %v1520
        %v1523 = vld [vmem:[%s114] sm:$0xff]
        %1525 = vrot.lane.b32.xlu0 %v1523, 84
        %v1526 = vpop.permute.xlu0 %1525
        %1528 = vst.msk [vmem:[%s132 + $0x18] sm:$0xff] %vm375, %v1526
        %v1529 = vld [vmem:[%s114 + $0x8] sm:$0xff]
        %1531 = vrot.lane.b32.xlu0 %v1529, 120
        %v1532 = vpop.permute.xlu0 %1531
        %1534 = vst.msk [vmem:[%s132 + $0x18] sm:$0xff] %vm382, %v1532
        %v1535 = vld [vmem:[%s114 + $0x8] sm:$0xff]
        %1537 = vrot.lane.b32.xlu0 %v1535, 90
        %v1538 = vpop.permute.xlu0 %1537
        %1540 = vst.msk [vmem:[%s132 + $0x18] sm:$0xff] %vm389, %v1538
        %v1541 = vld [vmem:[%s114 + $0x8] sm:$0xff]
        %1543 = vrot.lane.b32.xlu0 %v1541, 122
        %v1544 = vpop.permute.xlu0 %1543
        %1546 = vst.msk [vmem:[%s132 + $0x18] sm:$0xff] %vm396, %v1544
        %v1547 = vld [vmem:[%s114 + $0x8] sm:$0xff]
        %1549 = vrot.lane.b32.xlu0 %v1547, 92
        %v1550 = vpop.permute.xlu0 %1549
        %1552 = vst.msk [vmem:[%s132 + $0x18] sm:$0xff] %vm403, %v1550
        %v1553 = vld [vmem:[%s114] sm:$0xff]
        %1555 = vrot.lane.b32.xlu0 %v1553, 124
        %v1556 = vpop.permute.xlu0 %1555
        %1558 = vst.msk [vmem:[%s132 + $0x18] sm:$0xff] %vm410, %v1556
        %v1559 = vld [vmem:[%s114] sm:$0xff]
        %1561 = vrot.lane.b32.xlu0 %v1559, 94
        %v1562 = vpop.permute.xlu0 %1561
        %1564 = vst.msk [vmem:[%s132 + $0x18] sm:$0xff] %vm417, %v1562
        %v1565 = vld [vmem:[%s114] sm:$0xff]
        %1567 = vrot.lane.b32.xlu0 %v1565, 126
        %v1568 = vpop.permute.xlu0 %1567
        %1570 = vst.msk [vmem:[%s132 + $0x18] sm:$0xff] %vm424, %v1568
        %v1571 = vld [vmem:[%s114] sm:$0xff]
        %1573 = vrot.lane.b32.xlu0 %v1571, 96
        %v1574 = vpop.permute.xlu0 %1573
        %1576 = vst.msk [vmem:[%s132 + $0x18] sm:$0xff] %vm431, %v1574
        %v1577 = vld [vmem:[%s114 + $0x8] sm:$0xff]
        %1579 = vrot.lane.b32.xlu0 %v1577, 4
        %v1580 = vpop.permute.xlu0 %1579
        %1582 = vst.msk [vmem:[%s132 + $0x18] sm:$0xff] %vm438, %v1580
        %v1583 = vld [vmem:[%s114 + $0x8] sm:$0xff]
        %1585 = vrot.lane.b32.xlu0 %v1583, 102
        %v1586 = vpop.permute.xlu0 %1585
        %1588 = vst.msk [vmem:[%s132 + $0x18] sm:$0xff] %vm445, %v1586
        %v1589 = vld [vmem:[%s114 + $0x8] sm:$0xff]
        %1591 = vrot.lane.b32.xlu0 %v1589, 6
        %v1592 = vpop.permute.xlu0 %1591
        %1594 = vst.msk [vmem:[%s132 + $0x18] sm:$0xff] %vm452, %v1592
        %v1595 = vld [vmem:[%s114 + $0x8] sm:$0xff]
        %1597 = vrot.lane.b32.xlu0 %v1595, 104
        %v1598 = vpop.permute.xlu0 %1597
        %1600 = vst.msk [vmem:[%s132 + $0x18] sm:$0xff] %vm459, %v1598
        %v1601 = vld [vmem:[%s114] sm:$0xff]
        %1603 = vrot.lane.b32.xlu0 %v1601, 8
        %v1604 = vpop.permute.xlu0 %1603
        %1606 = vst.msk [vmem:[%s132 + $0x18] sm:$0xff] %vm466, %v1604
        %v1607 = vld [vmem:[%s114] sm:$0xff]
        %1609 = vrot.lane.b32.xlu0 %v1607, 106
        %v1610 = vpop.permute.xlu0 %1609
        %1612 = vst.msk [vmem:[%s132 + $0x18] sm:$0xff] %vm473, %v1610
        %v1613 = vld [vmem:[%s114] sm:$0xff]
        %1615 = vrot.lane.b32.xlu0 %v1613, 10
        %v1616 = vpop.permute.xlu0 %1615
        %1618 = vst.msk [vmem:[%s132 + $0x18] sm:$0xff] %vm480, %v1616
        %v1619 = vld [vmem:[%s114] sm:$0xff]
        %1621 = vrot.lane.b32.xlu0 %v1619, 108
        %v1622 = vpop.permute.xlu0 %1621
        %1624 = vst.msk [vmem:[%s132 + $0x18] sm:$0xff] %vm487, %v1622
        %v1625 = vld [vmem:[%s114 + $0x8] sm:$0xff]
        %1627 = vrot.lane.b32.xlu0 %v1625, 16
        %v1628 = vpop.permute.xlu0 %1627
        %1630 = vst.msk [vmem:[%s132 + $0x18] sm:$0xff] %vm490, %v1628
        %v1631 = vld [vmem:[%s114 + $0x8] sm:$0xff]
        %1633 = vrot.lane.b32.xlu0 %v1631, 114
        %v1634 = vpop.permute.xlu0 %1633
        %1636 = vst.msk [vmem:[%s132 + $0x18] sm:$0xff] %vm497, %v1634
        %v1637 = vld [vmem:[%s114 + $0x8] sm:$0xff]
        %1639 = vrot.lane.b32.xlu0 %v1637, 18
        %v1640 = vpop.permute.xlu0 %1639
        %1642 = vst.msk [vmem:[%s132 + $0x18] sm:$0xff] %vm504, %v1640
        %v1643 = vld [vmem:[%s114 + $0x8] sm:$0xff]
        %1645 = vrot.lane.b32.xlu0 %v1643, 116
        %v1646 = vpop.permute.xlu0 %1645
        %1648 = vst.msk [vmem:[%s132 + $0x18] sm:$0xff] %vm511, %v1646
        %v1649 = vld [vmem:[%s114] sm:$0xff]
        %1651 = vrot.lane.b32.xlu0 %v1649, 20
        %v1652 = vpop.permute.xlu0 %1651
        %1654 = vst.msk [vmem:[%s132 + $0x18] sm:$0xff] %vm518, %v1652
        %v1655 = vld [vmem:[%s114] sm:$0xff]
        %1657 = vrot.lane.b32.xlu0 %v1655, 118
        %v1658 = vpop.permute.xlu0 %1657
        %1660 = vst.msk [vmem:[%s132 + $0x18] sm:$0xff] %vm525, %v1658
        %v1661 = vld [vmem:[%s114] sm:$0xff]
        %1663 = vrot.lane.b32.xlu0 %v1661, 22
        %v1664 = vpop.permute.xlu0 %1663
        %1666 = vst.msk [vmem:[%s132 + $0x18] sm:$0xff] %vm532, %v1664
        %v1667 = vld [vmem:[%s114] sm:$0xff]
        %1669 = vrot.lane.b32.xlu0 %v1667, 120
        %v1670 = vpop.permute.xlu0 %1669
        %1672 = vst.msk [vmem:[%s132 + $0x18] sm:$0xff] %vm539, %v1670
        %v1673 = vld [vmem:[%s114 + $0x8] sm:$0xff]
        %1675 = vrot.lane.b32.xlu0 %v1673, 28
        %v1676 = vpop.permute.xlu0 %1675
        %1678 = vst.msk [vmem:[%s132 + $0x18] sm:$0xff] %vm546, %v1676
        %v1679 = vld [vmem:[%s114 + $0x8] sm:$0xff]
        %1681 = vrot.lane.b32.xlu0 %v1679, 126
        %v1682 = vpop.permute.xlu0 %1681
        %1684 = vst.msk [vmem:[%s132 + $0x18] sm:$0xff] %vm553, %v1682
        %v1685 = vld [vmem:[%s114 + $0x8] sm:$0xff]
        %1687 = vrot.lane.b32.xlu0 %v1685, 30
        %v1688 = vpop.permute.xlu0 %1687
        %1690 = vst.msk [vmem:[%s132 + $0x18] sm:$0xff] %vm560, %v1688
        %v1691 = vld [vmem:[%s114 + $0x8] sm:$0xff]
        %1692 = vst.msk [vmem:[%s132 + $0x18] sm:$0xff] %vm563, %v1691
        %s1693 = sand.u32 %s52, 1
        %s1694 = scalar_lea.sflag [#allocation4], %s1693
        %s1695 = sand.u32 %s52, 1
        %s1696 = smul.addr %s1695, 32
        %s1697 = scalar_lea.vmem [#allocation5], %s1696
        // Predicated region
        $region29: #{tpu_custom_call.1} parent=23 // pred_check
          %p1698 = pneg %p62
        $region30: #{tpu_custom_call.1} parent=23 // pred_check_branch
          %1700 = sbr.rel (%p1698) target = $region32
        $region31: #{tpu_custom_call.1} parent=23 // pred_region
          %s1702 = ssub.s32 512, 512
          %1703 = vsyncadd %s1694, %s1702
          %s1704 = smul.addr %s18, 4
          %s1705 = smul.addr %s1704, 128
          %s1706 = scalar_lea.hbm %s1, %s1705
          %s1708 = sshll.u32 %s1697, 4
          %s1709 = int_to_ptr.vmem [resolvable:$true] %s1708
          %1711 = dma.vmem_to_hbm [thread:$0]  %s1709, 512, %s1706, %s1694
        $region32: #{tpu_custom_call.1} parent=23 // pred_fallthru
          _
      $region24: #{tpu_custom_call.1} parent=5 // pred_fallthru
        _
      %p1712 = scmp.le.s32.totalorder 2, %s13
      // Predicated region
      $region33: #{tpu_custom_call.1} parent=5 // pred_check
        %p1713 = pneg %p1712
      $region34: #{tpu_custom_call.1} parent=5 // pred_check_branch
        %1715 = sbr.rel (%p1713) target = $region36
      $region35: #{tpu_custom_call.1} parent=5 // pred_region
        %s1716 = ssub.s32 %s13, 2
        // Predicated region
        $region37: #{tpu_custom_call.1} parent=35 // pred_check
          %p1717 = pneg %p68
        $region38: #{tpu_custom_call.1} parent=35 // pred_check_branch
          %1719 = sbr.rel (%p1717) target = $region40
        $region39: #{tpu_custom_call.1} parent=35 // pred_region
          %s1720 = sand.u32 %s53, 1
          %s1721 = scalar_lea.sflag [#allocation4], %s1720
          %s1722 = sand.u32 %s53, 1
          %s1723 = smul.addr %s1722, 32
          %s1724 = scalar_lea.vmem [#allocation5], %s1723
          %1725 = dma.done %s1721, 512
        $region40: #{tpu_custom_call.1} parent=35 // pred_fallthru
          _
      $region36: #{tpu_custom_call.1} parent=5 // pred_fallthru
        _
    $region6: #{tpu_custom_call.1} parent=1 // loop_footer
      %s17 = sadd.s32 1, %s13
    $region7: #{tpu_custom_call.1} parent=1 // loop_footer_branch
      %12 = sbr.rel target = $region3
    $region8: #{tpu_custom_call.1} parent=1 // loop_exit
      _
    %1726 = vsyncpa [#allocation3], 1
    %s1727 = scalar_lea.sflag [#allocation3], 1
    %1728 = vsyncpa %s1727, 1
    %1729 = vsyncpa [#allocation4], 1
    %s1730 = scalar_lea.sflag [#allocation4], 1
    %1731 = vsyncpa %s1730, 1

</llo_original>
